<compile_context>
chip_gen: v7x
topology: tpu7x:2x2x1
jax: 0.10.0
libtpu: 0.0.40
codegen_flags: <defaults>
</compile_context>

<pallas_src>
import functools

import numpy as np
import jax
import jax.numpy as jnp
from jax import lax
from jax.experimental import pallas as pl
from jax.experimental.pallas import tpu as pltpu

EPS = 1e-5
NUM_CLASSES = 10
LANES = 128


# ---------------------------------------------------------------------------
# In-kernel helpers (pure value math, traced inside the Pallas kernel)
# ---------------------------------------------------------------------------
def _im2col_packed(a, h, w, cin, taps_per_block):
    """Per-image 3x3 im2col with lane-packed taps.

    a: (h*w, 128) f32 activation whose `cin` channels are replicated every
    `cin` lanes across the 128 lanes.  Returns (h*w, n_blocks*128) where tap
    k = dh*3+dw occupies block k//taps_per_block at lane offset (k%tpb)*cin.
    Vertical (dh) borders come for free from the explicit zero-pad rows;
    horizontal (dw) borders are masked.  Requires w to be a power of two.
    """
    rows, lanes = a.shape
    margin = w + 1
    zpad = jnp.zeros((margin, lanes), jnp.float32)
    aext = jnp.concatenate([zpad, a, zpad], axis=0)

    r = lax.broadcasted_iota(jnp.int32, (rows, 1), 0)            # row in image
    wp = r & (w - 1)                                             # w position
    lane = lax.broadcasted_iota(jnp.int32, (rows, lanes), 1)

    n_blocks = (9 + taps_per_block - 1) // taps_per_block
    blocks = []
    for g in range(n_blocks):
        acc = None
        for s in range(taps_per_block):
            k = g * taps_per_block + s
            if k >= 9:
                break
            dh, dw = divmod(k, 3)
            off = margin + (dh - 1) * w + (dw - 1)
            blk = aext[off:off + rows, :]
            m = jnp.logical_and(lane >= s * cin,
                                lane < (s + 1) * cin).astype(jnp.float32)
            if dw == 0:
                m = m * (wp >= 1).astype(jnp.float32)
            elif dw == 2:
                m = m * (wp < w - 1).astype(jnp.float32)
            blk = blk * m
            acc = blk if acc is None else acc + blk
        blocks.append(acc)
    return jnp.concatenate(blocks, axis=1)


def _conv1d_cols_packed(feat, t):
    """feat: (t, 128) f32 with the 64 channels replicated on lanes [0:64)/[64:128).
    Returns (t, 256): block0 = tap0@lanes[0:64) + tap1@lanes[64:128);
    block1 = tap2 (its upper-lane weight rows are zero)."""
    lanes = feat.shape[1]
    zrow = jnp.zeros((1, lanes), jnp.float32)
    fext = jnp.concatenate([zrow, feat, zrow], axis=0)           # zero-pad time
    lane = lax.broadcasted_iota(jnp.int32, (t, lanes), 1)
    lo = (lane < lanes // 2).astype(jnp.float32)
    blk0 = fext[0:t, :] * lo + fext[1:1 + t, :] * (1.0 - lo)
    blk1 = fext[2:2 + t, :]
    return jnp.concatenate([blk0, blk1], axis=1)


# ---------------------------------------------------------------------------
# The fused Pallas kernel (one grid step == one image)
# ---------------------------------------------------------------------------
def mridangam_fused_kernel(x0_ref, w0_ref, b0_ref, s0_ref,
                           w1_ref, b1_ref, s1_ref,
                           w2_ref, b2_ref, s2_ref,
                           wc_ref, bc_ref, wl_ref, bl_ref,
                           out_ref, *, height, width):
    f32, bf16 = jnp.float32, jnp.bfloat16

    def mm_bias_relu(lhs_f32, w_ref, b_ref):
        y = jnp.dot(lhs_f32.astype(bf16), w_ref[...], preferred_element_type=f32)
        return jnp.maximum(y + b_ref[...], 0.0)

    def maxpool_select(y, s_ref, w):
        rows = y.shape[0]
        lg = rows - w - 1
        g = jnp.maximum(jnp.maximum(y[0:lg, :], y[1:1 + lg, :]),
                        jnp.maximum(y[w:w + lg, :], y[w + 1:w + 1 + lg, :]))
        # selection matmul kept in f32 (tiny K) to avoid extra activation rounding
        return jnp.dot(s_ref[...].astype(f32), g, preferred_element_type=f32)

    # ---- layer 0: conv(1->32)+BN+ReLU (im2col'd on host) + maxpool 2x2 -------
    x0 = x0_ref[0]                                               # (H*W, 16) bf16
    y0 = jnp.maximum(jnp.dot(x0, w0_ref[...], preferred_element_type=f32)
                     + b0_ref[...], 0.0)                         # (H*W, 128)
    a1 = maxpool_select(y0, s0_ref, width)                       # (H/2*W/2, 128)

    # ---- layer 1: conv(32->64)+BN+ReLU, 4 taps lane-packed per block --------
    h, w = height // 2, width // 2
    y1 = mm_bias_relu(_im2col_packed(a1, h, w, 32, 4), w1_ref, b1_ref)
    a2 = maxpool_select(y1, s1_ref, w)

    # ---- layer 2: conv(64->64)+BN+ReLU, 2 taps packed; pool+mean-over-mel ----
    #      are folded into the s2 selection matrix -> feat directly.
    h, w = h // 2, w // 2
    y2 = mm_bias_relu(_im2col_packed(a2, h, w, 64, 2), w2_ref, b2_ref)
    feat = maxpool_select(y2, s2_ref, w)                         # (t, 128)

    # ---- classifier: conv1d(k=3, pad=1)+ReLU, taps packed 2 per block -------
    t = w // 2
    hc = mm_bias_relu(_conv1d_cols_packed(feat, t), wc_ref, bc_ref)

    # ---- AdaptiveAvgPool1d(1) + Flatten + Linear (pool folded to a row-sum) --
    pooled = jnp.sum(hc, axis=0, keepdims=True) * (1.0 / t)      # (1, 128)
    logits = jnp.dot(pooled.astype(bf16), wl_ref[...],
                     preferred_element_type=f32) + bl_ref[...]
    out_ref[0] = logits.astype(out_ref.dtype)


# ---------------------------------------------------------------------------
# Pallas wrapper
# ---------------------------------------------------------------------------
def _const_spec(shape):
    nd = len(shape)
    return pl.BlockSpec(shape, lambda i, _nd=nd: (0,) * _nd)


def _cost_estimate(n, h, w, inputs):
    hw = h * w
    h1, w1 = h // 2, w // 2
    h2, w2 = h1 // 2, w1 // 2
    t = w2 // 2
    per_img = 2 * (hw * 16 * LANES                                 # conv0
                   + (h1 * w1) * (hw - w - 1) * LANES              # pool0
                   + (h1 * w1) * 3 * LANES * LANES                 # conv1 (packed)
                   + (h2 * w2) * (h1 * w1 - w1 - 1) * LANES        # pool1
                   + (h2 * w2) * 5 * LANES * LANES                 # conv2 (packed)
                   + t * (h2 * w2 - w2 - 1) * LANES                # pool2+mean-mel
                   + t * 2 * LANES * LANES                         # conv1d (packed)
                   + LANES * LANES)                                # linear
    bytes_acc = sum(int(np.prod(v.shape)) * v.dtype.itemsize for v in inputs)
    bytes_acc += n * LANES * 4
    return pl.CostEstimate(flops=int(n * per_img), transcendentals=0,
                           bytes_accessed=int(bytes_acc))


def mridangam_fused(inputs, *, n_batch, height, width):
    hw = height * width
    kernel = functools.partial(mridangam_fused_kernel, height=height, width=width)
    in_specs = [pl.BlockSpec((1, hw, 16), lambda i: (i, 0, 0))]    # streamed per image
    in_specs += [_const_spec(v.shape) for v in inputs[1:]]         # weights resident
    return pl.pallas_call(
        kernel,
        out_shape=jax.ShapeDtypeStruct((n_batch, 1, LANES), jnp.float32),
        grid=(n_batch,),
        in_specs=in_specs,
        out_specs=pl.BlockSpec((1, 1, LANES), lambda i: (i, 0, 0)),
        compiler_params=pltpu.CompilerParams(dimension_semantics=("parallel",)),
        cost_estimate=_cost_estimate(n_batch, height, width, inputs),
    )(*inputs)


# ---------------------------------------------------------------------------
# XLA-side constants / input prep (tiny, trace-time only)
# ---------------------------------------------------------------------------
def _pool_select(h, w):
    """Per-image one-hot (Ho*Wo, H*W-W-1) matrix selecting the top-left corner
    of each 2x2 pool window from the 4-way shifted-max map g."""
    ho, wo = h // 2, w // 2
    s = np.zeros((ho * wo, h * w - w - 1), np.float32)
    for i in range(ho):
        for j in range(wo):
            s[i * wo + j, 2 * i * w + 2 * j] = 1.0
    return s


def _pool_select_meanmel(h, w):
    """Pool-2 select matrix with the mean-over-mel (AdaptiveAvgPool2d) folded in:
    rows are 1/Ho-weighted sums over the Ho pooled mel rows -> feat directly."""
    ho, wo = h // 2, w // 2
    s = np.zeros((wo, h * w - w - 1), np.float32)
    for j in range(wo):
        for i in range(ho):
            s[j, 2 * i * w + 2 * j] = 1.0 / ho
    return s


def _layer0_im2col(x_nchw):
    """(N,1,H,W) -> (N, H*W, 16) bf16: 9 conv taps (dh-major) on lanes 0..8."""
    n, _, h, w = x_nchw.shape
    xp = jnp.pad(x_nchw[:, 0].astype(jnp.float32), ((0, 0), (1, 1), (1, 1)))
    taps = [xp[:, dh:dh + h, dw:dw + w].reshape(n, h * w)
            for dh in range(3) for dw in range(3)]
    cols = jnp.stack(taps, axis=-1)
    cols = jnp.pad(cols, ((0, 0), (0, 0), (0, 16 - 9)))
    return cols.astype(jnp.bfloat16)


def mridangam_forward(x_nchw, params):
    """Full eval-mode forward pass. Input: NCHW (like PyTorch)."""
    n, cin, h, w = x_nchw.shape
    assert cin == 1 and h == w
    assert h >= 8 and (h & (h - 1)) == 0, "spatial dims must be a power of two >= 8"

    cols0 = _layer0_im2col(x_nchw)
    s0 = jnp.asarray(_pool_select(h, w), jnp.bfloat16)
    s1 = jnp.asarray(_pool_select(h // 2, w // 2), jnp.bfloat16)
    s2 = jnp.asarray(_pool_select_meanmel(h // 4, w // 4), jnp.bfloat16)

    inputs = [cols0,
              params["w0"], params["b0"], s0,
              params["w1"], params["b1"], s1,
              params["w2"], params["b2"], s2,
              params["wc"], params["bc"],
              params["wl"], params["bl"]]
    out = mridangam_fused(inputs, n_batch=n, height=h, width=w)   # (N, 1, 128)
    return out[:, 0, :NUM_CLASSES]


# ---------------------------------------------------------------------------
# Deterministic parameters (PyTorch shapes) and folding for the fused kernel
# ---------------------------------------------------------------------------
def init_raw_params(key):
    keys = jax.random.split(key, 24)
    ki = 0
    raw = {}
    conv_shapes = [(32, 1, 3, 3), (64, 32, 3, 3), (64, 64, 3, 3)]
    for i, shp in enumerate(conv_shapes):
        cout = shp[0]
        w = 0.1 * jax.random.normal(keys[ki], shp); ki += 1
        b = 0.1 * jax.random.normal(keys[ki], (cout,)); ki += 1
        g = 1.0 + 0.1 * jax.random.normal(keys[ki], (cout,)); ki += 1
        bt = 0.1 * jax.random.normal(keys[ki], (cout,)); ki += 1
        mu = 0.1 * jax.random.normal(keys[ki], (cout,)); ki += 1
        var = 1.0 + 0.1 * jnp.abs(jax.random.normal(keys[ki], (cout,))); ki += 1
        raw[f"conv{i}"] = (w, b, g, bt, mu, var)
    w1 = 0.1 * jax.random.normal(keys[ki], (64, 64, 3)); ki += 1
    b1 = 0.1 * jax.random.normal(keys[ki], (64,)); ki += 1
    raw["conv1d"] = (w1, b1)
    wl = 0.1 * jax.random.normal(keys[ki], (NUM_CLASSES, 64)); ki += 1
    bl = 0.1 * jax.random.normal(keys[ki], (NUM_CLASSES,)); ki += 1
    raw["linear"] = (wl, bl)
    return raw


def _fold_conv_bn(p):
    w, b, g, bt, mu, var = p
    s = g / jnp.sqrt(var + EPS)
    return w * s[:, None, None, None], bt + (b - mu) * s


def _pack_conv(p, cin, cout, tpb, out_rep):
    """BN-folded conv -> (n_blocks*128, 128) bf16 matrix with `tpb` taps packed
    per 128-lane input block and output channels replicated `out_rep` times."""
    w_eff, b_eff = _fold_conv_bn(p)
    n_blocks = (9 + tpb - 1) // tpb
    wbig = jnp.zeros((n_blocks * LANES, LANES), jnp.float32)
    bb = jnp.zeros((1, LANES), jnp.float32)
    for k in range(9):
        dh, dw = divmod(k, 3)
        blk = w_eff[:, :, dh, dw].T                       # (cin, cout), BN-scaled
        gi, sl = divmod(k, tpb)
        r0 = gi * LANES + sl * cin
        for rep in range(out_rep):
            wbig = wbig.at[r0:r0 + cin, rep * cout:(rep + 1) * cout].set(blk)
    for rep in range(out_rep):
        bb = bb.at[0, rep * cout:(rep + 1) * cout].set(b_eff)
    return wbig.astype(jnp.bfloat16), bb


def fold_params(raw):
    f = {}
    # layer 0: conv(1->32); output channels replicated 4x so layer-1 can pack
    # 4 taps per 128-lane block without any lane rotations.
    w_eff, b_eff = _fold_conv_bn(raw["conv0"])
    taps = jnp.transpose(w_eff[:, 0, :, :], (1, 2, 0)).reshape(9, 32)
    w0 = jnp.zeros((16, LANES), jnp.float32)
    b0 = jnp.zeros((1, LANES), jnp.float32)
    for rep in range(4):
        w0 = w0.at[:9, rep * 32:(rep + 1) * 32].set(taps)
        b0 = b0.at[0, rep * 32:(rep + 1) * 32].set(b_eff)
    f["w0"], f["b0"] = w0.astype(jnp.bfloat16), b0

    f["w1"], f["b1"] = _pack_conv(raw["conv1"], cin=32, cout=64, tpb=4, out_rep=2)
    f["w2"], f["b2"] = _pack_conv(raw["conv2"], cin=64, cout=64, tpb=2, out_rep=2)

    # classifier conv1d(64->64, k=3): taps packed 2 per 128-lane block
    w1d, b1d = raw["conv1d"]
    wc = jnp.zeros((2 * LANES, LANES), jnp.float32)
    for k in range(3):
        gi, sl = divmod(k, 2)
        r0 = gi * LANES + sl * 64
        wc = wc.at[r0:r0 + 64, :64].set(w1d[:, :, k].T)
    f["wc"] = wc.astype(jnp.bfloat16)
    f["bc"] = jnp.zeros((1, LANES), jnp.float32).at[0, :64].set(b1d)

    # linear(64->10), lane-dense 128-wide output
    wl, bl = raw["linear"]
    f["wl"] = (jnp.zeros((LANES, LANES), jnp.float32)
               .at[:64, :NUM_CLASSES].set(wl.T).astype(jnp.bfloat16))
    f["bl"] = jnp.zeros((1, LANES), jnp.float32).at[0, :NUM_CLASSES].set(bl)
    return f


def make_eff_params(raw):
    """Eval-mode effective parameters (BN folded), with the same bf16 rounding
    of the weights as the kernel uses, so the reference isolates kernel-side
    activation rounding / reassociation only."""
    eff = {}
    for i in range(3):
        w_eff, b_eff = _fold_conv_bn(raw[f"conv{i}"])
        eff[f"conv{i}"] = (w_eff.astype(jnp.bfloat16).astype(jnp.float32), b_eff)
    w1d, b1d = raw["conv1d"]
    eff["conv1d"] = (w1d.astype(jnp.bfloat16).astype(jnp.float32), b1d)
    wl, bl = raw["linear"]
    eff["linear"] = (wl.astype(jnp.bfloat16).astype(jnp.float32), bl)
    return eff


# ---------------------------------------------------------------------------
# Plain-JAX eval-mode reference mirroring the PyTorch module (Dropout = id)
# ---------------------------------------------------------------------------
def reference_forward(x_nchw, eff):
    hp = lax.Precision.HIGHEST
    x = x_nchw.astype(jnp.float32)
    for i in range(3):
        w_eff, b_eff = eff[f"conv{i}"]
        y = lax.conv_general_dilated(
            x, w_eff, window_strides=(1, 1), padding=((1, 1), (1, 1)),
            dimension_numbers=("NCHW", "OIHW", "NCHW"), precision=hp)
        y = jnp.maximum(y + b_eff[None, :, None, None], 0.0)
        n, c, hh, ww = y.shape
        x = y.reshape(n, c, hh // 2, 2, ww // 2, 2).max(axis=(3, 5))
    x = x.mean(axis=2)                                  # AdaptiveAvgPool2d((1,None)) + squeeze
    w1d, b1d = eff["conv1d"]
    t = x.shape[2]
    xp = jnp.pad(x, ((0, 0), (0, 0), (1, 1)))
    y = sum(jnp.einsum("nct,oc->not", xp[:, :, k:k + t], w1d[:, :, k], precision=hp)
            for k in range(3))
    y = jnp.maximum(y + b1d[None, :, None], 0.0).mean(axis=2)
    wl, bl = eff["linear"]
    return jnp.dot(y, wl.T, precision=hp) + bl


# ---------------------------------------------------------------------------
if __name__ == "__main__":
    key = jax.random.PRNGKey(0)
    k_param, k_x = jax.random.split(key)
    raw = init_raw_params(k_param)
    params = fold_params(raw)
    eff = make_eff_params(raw)

    # Small input consistent with the module: (batch=2, 1 channel, 16 mels, 16 frames)
    x = jax.random.normal(k_x, (2, 1, 16, 16), dtype=jnp.float32)

    fwd = jax.jit(functools.partial(mridangam_forward, params=params))
    out = jax.block_until_ready(fwd(x))

    ref = jax.block_until_ready(reference_forward(x, eff))
    assert out.shape == (2, NUM_CLASSES)
    err = float(jnp.max(jnp.abs(out - ref)))
    # tolerance reflects bf16 MXU operands (f32 accumulation) vs. the f32 reference
    assert jnp.allclose(out, ref, rtol=2e-2, atol=2e-2), err

    print("KERNEL_OK")
</pallas_src>

<mosaic_0001>
module attributes {stable_mosaic.version = 11 : i64} {
  func.func @mridangam_fused_kernel(%arg0: i32, %arg1: memref<1x256x16xbf16, #tpu.memory_space<vmem>>, %arg2: memref<16x128xbf16, #tpu.memory_space<vmem>>, %arg3: memref<1x128xf32, #tpu.memory_space<vmem>>, %arg4: memref<64x239xbf16, #tpu.memory_space<vmem>>, %arg5: memref<384x128xbf16, #tpu.memory_space<vmem>>, %arg6: memref<1x128xf32, #tpu.memory_space<vmem>>, %arg7: memref<16x55xbf16, #tpu.memory_space<vmem>>, %arg8: memref<640x128xbf16, #tpu.memory_space<vmem>>, %arg9: memref<1x128xf32, #tpu.memory_space<vmem>>, %arg10: memref<2x11xbf16, #tpu.memory_space<vmem>>, %arg11: memref<256x128xbf16, #tpu.memory_space<vmem>>, %arg12: memref<1x128xf32, #tpu.memory_space<vmem>>, %arg13: memref<128x128xbf16, #tpu.memory_space<vmem>>, %arg14: memref<1x128xf32, #tpu.memory_space<vmem>>, %arg15: memref<1x1x128xf32, #tpu.memory_space<vmem>>) attributes {dimension_semantics = [#tpu.dimension_semantics<parallel>], iteration_bounds = array<i64: 2>, scalar_prefetch = 0 : i64, scratch_operands = 0 : i64, tpu.core_type = #tpu.core_type<tc>, window_params = [{transform_indices = @transform_0, window_bounds = array<i64: 1, 256, 16>}, {pipeline_mode = #tpu.pipeline_mode<synchronous>, transform_indices = @transform_1, window_bounds = array<i64: 16, 128>}, {pipeline_mode = #tpu.pipeline_mode<synchronous>, transform_indices = @transform_2, window_bounds = array<i64: 1, 128>}, {pipeline_mode = #tpu.pipeline_mode<synchronous>, transform_indices = @transform_3, window_bounds = array<i64: 64, 239>}, {pipeline_mode = #tpu.pipeline_mode<synchronous>, transform_indices = @transform_4, window_bounds = array<i64: 384, 128>}, {pipeline_mode = #tpu.pipeline_mode<synchronous>, transform_indices = @transform_5, window_bounds = array<i64: 1, 128>}, {pipeline_mode = #tpu.pipeline_mode<synchronous>, transform_indices = @transform_6, window_bounds = array<i64: 16, 55>}, {pipeline_mode = #tpu.pipeline_mode<synchronous>, transform_indices = @transform_7, window_bounds = array<i64: 640, 128>}, {pipeline_mode = #tpu.pipeline_mode<synchronous>, transform_indices = @transform_8, window_bounds = array<i64: 1, 128>}, {pipeline_mode = #tpu.pipeline_mode<synchronous>, transform_indices = @transform_9, window_bounds = array<i64: 2, 11>}, {pipeline_mode = #tpu.pipeline_mode<synchronous>, transform_indices = @transform_10, window_bounds = array<i64: 256, 128>}, {pipeline_mode = #tpu.pipeline_mode<synchronous>, transform_indices = @transform_11, window_bounds = array<i64: 1, 128>}, {pipeline_mode = #tpu.pipeline_mode<synchronous>, transform_indices = @transform_12, window_bounds = array<i64: 128, 128>}, {pipeline_mode = #tpu.pipeline_mode<synchronous>, transform_indices = @transform_13, window_bounds = array<i64: 1, 128>}, {transform_indices = @transform_14, window_bounds = array<i64: 1, 1, 128>}]} {
    %c0 = arith.constant 0 : index
    %c0_0 = arith.constant 0 : index
    %c0_1 = arith.constant 0 : index
    %0 = vector.load %arg1[%c0, %c0_0, %c0_1] : memref<1x256x16xbf16, #tpu.memory_space<vmem>>, vector<1x256x16xbf16>
    %1 = vector.shape_cast %0 : vector<1x256x16xbf16> to vector<256x16xbf16>
    %c0_2 = arith.constant 0 : index
    %c0_3 = arith.constant 0 : index
    %2 = vector.load %arg2[%c0_2, %c0_3] : memref<16x128xbf16, #tpu.memory_space<vmem>>, vector<16x128xbf16>
    %cst = arith.constant dense<0.000000e+00> : vector<256x128xf32>
    %3 = tpu.matmul %1, %2, %cst {dimension_numbers = #tpu.dot_dimension_numbers<[1], [0], [0], [1], [0, 0, 1, 1], [], []>} : vector<256x16xbf16>, vector<16x128xbf16>, vector<256x128xf32> -> vector<256x128xf32>
    %c0_4 = arith.constant 0 : index
    %c0_5 = arith.constant 0 : index
    %4 = vector.load %arg3[%c0_4, %c0_5] : memref<1x128xf32, #tpu.memory_space<vmem>>, vector<1x128xf32>
    %5 = vector.broadcast %4 : vector<1x128xf32> to vector<256x128xf32>
    %6 = arith.addf %3, %5 : vector<256x128xf32>
    %cst_6 = arith.constant 0.000000e+00 : f32
    %7 = vector.broadcast %cst_6 : f32 to vector<256x128xf32>
    %8 = arith.maximumf %6, %7 : vector<256x128xf32>
    %9 = vector.extract_strided_slice %8 {offsets = [0, 0], sizes = [239, 128], strides = [1, 1]} : vector<256x128xf32> to vector<239x128xf32>
    %10 = vector.extract_strided_slice %8 {offsets = [1, 0], sizes = [239, 128], strides = [1, 1]} : vector<256x128xf32> to vector<239x128xf32>
    %11 = arith.maximumf %9, %10 : vector<239x128xf32>
    %12 = vector.extract_strided_slice %8 {offsets = [16, 0], sizes = [239, 128], strides = [1, 1]} : vector<256x128xf32> to vector<239x128xf32>
    %13 = vector.extract_strided_slice %8 {offsets = [17, 0], sizes = [239, 128], strides = [1, 1]} : vector<256x128xf32> to vector<239x128xf32>
    %14 = arith.maximumf %12, %13 : vector<239x128xf32>
    %15 = arith.maximumf %11, %14 : vector<239x128xf32>
    %c0_7 = arith.constant 0 : index
    %c0_8 = arith.constant 0 : index
    %16 = vector.load %arg4[%c0_7, %c0_8] : memref<64x239xbf16, #tpu.memory_space<vmem>>, vector<64x239xbf16>
    %17 = arith.extf %16 : vector<64x239xbf16> to vector<64x239xf32>
    %cst_9 = arith.constant dense<0.000000e+00> : vector<64x128xf32>
    %18 = tpu.matmul %17, %15, %cst_9 {dimension_numbers = #tpu.dot_dimension_numbers<[1], [0], [0], [1], [0, 0, 1, 1], [], []>} : vector<64x239xf32>, vector<239x128xf32>, vector<64x128xf32> -> vector<64x128xf32>
    %cst_10 = arith.constant 0.000000e+00 : f32
    %19 = vector.broadcast %cst_10 : f32 to vector<9x128xf32>
    %20 = tpu.concatenate %19, %18, %19 in 0 : vector<9x128xf32>, vector<64x128xf32>, vector<9x128xf32> -> vector<82x128xf32>
    %21 = tpu.iota {dimensions = array<i32: 0>} : vector<64x1xi32>
    %c7_i32 = arith.constant 7 : i32
    %22 = vector.broadcast %c7_i32 : i32 to vector<64x1xi32>
    %23 = arith.andi %21, %22 : vector<64x1xi32>
    %24 = tpu.iota {dimensions = array<i32: 1>} : vector<64x128xi32>
    %25 = vector.extract_strided_slice %20 {offsets = [0, 0], sizes = [64, 128], strides = [1, 1]} : vector<82x128xf32> to vector<64x128xf32>
    %c0_i32 = arith.constant 0 : i32
    %26 = vector.broadcast %c0_i32 : i32 to vector<64x128xi32>
    %27 = arith.cmpi sge, %24, %26 : vector<64x128xi32>
    %c32_i32 = arith.constant 32 : i32
    %28 = vector.broadcast %c32_i32 : i32 to vector<64x128xi32>
    %29 = arith.cmpi slt, %24, %28 : vector<64x128xi32>
    %30 = arith.andi %27, %29 : vector<64x128xi1>
    %31 = arith.extui %30 : vector<64x128xi1> to vector<64x128xi32>
    %32 = arith.sitofp %31 : vector<64x128xi32> to vector<64x128xf32>
    %c1_i32 = arith.constant 1 : i32
    %33 = vector.broadcast %c1_i32 : i32 to vector<64x1xi32>
    %34 = arith.cmpi sge, %23, %33 : vector<64x1xi32>
    %35 = arith.extui %34 : vector<64x1xi1> to vector<64x1xi32>
    %36 = arith.sitofp %35 : vector<64x1xi32> to vector<64x1xf32>
    %37 = vector.broadcast %36 : vector<64x1xf32> to vector<64x128xf32>
    %38 = arith.mulf %32, %37 : vector<64x128xf32>
    %39 = arith.mulf %25, %38 : vector<64x128xf32>
    %40 = vector.extract_strided_slice %20 {offsets = [1, 0], sizes = [64, 128], strides = [1, 1]} : vector<82x128xf32> to vector<64x128xf32>
    %c32_i32_11 = arith.constant 32 : i32
    %41 = vector.broadcast %c32_i32_11 : i32 to vector<64x128xi32>
    %42 = arith.cmpi sge, %24, %41 : vector<64x128xi32>
    %c64_i32 = arith.constant 64 : i32
    %43 = vector.broadcast %c64_i32 : i32 to vector<64x128xi32>
    %44 = arith.cmpi slt, %24, %43 : vector<64x128xi32>
    %45 = arith.andi %42, %44 : vector<64x128xi1>
    %46 = arith.extui %45 : vector<64x128xi1> to vector<64x128xi32>
    %47 = arith.sitofp %46 : vector<64x128xi32> to vector<64x128xf32>
    %48 = arith.mulf %40, %47 : vector<64x128xf32>
    %49 = arith.addf %39, %48 : vector<64x128xf32>
    %50 = vector.extract_strided_slice %20 {offsets = [2, 0], sizes = [64, 128], strides = [1, 1]} : vector<82x128xf32> to vector<64x128xf32>
    %c64_i32_12 = arith.constant 64 : i32
    %51 = vector.broadcast %c64_i32_12 : i32 to vector<64x128xi32>
    %52 = arith.cmpi sge, %24, %51 : vector<64x128xi32>
    %c96_i32 = arith.constant 96 : i32
    %53 = vector.broadcast %c96_i32 : i32 to vector<64x128xi32>
    %54 = arith.cmpi slt, %24, %53 : vector<64x128xi32>
    %55 = arith.andi %52, %54 : vector<64x128xi1>
    %56 = arith.extui %55 : vector<64x128xi1> to vector<64x128xi32>
    %57 = arith.sitofp %56 : vector<64x128xi32> to vector<64x128xf32>
    %c7_i32_13 = arith.constant 7 : i32
    %58 = vector.broadcast %c7_i32_13 : i32 to vector<64x1xi32>
    %59 = arith.cmpi slt, %23, %58 : vector<64x1xi32>
    %60 = arith.extui %59 : vector<64x1xi1> to vector<64x1xi32>
    %61 = arith.sitofp %60 : vector<64x1xi32> to vector<64x1xf32>
    %62 = vector.broadcast %61 : vector<64x1xf32> to vector<64x128xf32>
    %63 = arith.mulf %57, %62 : vector<64x128xf32>
    %64 = arith.mulf %50, %63 : vector<64x128xf32>
    %65 = arith.addf %49, %64 : vector<64x128xf32>
    %66 = vector.extract_strided_slice %20 {offsets = [8, 0], sizes = [64, 128], strides = [1, 1]} : vector<82x128xf32> to vector<64x128xf32>
    %c96_i32_14 = arith.constant 96 : i32
    %67 = vector.broadcast %c96_i32_14 : i32 to vector<64x128xi32>
    %68 = arith.cmpi sge, %24, %67 : vector<64x128xi32>
    %c128_i32 = arith.constant 128 : i32
    %69 = vector.broadcast %c128_i32 : i32 to vector<64x128xi32>
    %70 = arith.cmpi slt, %24, %69 : vector<64x128xi32>
    %71 = arith.andi %68, %70 : vector<64x128xi1>
    %72 = arith.extui %71 : vector<64x128xi1> to vector<64x128xi32>
    %73 = arith.sitofp %72 : vector<64x128xi32> to vector<64x128xf32>
    %c1_i32_15 = arith.constant 1 : i32
    %74 = vector.broadcast %c1_i32_15 : i32 to vector<64x1xi32>
    %75 = arith.cmpi sge, %23, %74 : vector<64x1xi32>
    %76 = arith.extui %75 : vector<64x1xi1> to vector<64x1xi32>
    %77 = arith.sitofp %76 : vector<64x1xi32> to vector<64x1xf32>
    %78 = vector.broadcast %77 : vector<64x1xf32> to vector<64x128xf32>
    %79 = arith.mulf %73, %78 : vector<64x128xf32>
    %80 = arith.mulf %66, %79 : vector<64x128xf32>
    %81 = arith.addf %65, %80 : vector<64x128xf32>
    %82 = vector.extract_strided_slice %20 {offsets = [9, 0], sizes = [64, 128], strides = [1, 1]} : vector<82x128xf32> to vector<64x128xf32>
    %c0_i32_16 = arith.constant 0 : i32
    %83 = vector.broadcast %c0_i32_16 : i32 to vector<64x128xi32>
    %84 = arith.cmpi sge, %24, %83 : vector<64x128xi32>
    %c32_i32_17 = arith.constant 32 : i32
    %85 = vector.broadcast %c32_i32_17 : i32 to vector<64x128xi32>
    %86 = arith.cmpi slt, %24, %85 : vector<64x128xi32>
    %87 = arith.andi %84, %86 : vector<64x128xi1>
    %88 = arith.extui %87 : vector<64x128xi1> to vector<64x128xi32>
    %89 = arith.sitofp %88 : vector<64x128xi32> to vector<64x128xf32>
    %90 = arith.mulf %82, %89 : vector<64x128xf32>
    %91 = vector.extract_strided_slice %20 {offsets = [10, 0], sizes = [64, 128], strides = [1, 1]} : vector<82x128xf32> to vector<64x128xf32>
    %c32_i32_18 = arith.constant 32 : i32
    %92 = vector.broadcast %c32_i32_18 : i32 to vector<64x128xi32>
    %93 = arith.cmpi sge, %24, %92 : vector<64x128xi32>
    %c64_i32_19 = arith.constant 64 : i32
    %94 = vector.broadcast %c64_i32_19 : i32 to vector<64x128xi32>
    %95 = arith.cmpi slt, %24, %94 : vector<64x128xi32>
    %96 = arith.andi %93, %95 : vector<64x128xi1>
    %97 = arith.extui %96 : vector<64x128xi1> to vector<64x128xi32>
    %98 = arith.sitofp %97 : vector<64x128xi32> to vector<64x128xf32>
    %c7_i32_20 = arith.constant 7 : i32
    %99 = vector.broadcast %c7_i32_20 : i32 to vector<64x1xi32>
    %100 = arith.cmpi slt, %23, %99 : vector<64x1xi32>
    %101 = arith.extui %100 : vector<64x1xi1> to vector<64x1xi32>
    %102 = arith.sitofp %101 : vector<64x1xi32> to vector<64x1xf32>
    %103 = vector.broadcast %102 : vector<64x1xf32> to vector<64x128xf32>
    %104 = arith.mulf %98, %103 : vector<64x128xf32>
    %105 = arith.mulf %91, %104 : vector<64x128xf32>
    %106 = arith.addf %90, %105 : vector<64x128xf32>
    %107 = vector.extract_strided_slice %20 {offsets = [16, 0], sizes = [64, 128], strides = [1, 1]} : vector<82x128xf32> to vector<64x128xf32>
    %c64_i32_21 = arith.constant 64 : i32
    %108 = vector.broadcast %c64_i32_21 : i32 to vector<64x128xi32>
    %109 = arith.cmpi sge, %24, %108 : vector<64x128xi32>
    %c96_i32_22 = arith.constant 96 : i32
    %110 = vector.broadcast %c96_i32_22 : i32 to vector<64x128xi32>
    %111 = arith.cmpi slt, %24, %110 : vector<64x128xi32>
    %112 = arith.andi %109, %111 : vector<64x128xi1>
    %113 = arith.extui %112 : vector<64x128xi1> to vector<64x128xi32>
    %114 = arith.sitofp %113 : vector<64x128xi32> to vector<64x128xf32>
    %c1_i32_23 = arith.constant 1 : i32
    %115 = vector.broadcast %c1_i32_23 : i32 to vector<64x1xi32>
    %116 = arith.cmpi sge, %23, %115 : vector<64x1xi32>
    %117 = arith.extui %116 : vector<64x1xi1> to vector<64x1xi32>
    %118 = arith.sitofp %117 : vector<64x1xi32> to vector<64x1xf32>
    %119 = vector.broadcast %118 : vector<64x1xf32> to vector<64x128xf32>
    %120 = arith.mulf %114, %119 : vector<64x128xf32>
    %121 = arith.mulf %107, %120 : vector<64x128xf32>
    %122 = arith.addf %106, %121 : vector<64x128xf32>
    %123 = vector.extract_strided_slice %20 {offsets = [17, 0], sizes = [64, 128], strides = [1, 1]} : vector<82x128xf32> to vector<64x128xf32>
    %c96_i32_24 = arith.constant 96 : i32
    %124 = vector.broadcast %c96_i32_24 : i32 to vector<64x128xi32>
    %125 = arith.cmpi sge, %24, %124 : vector<64x128xi32>
    %c128_i32_25 = arith.constant 128 : i32
    %126 = vector.broadcast %c128_i32_25 : i32 to vector<64x128xi32>
    %127 = arith.cmpi slt, %24, %126 : vector<64x128xi32>
    %128 = arith.andi %125, %127 : vector<64x128xi1>
    %129 = arith.extui %128 : vector<64x128xi1> to vector<64x128xi32>
    %130 = arith.sitofp %129 : vector<64x128xi32> to vector<64x128xf32>
    %131 = arith.mulf %123, %130 : vector<64x128xf32>
    %132 = arith.addf %122, %131 : vector<64x128xf32>
    %133 = vector.extract_strided_slice %20 {offsets = [18, 0], sizes = [64, 128], strides = [1, 1]} : vector<82x128xf32> to vector<64x128xf32>
    %c0_i32_26 = arith.constant 0 : i32
    %134 = vector.broadcast %c0_i32_26 : i32 to vector<64x128xi32>
    %135 = arith.cmpi sge, %24, %134 : vector<64x128xi32>
    %c32_i32_27 = arith.constant 32 : i32
    %136 = vector.broadcast %c32_i32_27 : i32 to vector<64x128xi32>
    %137 = arith.cmpi slt, %24, %136 : vector<64x128xi32>
    %138 = arith.andi %135, %137 : vector<64x128xi1>
    %139 = arith.extui %138 : vector<64x128xi1> to vector<64x128xi32>
    %140 = arith.sitofp %139 : vector<64x128xi32> to vector<64x128xf32>
    %c7_i32_28 = arith.constant 7 : i32
    %141 = vector.broadcast %c7_i32_28 : i32 to vector<64x1xi32>
    %142 = arith.cmpi slt, %23, %141 : vector<64x1xi32>
    %143 = arith.extui %142 : vector<64x1xi1> to vector<64x1xi32>
    %144 = arith.sitofp %143 : vector<64x1xi32> to vector<64x1xf32>
    %145 = vector.broadcast %144 : vector<64x1xf32> to vector<64x128xf32>
    %146 = arith.mulf %140, %145 : vector<64x128xf32>
    %147 = arith.mulf %133, %146 : vector<64x128xf32>
    %148 = tpu.concatenate %81, %132, %147 in 1 : vector<64x128xf32>, vector<64x128xf32>, vector<64x128xf32> -> vector<64x384xf32>
    %149 = arith.truncf %148 : vector<64x384xf32> to vector<64x384xbf16>
    %c0_29 = arith.constant 0 : index
    %c0_30 = arith.constant 0 : index
    %150 = vector.load %arg5[%c0_29, %c0_30] : memref<384x128xbf16, #tpu.memory_space<vmem>>, vector<384x128xbf16>
    %cst_31 = arith.constant dense<0.000000e+00> : vector<64x128xf32>
    %151 = tpu.matmul %149, %150, %cst_31 {dimension_numbers = #tpu.dot_dimension_numbers<[1], [0], [0], [1], [0, 0, 1, 1], [], []>} : vector<64x384xbf16>, vector<384x128xbf16>, vector<64x128xf32> -> vector<64x128xf32>
    %c0_32 = arith.constant 0 : index
    %c0_33 = arith.constant 0 : index
    %152 = vector.load %arg6[%c0_32, %c0_33] : memref<1x128xf32, #tpu.memory_space<vmem>>, vector<1x128xf32>
    %153 = vector.broadcast %152 : vector<1x128xf32> to vector<64x128xf32>
    %154 = arith.addf %151, %153 : vector<64x128xf32>
    %cst_34 = arith.constant 0.000000e+00 : f32
    %155 = vector.broadcast %cst_34 : f32 to vector<64x128xf32>
    %156 = arith.maximumf %154, %155 : vector<64x128xf32>
    %157 = vector.extract_strided_slice %156 {offsets = [0, 0], sizes = [55, 128], strides = [1, 1]} : vector<64x128xf32> to vector<55x128xf32>
    %158 = vector.extract_strided_slice %156 {offsets = [1, 0], sizes = [55, 128], strides = [1, 1]} : vector<64x128xf32> to vector<55x128xf32>
    %159 = arith.maximumf %157, %158 : vector<55x128xf32>
    %160 = vector.extract_strided_slice %156 {offsets = [8, 0], sizes = [55, 128], strides = [1, 1]} : vector<64x128xf32> to vector<55x128xf32>
    %161 = vector.extract_strided_slice %156 {offsets = [9, 0], sizes = [55, 128], strides = [1, 1]} : vector<64x128xf32> to vector<55x128xf32>
    %162 = arith.maximumf %160, %161 : vector<55x128xf32>
    %163 = arith.maximumf %159, %162 : vector<55x128xf32>
    %c0_35 = arith.constant 0 : index
    %c0_36 = arith.constant 0 : index
    %164 = vector.load %arg7[%c0_35, %c0_36] : memref<16x55xbf16, #tpu.memory_space<vmem>>, vector<16x55xbf16>
    %165 = arith.extf %164 : vector<16x55xbf16> to vector<16x55xf32>
    %cst_37 = arith.constant dense<0.000000e+00> : vector<16x128xf32>
    %166 = tpu.matmul %165, %163, %cst_37 {dimension_numbers = #tpu.dot_dimension_numbers<[1], [0], [0], [1], [0, 0, 1, 1], [], []>} : vector<16x55xf32>, vector<55x128xf32>, vector<16x128xf32> -> vector<16x128xf32>
    %cst_38 = arith.constant 0.000000e+00 : f32
    %167 = vector.broadcast %cst_38 : f32 to vector<5x128xf32>
    %168 = tpu.concatenate %167, %166, %167 in 0 : vector<5x128xf32>, vector<16x128xf32>, vector<5x128xf32> -> vector<26x128xf32>
    %169 = tpu.iota {dimensions = array<i32: 0>} : vector<16x1xi32>
    %c3_i32 = arith.constant 3 : i32
    %170 = vector.broadcast %c3_i32 : i32 to vector<16x1xi32>
    %171 = arith.andi %169, %170 : vector<16x1xi32>
    %172 = tpu.iota {dimensions = array<i32: 1>} : vector<16x128xi32>
    %173 = vector.extract_strided_slice %168 {offsets = [0, 0], sizes = [16, 128], strides = [1, 1]} : vector<26x128xf32> to vector<16x128xf32>
    %c0_i32_39 = arith.constant 0 : i32
    %174 = vector.broadcast %c0_i32_39 : i32 to vector<16x128xi32>
    %175 = arith.cmpi sge, %172, %174 : vector<16x128xi32>
    %c64_i32_40 = arith.constant 64 : i32
    %176 = vector.broadcast %c64_i32_40 : i32 to vector<16x128xi32>
    %177 = arith.cmpi slt, %172, %176 : vector<16x128xi32>
    %178 = arith.andi %175, %177 : vector<16x128xi1>
    %179 = arith.extui %178 : vector<16x128xi1> to vector<16x128xi32>
    %180 = arith.sitofp %179 : vector<16x128xi32> to vector<16x128xf32>
    %c1_i32_41 = arith.constant 1 : i32
    %181 = vector.broadcast %c1_i32_41 : i32 to vector<16x1xi32>
    %182 = arith.cmpi sge, %171, %181 : vector<16x1xi32>
    %183 = arith.extui %182 : vector<16x1xi1> to vector<16x1xi32>
    %184 = arith.sitofp %183 : vector<16x1xi32> to vector<16x1xf32>
    %185 = vector.broadcast %184 : vector<16x1xf32> to vector<16x128xf32>
    %186 = arith.mulf %180, %185 : vector<16x128xf32>
    %187 = arith.mulf %173, %186 : vector<16x128xf32>
    %188 = vector.extract_strided_slice %168 {offsets = [1, 0], sizes = [16, 128], strides = [1, 1]} : vector<26x128xf32> to vector<16x128xf32>
    %c64_i32_42 = arith.constant 64 : i32
    %189 = vector.broadcast %c64_i32_42 : i32 to vector<16x128xi32>
    %190 = arith.cmpi sge, %172, %189 : vector<16x128xi32>
    %c128_i32_43 = arith.constant 128 : i32
    %191 = vector.broadcast %c128_i32_43 : i32 to vector<16x128xi32>
    %192 = arith.cmpi slt, %172, %191 : vector<16x128xi32>
    %193 = arith.andi %190, %192 : vector<16x128xi1>
    %194 = arith.extui %193 : vector<16x128xi1> to vector<16x128xi32>
    %195 = arith.sitofp %194 : vector<16x128xi32> to vector<16x128xf32>
    %196 = arith.mulf %188, %195 : vector<16x128xf32>
    %197 = arith.addf %187, %196 : vector<16x128xf32>
    %198 = vector.extract_strided_slice %168 {offsets = [2, 0], sizes = [16, 128], strides = [1, 1]} : vector<26x128xf32> to vector<16x128xf32>
    %c0_i32_44 = arith.constant 0 : i32
    %199 = vector.broadcast %c0_i32_44 : i32 to vector<16x128xi32>
    %200 = arith.cmpi sge, %172, %199 : vector<16x128xi32>
    %c64_i32_45 = arith.constant 64 : i32
    %201 = vector.broadcast %c64_i32_45 : i32 to vector<16x128xi32>
    %202 = arith.cmpi slt, %172, %201 : vector<16x128xi32>
    %203 = arith.andi %200, %202 : vector<16x128xi1>
    %204 = arith.extui %203 : vector<16x128xi1> to vector<16x128xi32>
    %205 = arith.sitofp %204 : vector<16x128xi32> to vector<16x128xf32>
    %c3_i32_46 = arith.constant 3 : i32
    %206 = vector.broadcast %c3_i32_46 : i32 to vector<16x1xi32>
    %207 = arith.cmpi slt, %171, %206 : vector<16x1xi32>
    %208 = arith.extui %207 : vector<16x1xi1> to vector<16x1xi32>
    %209 = arith.sitofp %208 : vector<16x1xi32> to vector<16x1xf32>
    %210 = vector.broadcast %209 : vector<16x1xf32> to vector<16x128xf32>
    %211 = arith.mulf %205, %210 : vector<16x128xf32>
    %212 = arith.mulf %198, %211 : vector<16x128xf32>
    %213 = vector.extract_strided_slice %168 {offsets = [4, 0], sizes = [16, 128], strides = [1, 1]} : vector<26x128xf32> to vector<16x128xf32>
    %c64_i32_47 = arith.constant 64 : i32
    %214 = vector.broadcast %c64_i32_47 : i32 to vector<16x128xi32>
    %215 = arith.cmpi sge, %172, %214 : vector<16x128xi32>
    %c128_i32_48 = arith.constant 128 : i32
    %216 = vector.broadcast %c128_i32_48 : i32 to vector<16x128xi32>
    %217 = arith.cmpi slt, %172, %216 : vector<16x128xi32>
    %218 = arith.andi %215, %217 : vector<16x128xi1>
    %219 = arith.extui %218 : vector<16x128xi1> to vector<16x128xi32>
    %220 = arith.sitofp %219 : vector<16x128xi32> to vector<16x128xf32>
    %c1_i32_49 = arith.constant 1 : i32
    %221 = vector.broadcast %c1_i32_49 : i32 to vector<16x1xi32>
    %222 = arith.cmpi sge, %171, %221 : vector<16x1xi32>
    %223 = arith.extui %222 : vector<16x1xi1> to vector<16x1xi32>
    %224 = arith.sitofp %223 : vector<16x1xi32> to vector<16x1xf32>
    %225 = vector.broadcast %224 : vector<16x1xf32> to vector<16x128xf32>
    %226 = arith.mulf %220, %225 : vector<16x128xf32>
    %227 = arith.mulf %213, %226 : vector<16x128xf32>
    %228 = arith.addf %212, %227 : vector<16x128xf32>
    %229 = vector.extract_strided_slice %168 {offsets = [5, 0], sizes = [16, 128], strides = [1, 1]} : vector<26x128xf32> to vector<16x128xf32>
    %c0_i32_50 = arith.constant 0 : i32
    %230 = vector.broadcast %c0_i32_50 : i32 to vector<16x128xi32>
    %231 = arith.cmpi sge, %172, %230 : vector<16x128xi32>
    %c64_i32_51 = arith.constant 64 : i32
    %232 = vector.broadcast %c64_i32_51 : i32 to vector<16x128xi32>
    %233 = arith.cmpi slt, %172, %232 : vector<16x128xi32>
    %234 = arith.andi %231, %233 : vector<16x128xi1>
    %235 = arith.extui %234 : vector<16x128xi1> to vector<16x128xi32>
    %236 = arith.sitofp %235 : vector<16x128xi32> to vector<16x128xf32>
    %237 = arith.mulf %229, %236 : vector<16x128xf32>
    %238 = vector.extract_strided_slice %168 {offsets = [6, 0], sizes = [16, 128], strides = [1, 1]} : vector<26x128xf32> to vector<16x128xf32>
    %c64_i32_52 = arith.constant 64 : i32
    %239 = vector.broadcast %c64_i32_52 : i32 to vector<16x128xi32>
    %240 = arith.cmpi sge, %172, %239 : vector<16x128xi32>
    %c128_i32_53 = arith.constant 128 : i32
    %241 = vector.broadcast %c128_i32_53 : i32 to vector<16x128xi32>
    %242 = arith.cmpi slt, %172, %241 : vector<16x128xi32>
    %243 = arith.andi %240, %242 : vector<16x128xi1>
    %244 = arith.extui %243 : vector<16x128xi1> to vector<16x128xi32>
    %245 = arith.sitofp %244 : vector<16x128xi32> to vector<16x128xf32>
    %c3_i32_54 = arith.constant 3 : i32
    %246 = vector.broadcast %c3_i32_54 : i32 to vector<16x1xi32>
    %247 = arith.cmpi slt, %171, %246 : vector<16x1xi32>
    %248 = arith.extui %247 : vector<16x1xi1> to vector<16x1xi32>
    %249 = arith.sitofp %248 : vector<16x1xi32> to vector<16x1xf32>
    %250 = vector.broadcast %249 : vector<16x1xf32> to vector<16x128xf32>
    %251 = arith.mulf %245, %250 : vector<16x128xf32>
    %252 = arith.mulf %238, %251 : vector<16x128xf32>
    %253 = arith.addf %237, %252 : vector<16x128xf32>
    %254 = vector.extract_strided_slice %168 {offsets = [8, 0], sizes = [16, 128], strides = [1, 1]} : vector<26x128xf32> to vector<16x128xf32>
    %c0_i32_55 = arith.constant 0 : i32
    %255 = vector.broadcast %c0_i32_55 : i32 to vector<16x128xi32>
    %256 = arith.cmpi sge, %172, %255 : vector<16x128xi32>
    %c64_i32_56 = arith.constant 64 : i32
    %257 = vector.broadcast %c64_i32_56 : i32 to vector<16x128xi32>
    %258 = arith.cmpi slt, %172, %257 : vector<16x128xi32>
    %259 = arith.andi %256, %258 : vector<16x128xi1>
    %260 = arith.extui %259 : vector<16x128xi1> to vector<16x128xi32>
    %261 = arith.sitofp %260 : vector<16x128xi32> to vector<16x128xf32>
    %c1_i32_57 = arith.constant 1 : i32
    %262 = vector.broadcast %c1_i32_57 : i32 to vector<16x1xi32>
    %263 = arith.cmpi sge, %171, %262 : vector<16x1xi32>
    %264 = arith.extui %263 : vector<16x1xi1> to vector<16x1xi32>
    %265 = arith.sitofp %264 : vector<16x1xi32> to vector<16x1xf32>
    %266 = vector.broadcast %265 : vector<16x1xf32> to vector<16x128xf32>
    %267 = arith.mulf %261, %266 : vector<16x128xf32>
    %268 = arith.mulf %254, %267 : vector<16x128xf32>
    %269 = vector.extract_strided_slice %168 {offsets = [9, 0], sizes = [16, 128], strides = [1, 1]} : vector<26x128xf32> to vector<16x128xf32>
    %c64_i32_58 = arith.constant 64 : i32
    %270 = vector.broadcast %c64_i32_58 : i32 to vector<16x128xi32>
    %271 = arith.cmpi sge, %172, %270 : vector<16x128xi32>
    %c128_i32_59 = arith.constant 128 : i32
    %272 = vector.broadcast %c128_i32_59 : i32 to vector<16x128xi32>
    %273 = arith.cmpi slt, %172, %272 : vector<16x128xi32>
    %274 = arith.andi %271, %273 : vector<16x128xi1>
    %275 = arith.extui %274 : vector<16x128xi1> to vector<16x128xi32>
    %276 = arith.sitofp %275 : vector<16x128xi32> to vector<16x128xf32>
    %277 = arith.mulf %269, %276 : vector<16x128xf32>
    %278 = arith.addf %268, %277 : vector<16x128xf32>
    %279 = vector.extract_strided_slice %168 {offsets = [10, 0], sizes = [16, 128], strides = [1, 1]} : vector<26x128xf32> to vector<16x128xf32>
    %c0_i32_60 = arith.constant 0 : i32
    %280 = vector.broadcast %c0_i32_60 : i32 to vector<16x128xi32>
    %281 = arith.cmpi sge, %172, %280 : vector<16x128xi32>
    %c64_i32_61 = arith.constant 64 : i32
    %282 = vector.broadcast %c64_i32_61 : i32 to vector<16x128xi32>
    %283 = arith.cmpi slt, %172, %282 : vector<16x128xi32>
    %284 = arith.andi %281, %283 : vector<16x128xi1>
    %285 = arith.extui %284 : vector<16x128xi1> to vector<16x128xi32>
    %286 = arith.sitofp %285 : vector<16x128xi32> to vector<16x128xf32>
    %c3_i32_62 = arith.constant 3 : i32
    %287 = vector.broadcast %c3_i32_62 : i32 to vector<16x1xi32>
    %288 = arith.cmpi slt, %171, %287 : vector<16x1xi32>
    %289 = arith.extui %288 : vector<16x1xi1> to vector<16x1xi32>
    %290 = arith.sitofp %289 : vector<16x1xi32> to vector<16x1xf32>
    %291 = vector.broadcast %290 : vector<16x1xf32> to vector<16x128xf32>
    %292 = arith.mulf %286, %291 : vector<16x128xf32>
    %293 = arith.mulf %279, %292 : vector<16x128xf32>
    %294 = tpu.concatenate %197, %228, %253, %278, %293 in 1 : vector<16x128xf32>, vector<16x128xf32>, vector<16x128xf32>, vector<16x128xf32>, vector<16x128xf32> -> vector<16x640xf32>
    %295 = arith.truncf %294 : vector<16x640xf32> to vector<16x640xbf16>
    %c0_63 = arith.constant 0 : index
    %c0_64 = arith.constant 0 : index
    %296 = vector.load %arg8[%c0_63, %c0_64] : memref<640x128xbf16, #tpu.memory_space<vmem>>, vector<640x128xbf16>
    %cst_65 = arith.constant dense<0.000000e+00> : vector<16x128xf32>
    %297 = tpu.matmul %295, %296, %cst_65 {dimension_numbers = #tpu.dot_dimension_numbers<[1], [0], [0], [1], [0, 0, 1, 1], [], []>} : vector<16x640xbf16>, vector<640x128xbf16>, vector<16x128xf32> -> vector<16x128xf32>
    %c0_66 = arith.constant 0 : index
    %c0_67 = arith.constant 0 : index
    %298 = vector.load %arg9[%c0_66, %c0_67] : memref<1x128xf32, #tpu.memory_space<vmem>>, vector<1x128xf32>
    %299 = vector.broadcast %298 : vector<1x128xf32> to vector<16x128xf32>
    %300 = arith.addf %297, %299 : vector<16x128xf32>
    %cst_68 = arith.constant 0.000000e+00 : f32
    %301 = vector.broadcast %cst_68 : f32 to vector<16x128xf32>
    %302 = arith.maximumf %300, %301 : vector<16x128xf32>
    %303 = vector.extract_strided_slice %302 {offsets = [0, 0], sizes = [11, 128], strides = [1, 1]} : vector<16x128xf32> to vector<11x128xf32>
    %304 = vector.extract_strided_slice %302 {offsets = [1, 0], sizes = [11, 128], strides = [1, 1]} : vector<16x128xf32> to vector<11x128xf32>
    %305 = arith.maximumf %303, %304 : vector<11x128xf32>
    %306 = vector.extract_strided_slice %302 {offsets = [4, 0], sizes = [11, 128], strides = [1, 1]} : vector<16x128xf32> to vector<11x128xf32>
    %307 = vector.extract_strided_slice %302 {offsets = [5, 0], sizes = [11, 128], strides = [1, 1]} : vector<16x128xf32> to vector<11x128xf32>
    %308 = arith.maximumf %306, %307 : vector<11x128xf32>
    %309 = arith.maximumf %305, %308 : vector<11x128xf32>
    %c0_69 = arith.constant 0 : index
    %c0_70 = arith.constant 0 : index
    %310 = vector.load %arg10[%c0_69, %c0_70] : memref<2x11xbf16, #tpu.memory_space<vmem>>, vector<2x11xbf16>
    %311 = arith.extf %310 : vector<2x11xbf16> to vector<2x11xf32>
    %cst_71 = arith.constant dense<0.000000e+00> : vector<2x128xf32>
    %312 = tpu.matmul %311, %309, %cst_71 {dimension_numbers = #tpu.dot_dimension_numbers<[1], [0], [0], [1], [0, 0, 1, 1], [], []>} : vector<2x11xf32>, vector<11x128xf32>, vector<2x128xf32> -> vector<2x128xf32>
    %cst_72 = arith.constant 0.000000e+00 : f32
    %313 = vector.broadcast %cst_72 : f32 to vector<1x128xf32>
    %314 = tpu.concatenate %313, %312, %313 in 0 : vector<1x128xf32>, vector<2x128xf32>, vector<1x128xf32> -> vector<4x128xf32>
    %315 = tpu.iota {dimensions = array<i32: 1>} : vector<2x128xi32>
    %c64_i32_73 = arith.constant 64 : i32
    %316 = vector.broadcast %c64_i32_73 : i32 to vector<2x128xi32>
    %317 = arith.cmpi slt, %315, %316 : vector<2x128xi32>
    %318 = arith.extui %317 : vector<2x128xi1> to vector<2x128xi32>
    %319 = arith.sitofp %318 : vector<2x128xi32> to vector<2x128xf32>
    %320 = vector.extract_strided_slice %314 {offsets = [0, 0], sizes = [2, 128], strides = [1, 1]} : vector<4x128xf32> to vector<2x128xf32>
    %321 = arith.mulf %320, %319 : vector<2x128xf32>
    %322 = vector.extract_strided_slice %314 {offsets = [1, 0], sizes = [2, 128], strides = [1, 1]} : vector<4x128xf32> to vector<2x128xf32>
    %cst_74 = arith.constant 1.000000e+00 : f32
    %323 = vector.broadcast %cst_74 : f32 to vector<2x128xf32>
    %324 = arith.subf %323, %319 : vector<2x128xf32>
    %325 = arith.mulf %322, %324 : vector<2x128xf32>
    %326 = arith.addf %321, %325 : vector<2x128xf32>
    %327 = vector.extract_strided_slice %314 {offsets = [2, 0], sizes = [2, 128], strides = [1, 1]} : vector<4x128xf32> to vector<2x128xf32>
    %328 = tpu.concatenate %326, %327 in 1 : vector<2x128xf32>, vector<2x128xf32> -> vector<2x256xf32>
    %329 = arith.truncf %328 : vector<2x256xf32> to vector<2x256xbf16>
    %c0_75 = arith.constant 0 : index
    %c0_76 = arith.constant 0 : index
    %330 = vector.load %arg11[%c0_75, %c0_76] : memref<256x128xbf16, #tpu.memory_space<vmem>>, vector<256x128xbf16>
    %cst_77 = arith.constant dense<0.000000e+00> : vector<2x128xf32>
    %331 = tpu.matmul %329, %330, %cst_77 {dimension_numbers = #tpu.dot_dimension_numbers<[1], [0], [0], [1], [0, 0, 1, 1], [], []>} : vector<2x256xbf16>, vector<256x128xbf16>, vector<2x128xf32> -> vector<2x128xf32>
    %c0_78 = arith.constant 0 : index
    %c0_79 = arith.constant 0 : index
    %332 = vector.load %arg12[%c0_78, %c0_79] : memref<1x128xf32, #tpu.memory_space<vmem>>, vector<1x128xf32>
    %333 = vector.broadcast %332 : vector<1x128xf32> to vector<2x128xf32>
    %334 = arith.addf %331, %333 : vector<2x128xf32>
    %cst_80 = arith.constant 0.000000e+00 : f32
    %335 = vector.broadcast %cst_80 : f32 to vector<2x128xf32>
    %336 = arith.maximumf %334, %335 : vector<2x128xf32>
    %cst_81 = arith.constant dense<0.000000e+00> : vector<128xf32>
    %337 = vector.multi_reduction <add>, %336, %cst_81 [0] : vector<2x128xf32> to vector<128xf32>
    %338 = vector.shape_cast %337 : vector<128xf32> to vector<1x128xf32>
    %cst_82 = arith.constant 5.000000e-01 : f32
    %339 = vector.broadcast %cst_82 : f32 to vector<1x128xf32>
    %340 = arith.mulf %338, %339 : vector<1x128xf32>
    %341 = arith.truncf %340 : vector<1x128xf32> to vector<1x128xbf16>
    %c0_83 = arith.constant 0 : index
    %c0_84 = arith.constant 0 : index
    %342 = vector.load %arg13[%c0_83, %c0_84] : memref<128x128xbf16, #tpu.memory_space<vmem>>, vector<128x128xbf16>
    %cst_85 = arith.constant dense<0.000000e+00> : vector<1x128xf32>
    %343 = tpu.matmul %341, %342, %cst_85 {dimension_numbers = #tpu.dot_dimension_numbers<[1], [0], [0], [1], [0, 0, 1, 1], [], []>} : vector<1x128xbf16>, vector<128x128xbf16>, vector<1x128xf32> -> vector<1x128xf32>
    %c0_86 = arith.constant 0 : index
    %c0_87 = arith.constant 0 : index
    %344 = vector.load %arg14[%c0_86, %c0_87] : memref<1x128xf32, #tpu.memory_space<vmem>>, vector<1x128xf32>
    %345 = arith.addf %343, %344 : vector<1x128xf32>
    %c0_88 = arith.constant 0 : index
    %c0_89 = arith.constant 0 : index
    %c0_90 = arith.constant 0 : index
    %346 = vector.load %arg15[%c0_88, %c0_89, %c0_90] : memref<1x1x128xf32, #tpu.memory_space<vmem>>, vector<1x1x128xf32>
    %347 = vector.shape_cast %346 : vector<1x1x128xf32> to vector<1x128xf32>
    %348 = vector.shape_cast %345 : vector<1x128xf32> to vector<1x1x128xf32>
    tpu.vector_store %arg15[%c0_88, %c0_89, %c0_90], %348 {strides = array<i32>} : memref<1x1x128xf32, #tpu.memory_space<vmem>>, vector<1x1x128xf32>,
    return
  }
  func.func @transform_0(%arg0: i32) -> (i32, i32, i32) {
    %c0_i32 = arith.constant 0 : i32
    %c0_i32_0 = arith.constant 0 : i32
    %c0_i32_1 = arith.constant 0 : i32
    return %arg0, %c0_i32, %c0_i32_0 : i32, i32, i32
  }
  func.func @transform_1(%arg0: i32) -> (i32, i32) {
    %c0_i32 = arith.constant 0 : i32
    %c0_i32_0 = arith.constant 0 : i32
    %c0_i32_1 = arith.constant 0 : i32
    return %c0_i32, %c0_i32_0 : i32, i32
  }
  func.func @transform_2(%arg0: i32) -> (i32, i32) {
    %c0_i32 = arith.constant 0 : i32
    %c0_i32_0 = arith.constant 0 : i32
    %c0_i32_1 = arith.constant 0 : i32
    return %c0_i32, %c0_i32_0 : i32, i32
  }
  func.func @transform_3(%arg0: i32) -> (i32, i32) {
    %c0_i32 = arith.constant 0 : i32
    %c0_i32_0 = arith.constant 0 : i32
    %c0_i32_1 = arith.constant 0 : i32
    return %c0_i32, %c0_i32_0 : i32, i32
  }
  func.func @transform_4(%arg0: i32) -> (i32, i32) {
    %c0_i32 = arith.constant 0 : i32
    %c0_i32_0 = arith.constant 0 : i32
    %c0_i32_1 = arith.constant 0 : i32
    return %c0_i32, %c0_i32_0 : i32, i32
  }
  func.func @transform_5(%arg0: i32) -> (i32, i32) {
    %c0_i32 = arith.constant 0 : i32
    %c0_i32_0 = arith.constant 0 : i32
    %c0_i32_1 = arith.constant 0 : i32
    return %c0_i32, %c0_i32_0 : i32, i32
  }
  func.func @transform_6(%arg0: i32) -> (i32, i32) {
    %c0_i32 = arith.constant 0 : i32
    %c0_i32_0 = arith.constant 0 : i32
    %c0_i32_1 = arith.constant 0 : i32
    return %c0_i32, %c0_i32_0 : i32, i32
  }
  func.func @transform_7(%arg0: i32) -> (i32, i32) {
    %c0_i32 = arith.constant 0 : i32
    %c0_i32_0 = arith.constant 0 : i32
    %c0_i32_1 = arith.constant 0 : i32
    return %c0_i32, %c0_i32_0 : i32, i32
  }
  func.func @transform_8(%arg0: i32) -> (i32, i32) {
    %c0_i32 = arith.constant 0 : i32
    %c0_i32_0 = arith.constant 0 : i32
    %c0_i32_1 = arith.constant 0 : i32
    return %c0_i32, %c0_i32_0 : i32, i32
  }
  func.func @transform_9(%arg0: i32) -> (i32, i32) {
    %c0_i32 = arith.constant 0 : i32
    %c0_i32_0 = arith.constant 0 : i32
    %c0_i32_1 = arith.constant 0 : i32
    return %c0_i32, %c0_i32_0 : i32, i32
  }
  func.func @transform_10(%arg0: i32) -> (i32, i32) {
    %c0_i32 = arith.constant 0 : i32
    %c0_i32_0 = arith.constant 0 : i32
    %c0_i32_1 = arith.constant 0 : i32
    return %c0_i32, %c0_i32_0 : i32, i32
  }
  func.func @transform_11(%arg0: i32) -> (i32, i32) {
    %c0_i32 = arith.constant 0 : i32
    %c0_i32_0 = arith.constant 0 : i32
    %c0_i32_1 = arith.constant 0 : i32
    return %c0_i32, %c0_i32_0 : i32, i32
  }
  func.func @transform_12(%arg0: i32) -> (i32, i32) {
    %c0_i32 = arith.constant 0 : i32
    %c0_i32_0 = arith.constant 0 : i32
    %c0_i32_1 = arith.constant 0 : i32
    return %c0_i32, %c0_i32_0 : i32, i32
  }
  func.func @transform_13(%arg0: i32) -> (i32, i32) {
    %c0_i32 = arith.constant 0 : i32
    %c0_i32_0 = arith.constant 0 : i32
    %c0_i32_1 = arith.constant 0 : i32
    return %c0_i32, %c0_i32_0 : i32, i32
  }
  func.func @transform_14(%arg0: i32) -> (i32, i32, i32) {
    %c0_i32 = arith.constant 0 : i32
    %c0_i32_0 = arith.constant 0 : i32
    %c0_i32_1 = arith.constant 0 : i32
    return %arg0, %c0_i32, %c0_i32_0 : i32, i32, i32
  }
}

</mosaic_0001>

<llo_original>
// kernel: mridangam_forward.1
$region0: #{mridangam_forward.1}
  #allocation0 [shape = 'u32[]', space=smem, size = 0x4, offset = 0x4, fixed_abs, tag = 'smem constant byte address 0x4 - core index']
  #allocation1 [shape = 'u32[144,128]{1,0:T(1,128)}', space=vmem, size = 0x12000, scoped, tag = 'internal scratch']
  %s0 = inlined_call_operand.vmem [shape: bf16[2,256,16], index: 0, kind: input, shape index: {}]
  %s1 = inlined_call_operand.vmem [shape: bf16[16,128], index: 1, kind: input, shape index: {}]
  %s2 = inlined_call_operand.vmem [shape: f32[1,128], index: 2, kind: input, shape index: {}]
  %s3 = inlined_call_operand.vmem [shape: bf16[64,239], index: 3, kind: input, shape index: {}]
  %s4 = inlined_call_operand.vmem [shape: bf16[384,128], index: 4, kind: input, shape index: {}]
  %s5 = inlined_call_operand.vmem [shape: f32[1,128], index: 5, kind: input, shape index: {}]
  %s6 = inlined_call_operand.vmem [shape: bf16[16,55], index: 6, kind: input, shape index: {}]
  %s7 = inlined_call_operand.vmem [shape: bf16[640,128], index: 7, kind: input, shape index: {}]
  %s8 = inlined_call_operand.vmem [shape: f32[1,128], index: 8, kind: input, shape index: {}]
  %s9 = inlined_call_operand.vmem [shape: bf16[2,11], index: 9, kind: input, shape index: {}]
  %s10 = inlined_call_operand.vmem [shape: bf16[256,128], index: 10, kind: input, shape index: {}]
  %s11 = inlined_call_operand.vmem [shape: f32[1,128], index: 11, kind: input, shape index: {}]
  %s12 = inlined_call_operand.vmem [shape: bf16[128,128], index: 12, kind: input, shape index: {}]
  %s13 = inlined_call_operand.vmem [shape: f32[1,128], index: 13, kind: input, shape index: {}]
  %s14 = inlined_call_operand.hbm [shape: f32[2,1,128], index: 14, kind: output, shape index: {}]
  %s15 = sld [smem:[#allocation0]]
  $region89: #{mridangam_forward.1} parent=0
    _
  %s17 = ssub.s32 1, %s15
  %s18 = scalar_select 0, %s17, %s15
  $region1: #{mridangam_forward.1} parent=0
    #allocation2 [shape = 'u8[1024]{0}', space=vmem, size = 0x400, scoped, tag = 'output window, operand 0']
    #allocation3 [shape = 's32[2]{0}', space=sflag, size = 0x8, scoped, tag = 'scoped memory for mridangam_forward.1']
    %19 = vsyncpa [#allocation3], 0
    %s20 = scalar_lea.sflag [#allocation3], 1
    %21 = vsyncpa %s20, 0
    loop: start=0, step=1, limit=4
    $region2: #{mridangam_forward.1} parent=1 // loop_pre_header
      _
    $region3: #{mridangam_forward.1} parent=1 // loop_header
      %s23 = sphi 0, %s27
      %p24 = scmp.ge.s32.totalorder %s23, 4
      %s33 = sphi 0, %s35
      %s36 = sphi 0, %s33
      %s37 = sphi 0, %s36
      %s53 = sphi 0, %s37
      %s57 = sphi 0, %s57
      %s59 = sphi 0, %s57
      %s60 = sphi 0, %s59
      %s74 = sphi 0, %s60
      %s78 = sphi 0, %s78
      %s80 = sphi 0, %s78
      %s81 = sphi 0, %s80
      %s95 = sphi 0, %s81
      %s99 = sphi 0, %s99
      %s101 = sphi 0, %s99
      %s102 = sphi 0, %s101
      %s116 = sphi 0, %s102
      %s120 = sphi 0, %s120
      %s122 = sphi 0, %s120
      %s123 = sphi 0, %s122
      %s137 = sphi 0, %s123
      %s141 = sphi 0, %s141
      %s143 = sphi 0, %s141
      %s144 = sphi 0, %s143
      %s158 = sphi 0, %s144
      %s162 = sphi 0, %s162
      %s164 = sphi 0, %s162
      %s165 = sphi 0, %s164
      %s179 = sphi 0, %s165
      %s183 = sphi 0, %s183
      %s185 = sphi 0, %s183
      %s186 = sphi 0, %s185
      %s200 = sphi 0, %s186
      %s204 = sphi 0, %s204
      %s206 = sphi 0, %s204
      %s207 = sphi 0, %s206
      %s221 = sphi 0, %s207
      %s225 = sphi 0, %s225
      %s227 = sphi 0, %s225
      %s228 = sphi 0, %s227
      %s242 = sphi 0, %s228
      %s246 = sphi 0, %s246
      %s248 = sphi 0, %s246
      %s249 = sphi 0, %s248
      %s263 = sphi 0, %s249
      %s267 = sphi 0, %s267
      %s269 = sphi 0, %s267
      %s270 = sphi 0, %s269
      %s284 = sphi 0, %s270
      %s288 = sphi 0, %s288
      %s290 = sphi 0, %s288
      %s291 = sphi 0, %s290
      %s305 = sphi 0, %s291
      %s309 = sphi 0, %s309
      %s311 = sphi 0, %s309
      %s312 = sphi 0, %s311
      %s326 = sphi 0, %s312
      %s332 = sphi 0, %s334
      %s335 = sphi 0, %s332
      %s336 = sphi 0, %s335
      %s352 = sphi 0, %s336
    $region4: #{mridangam_forward.1} parent=1 // loop_header_branch
      %26 = sbr.rel (%p24) target = $region8
    $region5: #{mridangam_forward.1} parent=1 // loop_body
      %s28 = ssub.s32 %s23, 1
      %s29 = ssub.s32 %s23, 2
      %s30 = sadd.s32 %s23, 1
      %s31 = ssub.s32 %s23, %s30
      %p32 = scmp.eq.s32.totalorder %s31, 0
      %s34 = sadd.s32 %s33, 1
      %s35 = scalar_select %p32, %s33, %s34
      %p38 = pneg %p32
      %p39 = scmp.eq.s32.totalorder %s23, 1
      %p40 = por %p38, %p39
      %p41 = scmp.ne.s32.totalorder %s33, %s36
      %p42 = scmp.eq.s32.totalorder %s23, 0
      %p43 = por %p41, %p42
      %p44 = scmp.ne.s32.totalorder %s33, %s36
      %p45 = scmp.eq.s32.totalorder %s28, 1
      %p46 = por %p44, %p45
      %p47 = scmp.ne.s32.totalorder %s36, %s37
      %p48 = scmp.eq.s32.totalorder %s28, 0
      %p49 = por %p47, %p48
      %p50 = scmp.ne.s32.totalorder %s36, %s37
      %p51 = scmp.eq.s32.totalorder %s29, 1
      %p52 = por %p50, %p51
      %p54 = scmp.ne.s32.totalorder %s37, %s53
      %p55 = scmp.eq.s32.totalorder %s29, 0
      %p56 = por %p54, %p55
      %s58 = sadd.s32 %s57, 1
      %p61 = scmp.eq.s32.totalorder %s23, 1
      %p62 = scmp.ne.s32.totalorder %s57, %s59
      %p63 = scmp.eq.s32.totalorder %s23, 0
      %p64 = por %p62, %p63
      %p65 = scmp.ne.s32.totalorder %s57, %s59
      %p66 = scmp.eq.s32.totalorder %s28, 1
      %p67 = por %p65, %p66
      %p68 = scmp.ne.s32.totalorder %s59, %s60
      %p69 = scmp.eq.s32.totalorder %s28, 0
      %p70 = por %p68, %p69
      %p71 = scmp.ne.s32.totalorder %s59, %s60
      %p72 = scmp.eq.s32.totalorder %s29, 1
      %p73 = por %p71, %p72
      %p75 = scmp.ne.s32.totalorder %s60, %s74
      %p76 = scmp.eq.s32.totalorder %s29, 0
      %p77 = por %p75, %p76
      %s79 = sadd.s32 %s78, 1
      %p82 = scmp.eq.s32.totalorder %s23, 1
      %p83 = scmp.ne.s32.totalorder %s78, %s80
      %p84 = scmp.eq.s32.totalorder %s23, 0
      %p85 = por %p83, %p84
      %p86 = scmp.ne.s32.totalorder %s78, %s80
      %p87 = scmp.eq.s32.totalorder %s28, 1
      %p88 = por %p86, %p87
      %p89 = scmp.ne.s32.totalorder %s80, %s81
      %p90 = scmp.eq.s32.totalorder %s28, 0
      %p91 = por %p89, %p90
      %p92 = scmp.ne.s32.totalorder %s80, %s81
      %p93 = scmp.eq.s32.totalorder %s29, 1
      %p94 = por %p92, %p93
      %p96 = scmp.ne.s32.totalorder %s81, %s95
      %p97 = scmp.eq.s32.totalorder %s29, 0
      %p98 = por %p96, %p97
      %s100 = sadd.s32 %s99, 1
      %p103 = scmp.eq.s32.totalorder %s23, 1
      %p104 = scmp.ne.s32.totalorder %s99, %s101
      %p105 = scmp.eq.s32.totalorder %s23, 0
      %p106 = por %p104, %p105
      %p107 = scmp.ne.s32.totalorder %s99, %s101
      %p108 = scmp.eq.s32.totalorder %s28, 1
      %p109 = por %p107, %p108
      %p110 = scmp.ne.s32.totalorder %s101, %s102
      %p111 = scmp.eq.s32.totalorder %s28, 0
      %p112 = por %p110, %p111
      %p113 = scmp.ne.s32.totalorder %s101, %s102
      %p114 = scmp.eq.s32.totalorder %s29, 1
      %p115 = por %p113, %p114
      %p117 = scmp.ne.s32.totalorder %s102, %s116
      %p118 = scmp.eq.s32.totalorder %s29, 0
      %p119 = por %p117, %p118
      %s121 = sadd.s32 %s120, 1
      %p124 = scmp.eq.s32.totalorder %s23, 1
      %p125 = scmp.ne.s32.totalorder %s120, %s122
      %p126 = scmp.eq.s32.totalorder %s23, 0
      %p127 = por %p125, %p126
      %p128 = scmp.ne.s32.totalorder %s120, %s122
      %p129 = scmp.eq.s32.totalorder %s28, 1
      %p130 = por %p128, %p129
      %p131 = scmp.ne.s32.totalorder %s122, %s123
      %p132 = scmp.eq.s32.totalorder %s28, 0
      %p133 = por %p131, %p132
      %p134 = scmp.ne.s32.totalorder %s122, %s123
      %p135 = scmp.eq.s32.totalorder %s29, 1
      %p136 = por %p134, %p135
      %p138 = scmp.ne.s32.totalorder %s123, %s137
      %p139 = scmp.eq.s32.totalorder %s29, 0
      %p140 = por %p138, %p139
      %s142 = sadd.s32 %s141, 1
      %p145 = scmp.eq.s32.totalorder %s23, 1
      %p146 = scmp.ne.s32.totalorder %s141, %s143
      %p147 = scmp.eq.s32.totalorder %s23, 0
      %p148 = por %p146, %p147
      %p149 = scmp.ne.s32.totalorder %s141, %s143
      %p150 = scmp.eq.s32.totalorder %s28, 1
      %p151 = por %p149, %p150
      %p152 = scmp.ne.s32.totalorder %s143, %s144
      %p153 = scmp.eq.s32.totalorder %s28, 0
      %p154 = por %p152, %p153
      %p155 = scmp.ne.s32.totalorder %s143, %s144
      %p156 = scmp.eq.s32.totalorder %s29, 1
      %p157 = por %p155, %p156
      %p159 = scmp.ne.s32.totalorder %s144, %s158
      %p160 = scmp.eq.s32.totalorder %s29, 0
      %p161 = por %p159, %p160
      %s163 = sadd.s32 %s162, 1
      %p166 = scmp.eq.s32.totalorder %s23, 1
      %p167 = scmp.ne.s32.totalorder %s162, %s164
      %p168 = scmp.eq.s32.totalorder %s23, 0
      %p169 = por %p167, %p168
      %p170 = scmp.ne.s32.totalorder %s162, %s164
      %p171 = scmp.eq.s32.totalorder %s28, 1
      %p172 = por %p170, %p171
      %p173 = scmp.ne.s32.totalorder %s164, %s165
      %p174 = scmp.eq.s32.totalorder %s28, 0
      %p175 = por %p173, %p174
      %p176 = scmp.ne.s32.totalorder %s164, %s165
      %p177 = scmp.eq.s32.totalorder %s29, 1
      %p178 = por %p176, %p177
      %p180 = scmp.ne.s32.totalorder %s165, %s179
      %p181 = scmp.eq.s32.totalorder %s29, 0
      %p182 = por %p180, %p181
      %s184 = sadd.s32 %s183, 1
      %p187 = scmp.eq.s32.totalorder %s23, 1
      %p188 = scmp.ne.s32.totalorder %s183, %s185
      %p189 = scmp.eq.s32.totalorder %s23, 0
      %p190 = por %p188, %p189
      %p191 = scmp.ne.s32.totalorder %s183, %s185
      %p192 = scmp.eq.s32.totalorder %s28, 1
      %p193 = por %p191, %p192
      %p194 = scmp.ne.s32.totalorder %s185, %s186
      %p195 = scmp.eq.s32.totalorder %s28, 0
      %p196 = por %p194, %p195
      %p197 = scmp.ne.s32.totalorder %s185, %s186
      %p198 = scmp.eq.s32.totalorder %s29, 1
      %p199 = por %p197, %p198
      %p201 = scmp.ne.s32.totalorder %s186, %s200
      %p202 = scmp.eq.s32.totalorder %s29, 0
      %p203 = por %p201, %p202
      %s205 = sadd.s32 %s204, 1
      %p208 = scmp.eq.s32.totalorder %s23, 1
      %p209 = scmp.ne.s32.totalorder %s204, %s206
      %p210 = scmp.eq.s32.totalorder %s23, 0
      %p211 = por %p209, %p210
      %p212 = scmp.ne.s32.totalorder %s204, %s206
      %p213 = scmp.eq.s32.totalorder %s28, 1
      %p214 = por %p212, %p213
      %p215 = scmp.ne.s32.totalorder %s206, %s207
      %p216 = scmp.eq.s32.totalorder %s28, 0
      %p217 = por %p215, %p216
      %p218 = scmp.ne.s32.totalorder %s206, %s207
      %p219 = scmp.eq.s32.totalorder %s29, 1
      %p220 = por %p218, %p219
      %p222 = scmp.ne.s32.totalorder %s207, %s221
      %p223 = scmp.eq.s32.totalorder %s29, 0
      %p224 = por %p222, %p223
      %s226 = sadd.s32 %s225, 1
      %p229 = scmp.eq.s32.totalorder %s23, 1
      %p230 = scmp.ne.s32.totalorder %s225, %s227
      %p231 = scmp.eq.s32.totalorder %s23, 0
      %p232 = por %p230, %p231
      %p233 = scmp.ne.s32.totalorder %s225, %s227
      %p234 = scmp.eq.s32.totalorder %s28, 1
      %p235 = por %p233, %p234
      %p236 = scmp.ne.s32.totalorder %s227, %s228
      %p237 = scmp.eq.s32.totalorder %s28, 0
      %p238 = por %p236, %p237
      %p239 = scmp.ne.s32.totalorder %s227, %s228
      %p240 = scmp.eq.s32.totalorder %s29, 1
      %p241 = por %p239, %p240
      %p243 = scmp.ne.s32.totalorder %s228, %s242
      %p244 = scmp.eq.s32.totalorder %s29, 0
      %p245 = por %p243, %p244
      %s247 = sadd.s32 %s246, 1
      %p250 = scmp.eq.s32.totalorder %s23, 1
      %p251 = scmp.ne.s32.totalorder %s246, %s248
      %p252 = scmp.eq.s32.totalorder %s23, 0
      %p253 = por %p251, %p252
      %p254 = scmp.ne.s32.totalorder %s246, %s248
      %p255 = scmp.eq.s32.totalorder %s28, 1
      %p256 = por %p254, %p255
      %p257 = scmp.ne.s32.totalorder %s248, %s249
      %p258 = scmp.eq.s32.totalorder %s28, 0
      %p259 = por %p257, %p258
      %p260 = scmp.ne.s32.totalorder %s248, %s249
      %p261 = scmp.eq.s32.totalorder %s29, 1
      %p262 = por %p260, %p261
      %p264 = scmp.ne.s32.totalorder %s249, %s263
      %p265 = scmp.eq.s32.totalorder %s29, 0
      %p266 = por %p264, %p265
      %s268 = sadd.s32 %s267, 1
      %p271 = scmp.eq.s32.totalorder %s23, 1
      %p272 = scmp.ne.s32.totalorder %s267, %s269
      %p273 = scmp.eq.s32.totalorder %s23, 0
      %p274 = por %p272, %p273
      %p275 = scmp.ne.s32.totalorder %s267, %s269
      %p276 = scmp.eq.s32.totalorder %s28, 1
      %p277 = por %p275, %p276
      %p278 = scmp.ne.s32.totalorder %s269, %s270
      %p279 = scmp.eq.s32.totalorder %s28, 0
      %p280 = por %p278, %p279
      %p281 = scmp.ne.s32.totalorder %s269, %s270
      %p282 = scmp.eq.s32.totalorder %s29, 1
      %p283 = por %p281, %p282
      %p285 = scmp.ne.s32.totalorder %s270, %s284
      %p286 = scmp.eq.s32.totalorder %s29, 0
      %p287 = por %p285, %p286
      %s289 = sadd.s32 %s288, 1
      %p292 = scmp.eq.s32.totalorder %s23, 1
      %p293 = scmp.ne.s32.totalorder %s288, %s290
      %p294 = scmp.eq.s32.totalorder %s23, 0
      %p295 = por %p293, %p294
      %p296 = scmp.ne.s32.totalorder %s288, %s290
      %p297 = scmp.eq.s32.totalorder %s28, 1
      %p298 = por %p296, %p297
      %p299 = scmp.ne.s32.totalorder %s290, %s291
      %p300 = scmp.eq.s32.totalorder %s28, 0
      %p301 = por %p299, %p300
      %p302 = scmp.ne.s32.totalorder %s290, %s291
      %p303 = scmp.eq.s32.totalorder %s29, 1
      %p304 = por %p302, %p303
      %p306 = scmp.ne.s32.totalorder %s291, %s305
      %p307 = scmp.eq.s32.totalorder %s29, 0
      %p308 = por %p306, %p307
      %s310 = sadd.s32 %s309, 1
      %p313 = scmp.eq.s32.totalorder %s23, 1
      %p314 = scmp.ne.s32.totalorder %s309, %s311
      %p315 = scmp.eq.s32.totalorder %s23, 0
      %p316 = por %p314, %p315
      %p317 = scmp.ne.s32.totalorder %s309, %s311
      %p318 = scmp.eq.s32.totalorder %s28, 1
      %p319 = por %p317, %p318
      %p320 = scmp.ne.s32.totalorder %s311, %s312
      %p321 = scmp.eq.s32.totalorder %s28, 0
      %p322 = por %p320, %p321
      %p323 = scmp.ne.s32.totalorder %s311, %s312
      %p324 = scmp.eq.s32.totalorder %s29, 1
      %p325 = por %p323, %p324
      %p327 = scmp.ne.s32.totalorder %s312, %s326
      %p328 = scmp.eq.s32.totalorder %s29, 0
      %p329 = por %p327, %p328
      %s330 = ssub.s32 %s23, %s30
      %p331 = scmp.eq.s32.totalorder %s330, 0
      %s333 = sadd.s32 %s332, 1
      %s334 = scalar_select %p331, %s332, %s333
      %p337 = pneg %p331
      %p338 = scmp.eq.s32.totalorder %s23, 1
      %p339 = por %p337, %p338
      %p340 = scmp.ne.s32.totalorder %s332, %s335
      %p341 = scmp.eq.s32.totalorder %s23, 0
      %p342 = por %p340, %p341
      %p343 = scmp.ne.s32.totalorder %s332, %s335
      %p344 = scmp.eq.s32.totalorder %s28, 1
      %p345 = por %p343, %p344
      %p346 = scmp.ne.s32.totalorder %s335, %s336
      %p347 = scmp.eq.s32.totalorder %s28, 0
      %p348 = por %p346, %p347
      %p349 = scmp.ne.s32.totalorder %s335, %s336
      %p350 = scmp.eq.s32.totalorder %s29, 1
      %p351 = por %p349, %p350
      %p353 = scmp.ne.s32.totalorder %s336, %s352
      %p354 = scmp.eq.s32.totalorder %s29, 0
      %p355 = por %p353, %p354
      %p356 = scmp.le.s32.totalorder 1, %s23
      %p357 = scmp.lt.s32.totalorder %s23, 3
      %p358 = pnand %p356, %p357
      %p359 = pneg %p358
      // Predicated region
      $region9: #{mridangam_forward.1} parent=5 // pred_check
        _
      $region10: #{mridangam_forward.1} parent=5 // pred_check_branch
        %361 = sbr.rel (%p358) target = $region12
      $region11: #{mridangam_forward.1} parent=5 // pred_region
        %s362 = ssub.s32 %s23, 1
        // Predicated region
        $region13: #{mridangam_forward.1} parent=11 // pred_check
          %p363 = pneg %p70
        $region14: #{mridangam_forward.1} parent=11 // pred_check_branch
          %365 = sbr.rel (%p363) target = $region16
        $region15: #{mridangam_forward.1} parent=11 // pred_region
          _
        $region16: #{mridangam_forward.1} parent=11 // pred_fallthru
          _
        // Predicated region
        $region17: #{mridangam_forward.1} parent=11 // pred_check
          %p366 = pneg %p91
        $region18: #{mridangam_forward.1} parent=11 // pred_check_branch
          %368 = sbr.rel (%p366) target = $region20
        $region19: #{mridangam_forward.1} parent=11 // pred_region
          _
        $region20: #{mridangam_forward.1} parent=11 // pred_fallthru
          _
        // Predicated region
        $region21: #{mridangam_forward.1} parent=11 // pred_check
          %p369 = pneg %p112
        $region22: #{mridangam_forward.1} parent=11 // pred_check_branch
          %371 = sbr.rel (%p369) target = $region24
        $region23: #{mridangam_forward.1} parent=11 // pred_region
          _
        $region24: #{mridangam_forward.1} parent=11 // pred_fallthru
          _
        // Predicated region
        $region25: #{mridangam_forward.1} parent=11 // pred_check
          %p372 = pneg %p133
        $region26: #{mridangam_forward.1} parent=11 // pred_check_branch
          %374 = sbr.rel (%p372) target = $region28
        $region27: #{mridangam_forward.1} parent=11 // pred_region
          _
        $region28: #{mridangam_forward.1} parent=11 // pred_fallthru
          _
        // Predicated region
        $region29: #{mridangam_forward.1} parent=11 // pred_check
          %p375 = pneg %p154
        $region30: #{mridangam_forward.1} parent=11 // pred_check_branch
          %377 = sbr.rel (%p375) target = $region32
        $region31: #{mridangam_forward.1} parent=11 // pred_region
          _
        $region32: #{mridangam_forward.1} parent=11 // pred_fallthru
          _
        // Predicated region
        $region33: #{mridangam_forward.1} parent=11 // pred_check
          %p378 = pneg %p175
        $region34: #{mridangam_forward.1} parent=11 // pred_check_branch
          %380 = sbr.rel (%p378) target = $region36
        $region35: #{mridangam_forward.1} parent=11 // pred_region
          _
        $region36: #{mridangam_forward.1} parent=11 // pred_fallthru
          _
        // Predicated region
        $region37: #{mridangam_forward.1} parent=11 // pred_check
          %p381 = pneg %p196
        $region38: #{mridangam_forward.1} parent=11 // pred_check_branch
          %383 = sbr.rel (%p381) target = $region40
        $region39: #{mridangam_forward.1} parent=11 // pred_region
          _
        $region40: #{mridangam_forward.1} parent=11 // pred_fallthru
          _
        // Predicated region
        $region41: #{mridangam_forward.1} parent=11 // pred_check
          %p384 = pneg %p217
        $region42: #{mridangam_forward.1} parent=11 // pred_check_branch
          %386 = sbr.rel (%p384) target = $region44
        $region43: #{mridangam_forward.1} parent=11 // pred_region
          _
        $region44: #{mridangam_forward.1} parent=11 // pred_fallthru
          _
        // Predicated region
        $region45: #{mridangam_forward.1} parent=11 // pred_check
          %p387 = pneg %p238
        $region46: #{mridangam_forward.1} parent=11 // pred_check_branch
          %389 = sbr.rel (%p387) target = $region48
        $region47: #{mridangam_forward.1} parent=11 // pred_region
          _
        $region48: #{mridangam_forward.1} parent=11 // pred_fallthru
          _
        // Predicated region
        $region49: #{mridangam_forward.1} parent=11 // pred_check
          %p390 = pneg %p259
        $region50: #{mridangam_forward.1} parent=11 // pred_check_branch
          %392 = sbr.rel (%p390) target = $region52
        $region51: #{mridangam_forward.1} parent=11 // pred_region
          _
        $region52: #{mridangam_forward.1} parent=11 // pred_fallthru
          _
        // Predicated region
        $region53: #{mridangam_forward.1} parent=11 // pred_check
          %p393 = pneg %p280
        $region54: #{mridangam_forward.1} parent=11 // pred_check_branch
          %395 = sbr.rel (%p393) target = $region56
        $region55: #{mridangam_forward.1} parent=11 // pred_region
          _
        $region56: #{mridangam_forward.1} parent=11 // pred_fallthru
          _
        // Predicated region
        $region57: #{mridangam_forward.1} parent=11 // pred_check
          %p396 = pneg %p301
        $region58: #{mridangam_forward.1} parent=11 // pred_check_branch
          %398 = sbr.rel (%p396) target = $region60
        $region59: #{mridangam_forward.1} parent=11 // pred_region
          _
        $region60: #{mridangam_forward.1} parent=11 // pred_fallthru
          _
        // Predicated region
        $region61: #{mridangam_forward.1} parent=11 // pred_check
          %p399 = pneg %p322
        $region62: #{mridangam_forward.1} parent=11 // pred_check_branch
          %401 = sbr.rel (%p399) target = $region64
        $region63: #{mridangam_forward.1} parent=11 // pred_region
          _
        $region64: #{mridangam_forward.1} parent=11 // pred_fallthru
          _
      $region12: #{mridangam_forward.1} parent=5 // pred_fallthru
        _
      %p402 = scmp.lt.s32.totalorder %s23, 2
      // Predicated region
      $region65: #{mridangam_forward.1} parent=5 // pred_check
        %p403 = pneg %p402
      $region66: #{mridangam_forward.1} parent=5 // pred_check_branch
        %405 = sbr.rel (%p403) target = $region68
      $region67: #{mridangam_forward.1} parent=5 // pred_region
        // Predicated region
        $region69: #{mridangam_forward.1} parent=67 // pred_check
          %p406 = pneg %p43
        $region70: #{mridangam_forward.1} parent=67 // pred_check_branch
          %408 = sbr.rel (%p406) target = $region72
        $region71: #{mridangam_forward.1} parent=67 // pred_region
          %p409 = scmp.lt.s32.totalorder %s23, 1
          %s410 = scalar_select %p409, %s23, 1
          %s411 = smul.addr %s410, 32
          %s412 = smul.addr %s411, 4
          %s413 = scalar_lea.vmem %s0, %s412
        $region72: #{mridangam_forward.1} parent=67 // pred_fallthru
          _
      $region68: #{mridangam_forward.1} parent=5 // pred_fallthru
        _
      %p414 = scmp.le.s32.totalorder 1, %s23
      %p415 = scmp.lt.s32.totalorder %s23, 3
      %p416 = pnand %p414, %p415
      %p417 = pneg %p416
      // Predicated region
      $region73: #{mridangam_forward.1} parent=5 // pred_check
        _
      $region74: #{mridangam_forward.1} parent=5 // pred_check_branch
        %419 = sbr.rel (%p416) target = $region76
      $region75: #{mridangam_forward.1} parent=5 // pred_region
        %s420 = ssub.s32 %s23, 1
        %p421 = scmp.lt.s32.totalorder %s28, 1
        %s422 = scalar_select %p421, %s28, 1
        %s423 = smul.addr %s422, 32
        %s424 = smul.addr %s423, 4
        %s425 = scalar_lea.vmem %s0, %s424
        %p426 = pneg %p49
        %p427 = pneg %p46
        %p428 = pneg %p70
        %p429 = pneg %p67
        %p430 = pneg %p91
        %p431 = pneg %p88
        %p432 = pneg %p112
        %p433 = pneg %p109
        %p434 = pneg %p133
        %p435 = pneg %p130
        %p436 = pneg %p154
        %p437 = pneg %p151
        %p438 = pneg %p175
        %p439 = pneg %p172
        %p440 = pneg %p196
        %p441 = pneg %p193
        %p442 = pneg %p217
        %p443 = pneg %p214
        %p444 = pneg %p238
        %p445 = pneg %p235
        %p446 = pneg %p259
        %p447 = pneg %p256
        %p448 = pneg %p280
        %p449 = pneg %p277
        %p450 = pneg %p301
        %p451 = pneg %p298
        %p452 = pneg %p322
        %p453 = pneg %p319
        %p454 = pneg %p348
        %p455 = pneg %p345
        %s456 = sand.u32 %s335, 1
        %s457 = scalar_lea.sflag [#allocation3], %s456
        %s458 = sand.u32 %s335, 1
        %s459 = scalar_lea.vmem [#allocation2], %s458
        %p460 = scmp.lt.s32.totalorder %s28, 1
        %s461 = scalar_select %p460, %s28, 1
        %s462 = smul.addr %s461, 32
        %s463 = smul.addr %s462, 4
        %s464 = scalar_lea.vmem %s0, %s463
        %v466 = vld [vmem:[%s464] sm:$0xf]
        %v467 = vld [vmem:[%s464 + $0x4] sm:$0xf]
        %v468 = vld [vmem:[%s464 + $0x8] sm:$0xf]
        %v469 = vld [vmem:[%s464 + $0xc] sm:$0xf]
        %v470 = vld [vmem:[%s464 + $0x10] sm:$0xf]
        %v471 = vld [vmem:[%s464 + $0x14] sm:$0xf]
        %v472 = vld [vmem:[%s464 + $0x18] sm:$0xf]
        %v473 = vld [vmem:[%s464 + $0x1c] sm:$0xf]
        %v474 = vld [vmem:[%s464 + $0x20] sm:$0xf]
        %v475 = vld [vmem:[%s464 + $0x24] sm:$0xf]
        %v476 = vld [vmem:[%s464 + $0x28] sm:$0xf]
        %v477 = vld [vmem:[%s464 + $0x2c] sm:$0xf]
        %v478 = vld [vmem:[%s464 + $0x30] sm:$0xf]
        %v479 = vld [vmem:[%s464 + $0x34] sm:$0xf]
        %v480 = vld [vmem:[%s464 + $0x38] sm:$0xf]
        %v481 = vld [vmem:[%s464 + $0x3c] sm:$0xf]
        %v482 = vld [vmem:[%s464 + $0x40] sm:$0xf]
        %v483 = vld [vmem:[%s464 + $0x44] sm:$0xf]
        %v484 = vld [vmem:[%s464 + $0x48] sm:$0xf]
        %v485 = vld [vmem:[%s464 + $0x4c] sm:$0xf]
        %v486 = vld [vmem:[%s464 + $0x50] sm:$0xf]
        %v487 = vld [vmem:[%s464 + $0x54] sm:$0xf]
        %v488 = vld [vmem:[%s464 + $0x58] sm:$0xf]
        %v489 = vld [vmem:[%s464 + $0x5c] sm:$0xf]
        %v490 = vld [vmem:[%s464 + $0x60] sm:$0xf]
        %v491 = vld [vmem:[%s464 + $0x64] sm:$0xf]
        %v492 = vld [vmem:[%s464 + $0x68] sm:$0xf]
        %v493 = vld [vmem:[%s464 + $0x6c] sm:$0xf]
        %v494 = vld [vmem:[%s464 + $0x70] sm:$0xf]
        %v495 = vld [vmem:[%s464 + $0x74] sm:$0xf]
        %v496 = vld [vmem:[%s464 + $0x78] sm:$0xf]
        %v497 = vld [vmem:[%s464 + $0x7c] sm:$0xf]
        %v498 = vld [vmem:[%s1] sm:$0xf]
        %v499 = vld [vmem:[%s1 + $0x4] sm:$0xf]
        %v500 = vld [vmem:[%s2] sm:$0x1]
        %v502 = vlaneseq
        %v503 = vshrl.u32 %v502, 7
        %v504 = vsub.s32 0, %v503
        %v505 = vrot.slane %v500, %v504
        %v539 = vunpack.c.l.b16 %v466
        %v540 = vunpack.c.l.b16 %v467
        %v541 = vunpack.c.l.b16 %v468
        %v542 = vunpack.c.l.b16 %v469
        %v543 = vunpack.c.l.b16 %v470
        %v544 = vunpack.c.l.b16 %v471
        %v545 = vunpack.c.l.b16 %v472
        %v546 = vunpack.c.l.b16 %v473
        %v547 = vunpack.c.l.b16 %v474
        %v548 = vunpack.c.l.b16 %v475
        %v549 = vunpack.c.l.b16 %v476
        %v550 = vunpack.c.l.b16 %v477
        %v551 = vunpack.c.l.b16 %v478
        %v552 = vunpack.c.l.b16 %v479
        %v553 = vunpack.c.l.b16 %v480
        %v554 = vunpack.c.l.b16 %v481
        %v555 = vunpack.c.l.b16 %v482
        %v556 = vunpack.c.l.b16 %v483
        %v557 = vunpack.c.l.b16 %v484
        %v558 = vunpack.c.l.b16 %v485
        %v559 = vunpack.c.l.b16 %v486
        %v560 = vunpack.c.l.b16 %v487
        %v561 = vunpack.c.l.b16 %v488
        %v562 = vunpack.c.l.b16 %v489
        %v563 = vunpack.c.l.b16 %v490
        %v564 = vunpack.c.l.b16 %v491
        %v565 = vunpack.c.l.b16 %v492
        %v566 = vunpack.c.l.b16 %v493
        %v567 = vunpack.c.l.b16 %v494
        %v568 = vunpack.c.l.b16 %v495
        %v569 = vunpack.c.l.b16 %v496
        %v570 = vunpack.c.l.b16 %v497
        %v571 = vpack.c.b16 %v540, %v539
        %v572 = vpack.c.b16 %v542, %v541
        %v573 = vpack.c.b16 %v544, %v543
        %v574 = vpack.c.b16 %v546, %v545
        %v575 = vpack.c.b16 %v548, %v547
        %v576 = vpack.c.b16 %v550, %v549
        %v577 = vpack.c.b16 %v552, %v551
        %v578 = vpack.c.b16 %v554, %v553
        %v579 = vpack.c.b16 %v556, %v555
        %v580 = vpack.c.b16 %v558, %v557
        %v581 = vpack.c.b16 %v560, %v559
        %v582 = vpack.c.b16 %v562, %v561
        %v583 = vpack.c.b16 %v564, %v563
        %v584 = vpack.c.b16 %v566, %v565
        %v585 = vpack.c.b16 %v568, %v567
        %v586 = vpack.c.b16 %v570, %v569
        %v589 = vunpack.c.l.b16 %v498
        %v590 = vunpack.c.l.b16 %v499
        %v591 = vpack.c.b16 %v590, %v589
        %vm593 = vcmask 130048
        %v595 = vsel %vm593, %v571, 0
        %v598 = vsel %vm593, %v572, 0
        %v601 = vsel %vm593, %v573, 0
        %v604 = vsel %vm593, %v574, 0
        %v607 = vsel %vm593, %v575, 0
        %v610 = vsel %vm593, %v576, 0
        %v613 = vsel %vm593, %v577, 0
        %v616 = vsel %vm593, %v578, 0
        %v619 = vsel %vm593, %v579, 0
        %v622 = vsel %vm593, %v580, 0
        %v625 = vsel %vm593, %v581, 0
        %v628 = vsel %vm593, %v582, 0
        %v631 = vsel %vm593, %v583, 0
        %v634 = vsel %vm593, %v584, 0
        %v637 = vsel %vm593, %v585, 0
        %v640 = vsel %vm593, %v586, 0
        %642 = vmatprep.subr.bf16.mxu0 0
        %643 = vmatpush1.bf16.msra.mxu0 %v591
        %644 = vmatprep.subr.bf16.mxu0 0
        %645 = vmatpush1.bf16.msra.mxu0 0
        %646 = vmatprep.subr.bf16.mxu0 0
        %647 = vmatpush1.bf16.msra.mxu0 0
        %648 = vmatprep.subr.bf16.mxu0 0
        %649 = vmatpush1.bf16.msra.mxu0 0
        %650 = vmatprep.subr.bf16.mxu0 0
        %651 = vmatpush1.bf16.msra.mxu0 0
        %652 = vmatprep.subr.bf16.mxu0 0
        %653 = vmatpush1.bf16.msra.mxu0 0
        %654 = vmatprep.subr.bf16.mxu0 0
        %655 = vmatpush1.bf16.msra.mxu0 0
        %656 = vmatprep.subr.bf16.mxu0 0
        %657 = vmatpush1.bf16.msra.mxu0 0
        %658 = vmatprep.subr.bf16.mxu0 0
        %659 = vmatpush1.bf16.msra.mxu0 0
        %660 = vmatprep.subr.bf16.mxu0 0
        %661 = vmatpush1.bf16.msra.mxu0 0
        %662 = vmatprep.subr.bf16.mxu0 0
        %663 = vmatpush1.bf16.msra.mxu0 0
        %664 = vmatprep.subr.bf16.mxu0 0
        %665 = vmatpush1.bf16.msra.mxu0 0
        %666 = vmatprep.subr.bf16.mxu0 0
        %667 = vmatpush1.bf16.msra.mxu0 0
        %668 = vmatprep.subr.bf16.mxu0 0
        %669 = vmatpush1.bf16.msra.mxu0 0
        %670 = vmatprep.subr.bf16.mxu0 0
        %671 = vmatpush1.bf16.msra.mxu0 0
        %672 = vmatprep.subr.bf16.mxu0 0
        %673 = vmatpush1.bf16.msra.mxu0 0
        %674 = vmatprep.mubr.bf16.mxu0 0
        %675 = vmatmul.mubr.bf16.gmra.mrb[0].mxu0 %v595
        %v676 = vpop.f32.mrb[0].mxu0
        %v677 = vadd.f32 %v505, %v676
        %v678 = vpop.f32.mrb[0].mxu0
        %v679 = vpop.f32.mrb[0].mxu0
        %v680 = vadd.f32 %v505, %v679
        %v681 = vpop.f32.mrb[0].mxu0
        %682 = vmatprep.mubr.bf16.mxu0 0
        %683 = vmatmul.mubr.bf16.gmra.mrb[0].mxu0 %v598
        %v684 = vpop.f32.mrb[0].mxu0
        %v685 = vadd.f32 %v505, %v684
        %v686 = vpop.f32.mrb[0].mxu0
        %v687 = vpop.f32.mrb[0].mxu0
        %v688 = vadd.f32 %v505, %v687
        %v689 = vpop.f32.mrb[0].mxu0
        %690 = vmatprep.mubr.bf16.mxu0 0
        %691 = vmatmul.mubr.bf16.gmra.mrb[0].mxu0 %v601
        %v692 = vpop.f32.mrb[0].mxu0
        %v693 = vadd.f32 %v505, %v692
        %v694 = vpop.f32.mrb[0].mxu0
        %v695 = vpop.f32.mrb[0].mxu0
        %v696 = vadd.f32 %v505, %v695
        %v697 = vpop.f32.mrb[0].mxu0
        %698 = vmatprep.mubr.bf16.mxu0 0
        %699 = vmatmul.mubr.bf16.gmra.mrb[0].mxu0 %v604
        %v700 = vpop.f32.mrb[0].mxu0
        %v701 = vadd.f32 %v505, %v700
        %v702 = vpop.f32.mrb[0].mxu0
        %v703 = vpop.f32.mrb[0].mxu0
        %v704 = vadd.f32 %v505, %v703
        %v705 = vpop.f32.mrb[0].mxu0
        %706 = vmatprep.mubr.bf16.mxu0 0
        %707 = vmatmul.mubr.bf16.gmra.mrb[0].mxu0 %v607
        %v708 = vpop.f32.mrb[0].mxu0
        %v709 = vadd.f32 %v505, %v708
        %v710 = vpop.f32.mrb[0].mxu0
        %v711 = vpop.f32.mrb[0].mxu0
        %v712 = vadd.f32 %v505, %v711
        %v713 = vpop.f32.mrb[0].mxu0
        %714 = vmatprep.mubr.bf16.mxu0 0
        %715 = vmatmul.mubr.bf16.gmra.mrb[0].mxu0 %v610
        %v716 = vpop.f32.mrb[0].mxu0
        %v717 = vadd.f32 %v505, %v716
        %v718 = vpop.f32.mrb[0].mxu0
        %v719 = vpop.f32.mrb[0].mxu0
        %v720 = vadd.f32 %v505, %v719
        %v721 = vpop.f32.mrb[0].mxu0
        %722 = vmatprep.mubr.bf16.mxu0 0
        %723 = vmatmul.mubr.bf16.gmra.mrb[0].mxu0 %v613
        %v724 = vpop.f32.mrb[0].mxu0
        %v725 = vadd.f32 %v505, %v724
        %v726 = vpop.f32.mrb[0].mxu0
        %v727 = vpop.f32.mrb[0].mxu0
        %v728 = vadd.f32 %v505, %v727
        %v729 = vpop.f32.mrb[0].mxu0
        %730 = vmatprep.mubr.bf16.mxu0 0
        %731 = vmatmul.mubr.bf16.gmra.mrb[0].mxu0 %v616
        %v732 = vpop.f32.mrb[0].mxu0
        %v733 = vadd.f32 %v505, %v732
        %v734 = vpop.f32.mrb[0].mxu0
        %v735 = vpop.f32.mrb[0].mxu0
        %v736 = vadd.f32 %v505, %v735
        %v737 = vpop.f32.mrb[0].mxu0
        %738 = vmatprep.mubr.bf16.mxu0 0
        %739 = vmatmul.mubr.bf16.gmra.mrb[0].mxu0 %v619
        %v740 = vpop.f32.mrb[0].mxu0
        %v741 = vadd.f32 %v505, %v740
        %v742 = vpop.f32.mrb[0].mxu0
        %v743 = vpop.f32.mrb[0].mxu0
        %v744 = vadd.f32 %v505, %v743
        %v745 = vpop.f32.mrb[0].mxu0
        %746 = vmatprep.mubr.bf16.mxu0 0
        %747 = vmatmul.mubr.bf16.gmra.mrb[0].mxu0 %v622
        %v748 = vpop.f32.mrb[0].mxu0
        %v749 = vadd.f32 %v505, %v748
        %v750 = vpop.f32.mrb[0].mxu0
        %v751 = vpop.f32.mrb[0].mxu0
        %v752 = vadd.f32 %v505, %v751
        %v753 = vpop.f32.mrb[0].mxu0
        %754 = vmatprep.mubr.bf16.mxu0 0
        %755 = vmatmul.mubr.bf16.gmra.mrb[0].mxu0 %v625
        %v756 = vpop.f32.mrb[0].mxu0
        %v757 = vadd.f32 %v505, %v756
        %v758 = vpop.f32.mrb[0].mxu0
        %v759 = vpop.f32.mrb[0].mxu0
        %v760 = vadd.f32 %v505, %v759
        %v761 = vpop.f32.mrb[0].mxu0
        %762 = vmatprep.mubr.bf16.mxu0 0
        %763 = vmatmul.mubr.bf16.gmra.mrb[0].mxu0 %v628
        %v764 = vpop.f32.mrb[0].mxu0
        %v765 = vadd.f32 %v505, %v764
        %v766 = vpop.f32.mrb[0].mxu0
        %v767 = vpop.f32.mrb[0].mxu0
        %v768 = vadd.f32 %v505, %v767
        %v769 = vpop.f32.mrb[0].mxu0
        %770 = vmatprep.mubr.bf16.mxu0 0
        %771 = vmatmul.mubr.bf16.gmra.mrb[0].mxu0 %v631
        %v772 = vpop.f32.mrb[0].mxu0
        %v773 = vadd.f32 %v505, %v772
        %v774 = vpop.f32.mrb[0].mxu0
        %v775 = vpop.f32.mrb[0].mxu0
        %v776 = vadd.f32 %v505, %v775
        %v777 = vpop.f32.mrb[0].mxu0
        %778 = vmatprep.mubr.bf16.mxu0 0
        %779 = vmatmul.mubr.bf16.gmra.mrb[0].mxu0 %v634
        %v780 = vpop.f32.mrb[0].mxu0
        %v781 = vadd.f32 %v505, %v780
        %v782 = vpop.f32.mrb[0].mxu0
        %v783 = vpop.f32.mrb[0].mxu0
        %v784 = vadd.f32 %v505, %v783
        %v785 = vpop.f32.mrb[0].mxu0
        %786 = vmatprep.mubr.bf16.mxu0 0
        %787 = vmatmul.mubr.bf16.gmra.mrb[0].mxu0 %v637
        %v788 = vpop.f32.mrb[0].mxu0
        %v789 = vadd.f32 %v505, %v788
        %v790 = vpop.f32.mrb[0].mxu0
        %v791 = vpop.f32.mrb[0].mxu0
        %v792 = vadd.f32 %v505, %v791
        %v793 = vpop.f32.mrb[0].mxu0
        %794 = vmatprep.mubr.bf16.mxu0 0
        %795 = vmatmul.mubr.bf16.gmra.mrb[0].mxu0 %v640
        %v796 = vpop.f32.mrb[0].mxu0
        %v797 = vadd.f32 %v505, %v796
        %v798 = vpop.f32.mrb[0].mxu0
        %v799 = vpop.f32.mrb[0].mxu0
        %v800 = vadd.f32 %v505, %v799
        %v801 = vpop.f32.mrb[0].mxu0
        %802 = vdwg.mxu0
        %v803 = vmax.f32 %v677, 0.0
        %v804 = vmax.f32 %v680, 0.0
        %v805 = vmax.f32 %v685, 0.0
        %v806 = vmax.f32 %v688, 0.0
        %v807 = vmax.f32 %v693, 0.0
        %v808 = vmax.f32 %v696, 0.0
        %v809 = vmax.f32 %v701, 0.0
        %v810 = vmax.f32 %v704, 0.0
        %v811 = vmax.f32 %v709, 0.0
        %v812 = vmax.f32 %v712, 0.0
        %v813 = vmax.f32 %v717, 0.0
        %v814 = vmax.f32 %v720, 0.0
        %v815 = vmax.f32 %v725, 0.0
        %v816 = vmax.f32 %v728, 0.0
        %v817 = vmax.f32 %v733, 0.0
        %v818 = vmax.f32 %v736, 0.0
        %v819 = vmax.f32 %v741, 0.0
        %v820 = vmax.f32 %v744, 0.0
        %v821 = vmax.f32 %v749, 0.0
        %v822 = vmax.f32 %v752, 0.0
        %v823 = vmax.f32 %v757, 0.0
        %v824 = vmax.f32 %v760, 0.0
        %v825 = vmax.f32 %v765, 0.0
        %v826 = vmax.f32 %v768, 0.0
        %v827 = vmax.f32 %v773, 0.0
        %v828 = vmax.f32 %v776, 0.0
        %v829 = vmax.f32 %v781, 0.0
        %v830 = vmax.f32 %v784, 0.0
        %v831 = vmax.f32 %v789, 0.0
        %v832 = vmax.f32 %v792, 0.0
        %v833 = vmax.f32 %v797, 0.0
        %v834 = vmax.f32 %v800, 0.0
        %vm865 = vcmask 1046528
        %v866 = vrot.slane %v803, 1
        %v867 = vrot.slane %v804, 1
        %v868 = vsel %vm865, %v866, %v867
        %v869 = vrot.slane %v805, 1
        %v870 = vsel %vm865, %v867, %v869
        %v871 = vrot.slane %v806, 1
        %v872 = vsel %vm865, %v869, %v871
        %v873 = vrot.slane %v807, 1
        %v874 = vsel %vm865, %v871, %v873
        %v875 = vrot.slane %v808, 1
        %v876 = vsel %vm865, %v873, %v875
        %v877 = vrot.slane %v809, 1
        %v878 = vsel %vm865, %v875, %v877
        %v879 = vrot.slane %v810, 1
        %v880 = vsel %vm865, %v877, %v879
        %v881 = vrot.slane %v811, 1
        %v882 = vsel %vm865, %v879, %v881
        %v883 = vrot.slane %v812, 1
        %v884 = vsel %vm865, %v881, %v883
        %v885 = vrot.slane %v813, 1
        %v886 = vsel %vm865, %v883, %v885
        %v887 = vrot.slane %v814, 1
        %v888 = vsel %vm865, %v885, %v887
        %v889 = vrot.slane %v815, 1
        %v890 = vsel %vm865, %v887, %v889
        %v891 = vrot.slane %v816, 1
        %v892 = vsel %vm865, %v889, %v891
        %v893 = vrot.slane %v817, 1
        %v894 = vsel %vm865, %v891, %v893
        %v895 = vrot.slane %v818, 1
        %v896 = vsel %vm865, %v893, %v895
        %v897 = vrot.slane %v819, 1
        %v898 = vsel %vm865, %v895, %v897
        %v899 = vrot.slane %v820, 1
        %v900 = vsel %vm865, %v897, %v899
        %v901 = vrot.slane %v821, 1
        %v902 = vsel %vm865, %v899, %v901
        %v903 = vrot.slane %v822, 1
        %v904 = vsel %vm865, %v901, %v903
        %v905 = vrot.slane %v823, 1
        %v906 = vsel %vm865, %v903, %v905
        %v907 = vrot.slane %v824, 1
        %v908 = vsel %vm865, %v905, %v907
        %v909 = vrot.slane %v825, 1
        %v910 = vsel %vm865, %v907, %v909
        %v911 = vrot.slane %v826, 1
        %v912 = vsel %vm865, %v909, %v911
        %v913 = vrot.slane %v827, 1
        %v914 = vsel %vm865, %v911, %v913
        %v915 = vrot.slane %v828, 1
        %v916 = vsel %vm865, %v913, %v915
        %v917 = vrot.slane %v829, 1
        %v918 = vsel %vm865, %v915, %v917
        %v919 = vrot.slane %v830, 1
        %v920 = vsel %vm865, %v917, %v919
        %v921 = vrot.slane %v831, 1
        %v922 = vsel %vm865, %v919, %v921
        %v923 = vrot.slane %v832, 1
        %v924 = vsel %vm865, %v921, %v923
        %v955 = vmax.f32 %v803, %v868
        %v956 = vmax.f32 %v804, %v870
        %v957 = vmax.f32 %v805, %v872
        %v958 = vmax.f32 %v806, %v874
        %v959 = vmax.f32 %v807, %v876
        %v960 = vmax.f32 %v808, %v878
        %v961 = vmax.f32 %v809, %v880
        %v962 = vmax.f32 %v810, %v882
        %v963 = vmax.f32 %v811, %v884
        %v964 = vmax.f32 %v812, %v886
        %v965 = vmax.f32 %v813, %v888
        %v966 = vmax.f32 %v814, %v890
        %v967 = vmax.f32 %v815, %v892
        %v968 = vmax.f32 %v816, %v894
        %v969 = vmax.f32 %v817, %v896
        %v970 = vmax.f32 %v818, %v898
        %v971 = vmax.f32 %v819, %v900
        %v972 = vmax.f32 %v820, %v902
        %v973 = vmax.f32 %v821, %v904
        %v974 = vmax.f32 %v822, %v906
        %v975 = vmax.f32 %v823, %v908
        %v976 = vmax.f32 %v824, %v910
        %v977 = vmax.f32 %v825, %v912
        %v978 = vmax.f32 %v826, %v914
        %v979 = vmax.f32 %v827, %v916
        %v980 = vmax.f32 %v828, %v918
        %v981 = vmax.f32 %v829, %v920
        %v982 = vmax.f32 %v830, %v922
        %v983 = vmax.f32 %v831, %v924
        %v984 = vmax.f32 %v832, %v923
        %v987 = vrot.slane %v833, 1
        %v988 = vsel %vm865, %v923, %v987
        %v989 = vrot.slane %v834, 1
        %v990 = vsel %vm865, %v987, %v989
        %v994 = vmax.f32 %v832, %v988
        %v995 = vmax.f32 %v833, %v990
        %v996 = vmax.f32 %v834, %v989
        %v997 = vmax.f32 %v955, %v957
        %v998 = vmax.f32 %v956, %v958
        %v999 = vmax.f32 %v957, %v959
        %v1000 = vmax.f32 %v958, %v960
        %v1001 = vmax.f32 %v959, %v961
        %v1002 = vmax.f32 %v960, %v962
        %v1003 = vmax.f32 %v961, %v963
        %v1004 = vmax.f32 %v962, %v964
        %v1005 = vmax.f32 %v963, %v965
        %v1006 = vmax.f32 %v964, %v966
        %v1007 = vmax.f32 %v965, %v967
        %v1008 = vmax.f32 %v966, %v968
        %v1009 = vmax.f32 %v967, %v969
        %v1010 = vmax.f32 %v968, %v970
        %v1011 = vmax.f32 %v969, %v971
        %v1012 = vmax.f32 %v970, %v972
        %v1013 = vmax.f32 %v971, %v973
        %v1014 = vmax.f32 %v972, %v974
        %v1015 = vmax.f32 %v973, %v975
        %v1016 = vmax.f32 %v974, %v976
        %v1017 = vmax.f32 %v975, %v977
        %v1018 = vmax.f32 %v976, %v978
        %v1019 = vmax.f32 %v977, %v979
        %v1020 = vmax.f32 %v978, %v980
        %v1021 = vmax.f32 %v979, %v981
        %v1022 = vmax.f32 %v980, %v982
        %v1023 = vmax.f32 %v981, %v983
        %v1024 = vmax.f32 %v982, %v994
        %v1025 = vmax.f32 %v983, %v995
        %v1026 = vmax.f32 %v984, %v996
        %v1027 = vld [vmem:[%s3] sm:$0xff]
        %v1028 = vld [vmem:[%s3 + $0x8] sm:$0xff]
        %v1029 = vld [vmem:[%s3 + $0x10] sm:$0xff]
        %v1030 = vld [vmem:[%s3 + $0x18] sm:$0xff]
        %v1031 = vld [vmem:[%s3 + $0x20] sm:$0xff]
        %v1032 = vld [vmem:[%s3 + $0x28] sm:$0xff]
        %v1033 = vld [vmem:[%s3 + $0x30] sm:$0xff]
        %v1034 = vld [vmem:[%s3 + $0x38] sm:$0xff]
        %v1035 = vunpack.c.l.bf16 %v1027
        %v1036 = vunpack.c.h.bf16 %v1027
        %v1037 = vunpack.c.l.bf16 %v1028
        %v1038 = vunpack.c.h.bf16 %v1028
        %v1039 = vunpack.c.l.bf16 %v1029
        %v1040 = vunpack.c.h.bf16 %v1029
        %v1041 = vunpack.c.l.bf16 %v1030
        %v1042 = vunpack.c.h.bf16 %v1030
        %v1043 = vunpack.c.l.bf16 %v1031
        %v1044 = vunpack.c.h.bf16 %v1031
        %v1045 = vunpack.c.l.bf16 %v1032
        %v1046 = vunpack.c.h.bf16 %v1032
        %v1047 = vunpack.c.l.bf16 %v1033
        %v1048 = vunpack.c.h.bf16 %v1033
        %v1049 = vunpack.c.l.bf16 %v1034
        %v1050 = vunpack.c.h.bf16 %v1034
        %vm1051 = vcmask 908288
        %v1053 = vsel %vm1051, %v1036, 0
        %v1056 = vsel %vm1051, %v1038, 0
        %v1059 = vsel %vm1051, %v1040, 0
        %v1062 = vsel %vm1051, %v1042, 0
        %v1065 = vsel %vm1051, %v1044, 0
        %v1068 = vsel %vm1051, %v1046, 0
        %v1071 = vsel %vm1051, %v1048, 0
        %v1074 = vsel %vm1051, %v1050, 0
        %v1077 = vsel %vm865, %v1026, 0
        %1079 = vmatprep.subr.mxu0 0.0
        %1080 = vmatpush1.msra.mxu0 %v997
        %1081 = vmatprep.subr.mxu0 0.0
        %1082 = vmatpush1.msra.mxu0 %v998
        %1083 = vmatprep.subr.mxu0 0.0
        %1084 = vmatpush1.msra.mxu0 %v999
        %1085 = vmatprep.subr.mxu0 0.0
        %1086 = vmatpush1.msra.mxu0 %v1000
        %1087 = vmatprep.subr.mxu0 0.0
        %1088 = vmatpush1.msra.mxu0 %v1001
        %1089 = vmatprep.subr.mxu0 0.0
        %1090 = vmatpush1.msra.mxu0 %v1002
        %1091 = vmatprep.subr.mxu0 0.0
        %1092 = vmatpush1.msra.mxu0 %v1003
        %1093 = vmatprep.subr.mxu0 0.0
        %1094 = vmatpush1.msra.mxu0 %v1004
        %1095 = vmatprep.subr.mxu0 0.0
        %1096 = vmatpush1.msra.mxu0 %v1005
        %1097 = vmatprep.subr.mxu0 0.0
        %1098 = vmatpush1.msra.mxu0 %v1006
        %1099 = vmatprep.subr.mxu0 0.0
        %1100 = vmatpush1.msra.mxu0 %v1007
        %1101 = vmatprep.subr.mxu0 0.0
        %1102 = vmatpush1.msra.mxu0 %v1008
        %1103 = vmatprep.subr.mxu0 0.0
        %1104 = vmatpush1.msra.mxu0 %v1009
        %1105 = vmatprep.subr.mxu0 0.0
        %1106 = vmatpush1.msra.mxu0 %v1010
        %1107 = vmatprep.subr.mxu0 0.0
        %1108 = vmatpush1.msra.mxu0 %v1011
        %1109 = vmatprep.subr.mxu0 0.0
        %1110 = vmatpush1.msra.mxu0 %v1012
        %1111 = vmatprep.subr.mxu0 0.0
        %1112 = vmatpush1.msra.mxu0 %v1013
        %1113 = vmatprep.subr.mxu0 0.0
        %1114 = vmatpush1.msra.mxu0 %v1014
        %1115 = vmatprep.subr.mxu0 0.0
        %1116 = vmatpush1.msra.mxu0 %v1015
        %1117 = vmatprep.subr.mxu0 0.0
        %1118 = vmatpush1.msra.mxu0 %v1016
        %1119 = vmatprep.subr.mxu0 0.0
        %1120 = vmatpush1.msra.mxu0 %v1017
        %1121 = vmatprep.subr.mxu0 0.0
        %1122 = vmatpush1.msra.mxu0 %v1018
        %1123 = vmatprep.subr.mxu0 0.0
        %1124 = vmatpush1.msra.mxu0 %v1019
        %1125 = vmatprep.subr.mxu0 0.0
        %1126 = vmatpush1.msra.mxu0 %v1020
        %1127 = vmatprep.subr.mxu0 0.0
        %1128 = vmatpush1.msra.mxu0 %v1021
        %1129 = vmatprep.subr.mxu0 0.0
        %1130 = vmatpush1.msra.mxu0 %v1022
        %1131 = vmatprep.subr.mxu0 0.0
        %1132 = vmatpush1.msra.mxu0 %v1023
        %1133 = vmatprep.subr.mxu0 0.0
        %1134 = vmatpush1.msra.mxu0 %v1024
        %1135 = vmatprep.subr.mxu0 0.0
        %1136 = vmatpush1.msra.mxu0 %v1025
        %1137 = vmatprep.subr.mxu0 0.0
        %1138 = vmatpush1.msra.mxu0 %v1077
        %1139 = vmatprep.subr.mxu0 0.0
        %1140 = vmatpush1.msra.mxu0 0.0
        %1141 = vmatprep.subr.mxu0 0.0
        %1142 = vmatpush1.msra.mxu0 0.0
        %1143 = vmatprep.mubr.f32.mxu0 %v1053
        %1144 = vmatmul.mubr.f32.gmra.mrb[0].mxu0 %v1035
        %v1145 = vpop.f32.mrb[0].mxu0
        %v1146 = vadd.f32 0.0, %v1145
        %v1147 = vpop.f32.mrb[0].mxu0
        %1148 = vmatprep.mubr.f32.mxu0 %v1056
        %1149 = vmatmul.mubr.f32.gmra.mrb[0].mxu0 %v1037
        %v1150 = vpop.f32.mrb[0].mxu0
        %v1151 = vadd.f32 0.0, %v1150
        %v1152 = vpop.f32.mrb[0].mxu0
        %1153 = vmatprep.mubr.f32.mxu0 %v1059
        %1154 = vmatmul.mubr.f32.gmra.mrb[0].mxu0 %v1039
        %v1155 = vpop.f32.mrb[0].mxu0
        %v1156 = vadd.f32 0.0, %v1155
        %v1157 = vpop.f32.mrb[0].mxu0
        %1158 = vmatprep.mubr.f32.mxu0 %v1062
        %1159 = vmatmul.mubr.f32.gmra.mrb[0].mxu0 %v1041
        %v1160 = vpop.f32.mrb[0].mxu0
        %v1161 = vadd.f32 0.0, %v1160
        %v1162 = vpop.f32.mrb[0].mxu0
        %1163 = vmatprep.mubr.f32.mxu0 %v1065
        %1164 = vmatmul.mubr.f32.gmra.mrb[0].mxu0 %v1043
        %v1165 = vpop.f32.mrb[0].mxu0
        %v1166 = vadd.f32 0.0, %v1165
        %v1167 = vpop.f32.mrb[0].mxu0
        %1168 = vmatprep.mubr.f32.mxu0 %v1068
        %1169 = vmatmul.mubr.f32.gmra.mrb[0].mxu0 %v1045
        %v1170 = vpop.f32.mrb[0].mxu0
        %v1171 = vadd.f32 0.0, %v1170
        %v1172 = vpop.f32.mrb[0].mxu0
        %1173 = vmatprep.mubr.f32.mxu0 %v1071
        %1174 = vmatmul.mubr.f32.gmra.mrb[0].mxu0 %v1047
        %v1175 = vpop.f32.mrb[0].mxu0
        %v1176 = vadd.f32 0.0, %v1175
        %v1177 = vpop.f32.mrb[0].mxu0
        %1178 = vmatprep.mubr.f32.mxu0 %v1074
        %1179 = vmatmul.mubr.f32.gmra.mrb[0].mxu0 %v1049
        %v1180 = vpop.f32.mrb[0].mxu0
        %v1181 = vadd.f32 0.0, %v1180
        %v1182 = vpop.f32.mrb[0].mxu0
        %1183 = vdwg.mxu0
        %vm1192 = vcmask 1040384
        %v1193 = vrot.slane %v1146, 7
        %v1194 = vrot.slane %v1151, 7
        %v1195 = vsel %vm1192, %v1193, %v1194
        %v1196 = vrot.slane %v1156, 7
        %v1197 = vsel %vm1192, %v1194, %v1196
        %v1198 = vrot.slane %v1161, 7
        %v1199 = vsel %vm1192, %v1196, %v1198
        %v1200 = vrot.slane %v1166, 7
        %v1201 = vsel %vm1192, %v1198, %v1200
        %v1202 = vrot.slane %v1171, 7
        %v1203 = vsel %vm1192, %v1200, %v1202
        %v1204 = vrot.slane %v1176, 7
        %v1205 = vsel %vm1192, %v1202, %v1204
        %v1206 = vrot.slane %v1181, 7
        %v1207 = vsel %vm1192, %v1204, %v1206
        %v1217 = vsel %vm1192, 0.0, %v1193
        %v1218 = vsel %vm1192, %v1206, 0.0
        %v1219 = vlaneseq
        %v1220 = vshrl.u32 %v1219, 7
        %v1221 = vadd.s32 %v1220, 8
        %v1222 = vadd.s32 %v1220, 16
        %v1223 = vadd.s32 %v1220, 24
        %v1224 = vadd.s32 %v1220, 32
        %v1225 = vadd.s32 %v1220, 40
        %v1226 = vadd.s32 %v1220, 48
        %v1227 = vadd.s32 %v1220, 56
        %v1228 = vand.u32 %v1220, 7
        %v1229 = vand.u32 %v1221, 7
        %v1230 = vand.u32 %v1222, 7
        %v1231 = vand.u32 %v1223, 7
        %v1232 = vand.u32 %v1224, 7
        %v1233 = vand.u32 %v1225, 7
        %v1234 = vand.u32 %v1226, 7
        %v1235 = vand.u32 %v1227, 7
        %v1236 = vlaneseq
        %v1237 = vand.u32 %v1236, 127
        %vm1238 = vcmp.ge.s32.totalorder %v1237, 0
        %vm1239 = vcmp.lt.s32.totalorder %v1237, 32
        %vm1240 = vmand %vm1238, %vm1239
        %v1241 = vsel %vm1240, 1, 0
        %v1242 = vcvt.s32.f32 %v1241
        %vm1243 = vcmp.ge.s32.totalorder %v1228, 1
        %vm1244 = vcmp.ge.s32.totalorder %v1229, 1
        %vm1245 = vcmp.ge.s32.totalorder %v1230, 1
        %vm1246 = vcmp.ge.s32.totalorder %v1231, 1
        %vm1247 = vcmp.ge.s32.totalorder %v1232, 1
        %vm1248 = vcmp.ge.s32.totalorder %v1233, 1
        %vm1249 = vcmp.ge.s32.totalorder %v1234, 1
        %vm1250 = vcmp.ge.s32.totalorder %v1235, 1
        %v1251 = vsel %vm1243, 1, 0
        %v1252 = vsel %vm1244, 1, 0
        %v1253 = vsel %vm1245, 1, 0
        %v1254 = vsel %vm1246, 1, 0
        %v1255 = vsel %vm1247, 1, 0
        %v1256 = vsel %vm1248, 1, 0
        %v1257 = vsel %vm1249, 1, 0
        %v1258 = vsel %vm1250, 1, 0
        %v1259 = vcvt.s32.f32 %v1251
        %v1260 = vcvt.s32.f32 %v1252
        %v1261 = vcvt.s32.f32 %v1253
        %v1262 = vcvt.s32.f32 %v1254
        %v1263 = vcvt.s32.f32 %v1255
        %v1264 = vcvt.s32.f32 %v1256
        %v1265 = vcvt.s32.f32 %v1257
        %v1266 = vcvt.s32.f32 %v1258
        %v1267 = vmul.f32 %v1242, %v1259
        %v1268 = vmul.f32 %v1242, %v1260
        %v1269 = vmul.f32 %v1242, %v1261
        %v1270 = vmul.f32 %v1242, %v1262
        %v1271 = vmul.f32 %v1242, %v1263
        %v1272 = vmul.f32 %v1242, %v1264
        %v1273 = vmul.f32 %v1242, %v1265
        %v1274 = vmul.f32 %v1242, %v1266
        %v1275 = vmul.f32 %v1267, 0.0
        %v1276 = vmul.f32 %v1217, %v1268
        %v1277 = vmul.f32 %v1195, %v1269
        %v1278 = vmul.f32 %v1197, %v1270
        %v1279 = vmul.f32 %v1199, %v1271
        %v1280 = vmul.f32 %v1201, %v1272
        %v1281 = vmul.f32 %v1203, %v1273
        %v1282 = vmul.f32 %v1205, %v1274
        %vm1283 = vcmp.ge.s32.totalorder %v1237, 32
        %vm1284 = vcmp.lt.s32.totalorder %v1237, 64
        %vm1285 = vmand %vm1283, %vm1284
        %v1286 = vsel %vm1285, 1, 0
        %v1287 = vcvt.s32.f32 %v1286
        %v1288 = vmul.f32 %v1287, 0.0
        %v1289 = vmul.f32 %v1217, %v1287
        %v1290 = vmul.f32 %v1195, %v1287
        %v1291 = vmul.f32 %v1197, %v1287
        %v1292 = vmul.f32 %v1199, %v1287
        %v1293 = vmul.f32 %v1201, %v1287
        %v1294 = vmul.f32 %v1203, %v1287
        %v1295 = vmul.f32 %v1205, %v1287
        %v1296 = vmul.f32 %v1207, %v1287
        %v1306 = vrot.slane %v1288, 1
        %v1307 = vrot.slane %v1289, 1
        %v1308 = vsel %vm865, %v1306, %v1307
        %v1309 = vrot.slane %v1290, 1
        %v1310 = vsel %vm865, %v1307, %v1309
        %v1311 = vrot.slane %v1291, 1
        %v1312 = vsel %vm865, %v1309, %v1311
        %v1313 = vrot.slane %v1292, 1
        %v1314 = vsel %vm865, %v1311, %v1313
        %v1315 = vrot.slane %v1293, 1
        %v1316 = vsel %vm865, %v1313, %v1315
        %v1317 = vrot.slane %v1294, 1
        %v1318 = vsel %vm865, %v1315, %v1317
        %v1319 = vrot.slane %v1295, 1
        %v1320 = vsel %vm865, %v1317, %v1319
        %v1321 = vrot.slane %v1296, 1
        %v1322 = vsel %vm865, %v1319, %v1321
        %v1331 = vadd.f32 %v1275, %v1308
        %v1332 = vadd.f32 %v1276, %v1310
        %v1333 = vadd.f32 %v1277, %v1312
        %v1334 = vadd.f32 %v1278, %v1314
        %v1335 = vadd.f32 %v1279, %v1316
        %v1336 = vadd.f32 %v1280, %v1318
        %v1337 = vadd.f32 %v1281, %v1320
        %v1338 = vadd.f32 %v1282, %v1322
        %vm1339 = vcmp.ge.s32.totalorder %v1237, 64
        %vm1340 = vcmp.lt.s32.totalorder %v1237, 96
        %vm1341 = vmand %vm1339, %vm1340
        %v1342 = vsel %vm1341, 1, 0
        %v1343 = vcvt.s32.f32 %v1342
        %vm1344 = vcmp.lt.s32.totalorder %v1228, 7
        %vm1345 = vcmp.lt.s32.totalorder %v1229, 7
        %vm1346 = vcmp.lt.s32.totalorder %v1230, 7
        %vm1347 = vcmp.lt.s32.totalorder %v1231, 7
        %vm1348 = vcmp.lt.s32.totalorder %v1232, 7
        %vm1349 = vcmp.lt.s32.totalorder %v1233, 7
        %vm1350 = vcmp.lt.s32.totalorder %v1234, 7
        %vm1351 = vcmp.lt.s32.totalorder %v1235, 7
        %v1352 = vsel %vm1344, 1, 0
        %v1353 = vsel %vm1345, 1, 0
        %v1354 = vsel %vm1346, 1, 0
        %v1355 = vsel %vm1347, 1, 0
        %v1356 = vsel %vm1348, 1, 0
        %v1357 = vsel %vm1349, 1, 0
        %v1358 = vsel %vm1350, 1, 0
        %v1359 = vsel %vm1351, 1, 0
        %v1360 = vcvt.s32.f32 %v1352
        %v1361 = vcvt.s32.f32 %v1353
        %v1362 = vcvt.s32.f32 %v1354
        %v1363 = vcvt.s32.f32 %v1355
        %v1364 = vcvt.s32.f32 %v1356
        %v1365 = vcvt.s32.f32 %v1357
        %v1366 = vcvt.s32.f32 %v1358
        %v1367 = vcvt.s32.f32 %v1359
        %v1368 = vmul.f32 %v1343, %v1360
        %v1369 = vmul.f32 %v1343, %v1361
        %v1370 = vmul.f32 %v1343, %v1362
        %v1371 = vmul.f32 %v1343, %v1363
        %v1372 = vmul.f32 %v1343, %v1364
        %v1373 = vmul.f32 %v1343, %v1365
        %v1374 = vmul.f32 %v1343, %v1366
        %v1375 = vmul.f32 %v1343, %v1367
        %vm1384 = vcmask 1041408
        %v1385 = vrot.slane %v1368, 6
        %v1386 = vrot.slane %v1369, 6
        %v1387 = vsel %vm1384, %v1385, %v1386
        %v1388 = vrot.slane %v1370, 6
        %v1389 = vsel %vm1384, %v1386, %v1388
        %v1390 = vrot.slane %v1371, 6
        %v1391 = vsel %vm1384, %v1388, %v1390
        %v1392 = vrot.slane %v1372, 6
        %v1393 = vsel %vm1384, %v1390, %v1392
        %v1394 = vrot.slane %v1373, 6
        %v1395 = vsel %vm1384, %v1392, %v1394
        %v1396 = vrot.slane %v1374, 6
        %v1397 = vsel %vm1384, %v1394, %v1396
        %v1398 = vrot.slane %v1375, 6
        %v1399 = vsel %vm1384, %v1396, %v1398
        %v1409 = vmul.f32 %v1385, 0.0
        %v1410 = vmul.f32 %v1217, %v1387
        %v1411 = vmul.f32 %v1195, %v1389
        %v1412 = vmul.f32 %v1197, %v1391
        %v1413 = vmul.f32 %v1199, %v1393
        %v1414 = vmul.f32 %v1201, %v1395
        %v1415 = vmul.f32 %v1203, %v1397
        %v1416 = vmul.f32 %v1205, %v1399
        %v1417 = vmul.f32 %v1207, %v1398
        %vm1427 = vcmask 1045504
        %v1428 = vrot.slane %v1409, 2
        %v1429 = vrot.slane %v1410, 2
        %v1430 = vsel %vm1427, %v1428, %v1429
        %v1431 = vrot.slane %v1411, 2
        %v1432 = vsel %vm1427, %v1429, %v1431
        %v1433 = vrot.slane %v1412, 2
        %v1434 = vsel %vm1427, %v1431, %v1433
        %v1435 = vrot.slane %v1413, 2
        %v1436 = vsel %vm1427, %v1433, %v1435
        %v1437 = vrot.slane %v1414, 2
        %v1438 = vsel %vm1427, %v1435, %v1437
        %v1439 = vrot.slane %v1415, 2
        %v1440 = vsel %vm1427, %v1437, %v1439
        %v1441 = vrot.slane %v1416, 2
        %v1442 = vsel %vm1427, %v1439, %v1441
        %v1443 = vrot.slane %v1417, 2
        %v1444 = vsel %vm1427, %v1441, %v1443
        %v1453 = vadd.f32 %v1331, %v1430
        %v1454 = vadd.f32 %v1332, %v1432
        %v1455 = vadd.f32 %v1333, %v1434
        %v1456 = vadd.f32 %v1334, %v1436
        %v1457 = vadd.f32 %v1335, %v1438
        %v1458 = vadd.f32 %v1336, %v1440
        %v1459 = vadd.f32 %v1337, %v1442
        %v1460 = vadd.f32 %v1338, %v1444
        %vm1461 = vcmp.ge.s32.totalorder %v1237, 96
        %vm1462 = vcmp.lt.s32.totalorder %v1237, 128
        %vm1463 = vmand %vm1461, %vm1462
        %v1464 = vsel %vm1463, 1, 0
        %v1465 = vcvt.s32.f32 %v1464
        %v1466 = vmul.f32 %v1465, %v1259
        %v1467 = vmul.f32 %v1465, %v1260
        %v1468 = vmul.f32 %v1465, %v1261
        %v1469 = vmul.f32 %v1465, %v1262
        %v1470 = vmul.f32 %v1465, %v1263
        %v1471 = vmul.f32 %v1465, %v1264
        %v1472 = vmul.f32 %v1465, %v1265
        %v1473 = vmul.f32 %v1465, %v1266
        %v1474 = vmul.f32 %v1217, %v1466
        %v1475 = vmul.f32 %v1195, %v1467
        %v1476 = vmul.f32 %v1197, %v1468
        %v1477 = vmul.f32 %v1199, %v1469
        %v1478 = vmul.f32 %v1201, %v1470
        %v1479 = vmul.f32 %v1203, %v1471
        %v1480 = vmul.f32 %v1205, %v1472
        %v1481 = vmul.f32 %v1207, %v1473
        %v1482 = vadd.f32 %v1453, %v1474
        %v1483 = vadd.f32 %v1454, %v1475
        %v1484 = vadd.f32 %v1455, %v1476
        %v1485 = vadd.f32 %v1456, %v1477
        %v1486 = vadd.f32 %v1457, %v1478
        %v1487 = vadd.f32 %v1458, %v1479
        %v1488 = vadd.f32 %v1459, %v1480
        %v1489 = vadd.f32 %v1460, %v1481
        %v1490 = vmul.f32 %v1217, %v1242
        %v1491 = vmul.f32 %v1195, %v1242
        %v1492 = vmul.f32 %v1197, %v1242
        %v1493 = vmul.f32 %v1199, %v1242
        %v1494 = vmul.f32 %v1201, %v1242
        %v1495 = vmul.f32 %v1203, %v1242
        %v1496 = vmul.f32 %v1205, %v1242
        %v1497 = vmul.f32 %v1207, %v1242
        %v1498 = vmul.f32 %v1218, %v1242
        %v1499 = vmul.f32 %v1287, %v1360
        %v1500 = vmul.f32 %v1287, %v1361
        %v1501 = vmul.f32 %v1287, %v1362
        %v1502 = vmul.f32 %v1287, %v1363
        %v1503 = vmul.f32 %v1287, %v1364
        %v1504 = vmul.f32 %v1287, %v1365
        %v1505 = vmul.f32 %v1287, %v1366
        %v1506 = vmul.f32 %v1287, %v1367
        %v1515 = vrot.slane %v1499, 6
        %v1516 = vrot.slane %v1500, 6
        %v1517 = vsel %vm1384, %v1515, %v1516
        %v1518 = vrot.slane %v1501, 6
        %v1519 = vsel %vm1384, %v1516, %v1518
        %v1520 = vrot.slane %v1502, 6
        %v1521 = vsel %vm1384, %v1518, %v1520
        %v1522 = vrot.slane %v1503, 6
        %v1523 = vsel %vm1384, %v1520, %v1522
        %v1524 = vrot.slane %v1504, 6
        %v1525 = vsel %vm1384, %v1522, %v1524
        %v1526 = vrot.slane %v1505, 6
        %v1527 = vsel %vm1384, %v1524, %v1526
        %v1528 = vrot.slane %v1506, 6
        %v1529 = vsel %vm1384, %v1526, %v1528
        %v1539 = vmul.f32 %v1217, %v1515
        %v1540 = vmul.f32 %v1195, %v1517
        %v1541 = vmul.f32 %v1197, %v1519
        %v1542 = vmul.f32 %v1199, %v1521
        %v1543 = vmul.f32 %v1201, %v1523
        %v1544 = vmul.f32 %v1203, %v1525
        %v1545 = vmul.f32 %v1205, %v1527
        %v1546 = vmul.f32 %v1207, %v1529
        %v1547 = vmul.f32 %v1218, %v1528
        %v1557 = vrot.slane %v1539, 1
        %v1558 = vrot.slane %v1540, 1
        %v1559 = vsel %vm865, %v1557, %v1558
        %v1560 = vrot.slane %v1541, 1
        %v1561 = vsel %vm865, %v1558, %v1560
        %v1562 = vrot.slane %v1542, 1
        %v1563 = vsel %vm865, %v1560, %v1562
        %v1564 = vrot.slane %v1543, 1
        %v1565 = vsel %vm865, %v1562, %v1564
        %v1566 = vrot.slane %v1544, 1
        %v1567 = vsel %vm865, %v1564, %v1566
        %v1568 = vrot.slane %v1545, 1
        %v1569 = vsel %vm865, %v1566, %v1568
        %v1570 = vrot.slane %v1546, 1
        %v1571 = vsel %vm865, %v1568, %v1570
        %v1572 = vrot.slane %v1547, 1
        %v1573 = vsel %vm865, %v1570, %v1572
        %v1583 = vadd.f32 %v1490, %v1559
        %v1584 = vadd.f32 %v1491, %v1561
        %v1585 = vadd.f32 %v1492, %v1563
        %v1586 = vadd.f32 %v1493, %v1565
        %v1587 = vadd.f32 %v1494, %v1567
        %v1588 = vadd.f32 %v1495, %v1569
        %v1589 = vadd.f32 %v1496, %v1571
        %v1590 = vadd.f32 %v1497, %v1573
        %v1591 = vadd.f32 %v1498, %v1572
        %v1592 = vmul.f32 %v1343, %v1259
        %v1593 = vmul.f32 %v1343, %v1260
        %v1594 = vmul.f32 %v1343, %v1261
        %v1595 = vmul.f32 %v1343, %v1262
        %v1596 = vmul.f32 %v1343, %v1263
        %v1597 = vmul.f32 %v1343, %v1264
        %v1598 = vmul.f32 %v1343, %v1265
        %v1599 = vmul.f32 %v1343, %v1266
        %v1600 = vmul.f32 %v1195, %v1592
        %v1601 = vmul.f32 %v1197, %v1593
        %v1602 = vmul.f32 %v1199, %v1594
        %v1603 = vmul.f32 %v1201, %v1595
        %v1604 = vmul.f32 %v1203, %v1596
        %v1605 = vmul.f32 %v1205, %v1597
        %v1606 = vmul.f32 %v1207, %v1598
        %v1607 = vmul.f32 %v1218, %v1599
        %v1616 = vrot.slane %v1600, 7
        %v1617 = vrot.slane %v1601, 7
        %v1618 = vsel %vm1192, %v1616, %v1617
        %v1619 = vrot.slane %v1602, 7
        %v1620 = vsel %vm1192, %v1617, %v1619
        %v1621 = vrot.slane %v1603, 7
        %v1622 = vsel %vm1192, %v1619, %v1621
        %v1623 = vrot.slane %v1604, 7
        %v1624 = vsel %vm1192, %v1621, %v1623
        %v1625 = vrot.slane %v1605, 7
        %v1626 = vsel %vm1192, %v1623, %v1625
        %v1627 = vrot.slane %v1606, 7
        %v1628 = vsel %vm1192, %v1625, %v1627
        %v1629 = vrot.slane %v1607, 7
        %v1630 = vsel %vm1192, %v1627, %v1629
        %v1640 = vadd.f32 %v1583, %v1616
        %v1641 = vadd.f32 %v1584, %v1618
        %v1642 = vadd.f32 %v1585, %v1620
        %v1643 = vadd.f32 %v1586, %v1622
        %v1644 = vadd.f32 %v1587, %v1624
        %v1645 = vadd.f32 %v1588, %v1626
        %v1646 = vadd.f32 %v1589, %v1628
        %v1647 = vadd.f32 %v1590, %v1630
        %v1648 = vadd.f32 %v1591, %v1629
        %v1649 = vmul.f32 %v1195, %v1465
        %v1650 = vmul.f32 %v1197, %v1465
        %v1651 = vmul.f32 %v1199, %v1465
        %v1652 = vmul.f32 %v1201, %v1465
        %v1653 = vmul.f32 %v1203, %v1465
        %v1654 = vmul.f32 %v1205, %v1465
        %v1655 = vmul.f32 %v1207, %v1465
        %v1656 = vmul.f32 %v1218, %v1465
        %v1657 = vmul.f32 %v1465, 0.0
        %v1658 = vadd.f32 %v1640, %v1649
        %v1659 = vadd.f32 %v1641, %v1650
        %v1660 = vadd.f32 %v1642, %v1651
        %v1661 = vadd.f32 %v1643, %v1652
        %v1662 = vadd.f32 %v1644, %v1653
        %v1663 = vadd.f32 %v1645, %v1654
        %v1664 = vadd.f32 %v1646, %v1655
        %v1665 = vadd.f32 %v1647, %v1656
        %v1666 = vadd.f32 %v1648, %v1657
        %v1667 = vmul.f32 %v1242, %v1360
        %v1668 = vmul.f32 %v1242, %v1361
        %v1669 = vmul.f32 %v1242, %v1362
        %v1670 = vmul.f32 %v1242, %v1363
        %v1671 = vmul.f32 %v1242, %v1364
        %v1672 = vmul.f32 %v1242, %v1365
        %v1673 = vmul.f32 %v1242, %v1366
        %v1674 = vmul.f32 %v1242, %v1367
        %v1683 = vrot.slane %v1667, 6
        %v1684 = vrot.slane %v1668, 6
        %v1685 = vsel %vm1384, %v1683, %v1684
        %v1686 = vrot.slane %v1669, 6
        %v1687 = vsel %vm1384, %v1684, %v1686
        %v1688 = vrot.slane %v1670, 6
        %v1689 = vsel %vm1384, %v1686, %v1688
        %v1690 = vrot.slane %v1671, 6
        %v1691 = vsel %vm1384, %v1688, %v1690
        %v1692 = vrot.slane %v1672, 6
        %v1693 = vsel %vm1384, %v1690, %v1692
        %v1694 = vrot.slane %v1673, 6
        %v1695 = vsel %vm1384, %v1692, %v1694
        %v1696 = vrot.slane %v1674, 6
        %v1697 = vsel %vm1384, %v1694, %v1696
        %v1707 = vmul.f32 %v1195, %v1683
        %v1708 = vmul.f32 %v1197, %v1685
        %v1709 = vmul.f32 %v1199, %v1687
        %v1710 = vmul.f32 %v1201, %v1689
        %v1711 = vmul.f32 %v1203, %v1691
        %v1712 = vmul.f32 %v1205, %v1693
        %v1713 = vmul.f32 %v1207, %v1695
        %v1714 = vmul.f32 %v1218, %v1697
        %v1715 = vmul.f32 %v1696, 0.0
        %v1725 = vrot.slane %v1658, 1
        %v1726 = vrot.slane %v1659, 1
        %v1727 = vsel %vm865, %v1725, %v1726
        %v1728 = vrot.slane %v1660, 1
        %v1729 = vsel %vm865, %v1726, %v1728
        %v1730 = vrot.slane %v1661, 1
        %v1731 = vsel %vm865, %v1728, %v1730
        %v1732 = vrot.slane %v1662, 1
        %v1733 = vsel %vm865, %v1730, %v1732
        %v1734 = vrot.slane %v1663, 1
        %v1735 = vsel %vm865, %v1732, %v1734
        %v1736 = vrot.slane %v1664, 1
        %v1737 = vsel %vm865, %v1734, %v1736
        %v1738 = vrot.slane %v1665, 1
        %v1739 = vsel %vm865, %v1736, %v1738
        %v1740 = vrot.slane %v1666, 1
        %v1741 = vsel %vm865, %v1738, %v1740
        %v1759 = vrot.slane %v1707, 2
        %v1760 = vrot.slane %v1708, 2
        %v1761 = vsel %vm1427, %v1759, %v1760
        %v1762 = vrot.slane %v1709, 2
        %v1763 = vsel %vm1427, %v1760, %v1762
        %v1764 = vrot.slane %v1710, 2
        %v1765 = vsel %vm1427, %v1762, %v1764
        %v1766 = vrot.slane %v1711, 2
        %v1767 = vsel %vm1427, %v1764, %v1766
        %v1768 = vrot.slane %v1712, 2
        %v1769 = vsel %vm1427, %v1766, %v1768
        %v1770 = vrot.slane %v1713, 2
        %v1771 = vsel %vm1427, %v1768, %v1770
        %v1772 = vrot.slane %v1714, 2
        %v1773 = vsel %vm1427, %v1770, %v1772
        %v1774 = vrot.slane %v1715, 2
        %v1775 = vsel %vm1427, %v1772, %v1774
        %v1784 = vpack.c.bf16 %v1483, %v1482
        %v1785 = vpack.c.bf16 %v1729, %v1727
        %v1786 = vpack.c.bf16 %v1763, %v1761
        %v1787 = vpack.c.bf16 %v1485, %v1484
        %v1788 = vpack.c.bf16 %v1733, %v1731
        %v1789 = vpack.c.bf16 %v1767, %v1765
        %v1790 = vpack.c.bf16 %v1487, %v1486
        %v1791 = vpack.c.bf16 %v1737, %v1735
        %v1792 = vpack.c.bf16 %v1771, %v1769
        %v1793 = vpack.c.bf16 %v1489, %v1488
        %v1794 = vpack.c.bf16 %v1741, %v1739
        %v1795 = vpack.c.bf16 %v1775, %v1773
        %v1796 = vld [vmem:[%s4] sm:$0xf]
        %v1797 = vld [vmem:[%s4 + $0x4] sm:$0xf]
        %v1798 = vld [vmem:[%s4 + $0x8] sm:$0xf]
        %v1799 = vld [vmem:[%s4 + $0xc] sm:$0xf]
        %v1800 = vld [vmem:[%s4 + $0x10] sm:$0xf]
        %v1801 = vld [vmem:[%s4 + $0x14] sm:$0xf]
        %v1802 = vld [vmem:[%s4 + $0x18] sm:$0xf]
        %v1803 = vld [vmem:[%s4 + $0x1c] sm:$0xf]
        %v1804 = vld [vmem:[%s4 + $0x20] sm:$0xf]
        %v1805 = vld [vmem:[%s4 + $0x24] sm:$0xf]
        %v1806 = vld [vmem:[%s4 + $0x28] sm:$0xf]
        %v1807 = vld [vmem:[%s4 + $0x2c] sm:$0xf]
        %v1808 = vld [vmem:[%s4 + $0x30] sm:$0xf]
        %v1809 = vld [vmem:[%s4 + $0x34] sm:$0xf]
        %v1810 = vld [vmem:[%s4 + $0x38] sm:$0xf]
        %v1811 = vld [vmem:[%s4 + $0x3c] sm:$0xf]
        %v1812 = vld [vmem:[%s4 + $0x40] sm:$0xf]
        %v1813 = vld [vmem:[%s4 + $0x44] sm:$0xf]
        %v1814 = vld [vmem:[%s4 + $0x48] sm:$0xf]
        %v1815 = vld [vmem:[%s4 + $0x4c] sm:$0xf]
        %v1816 = vld [vmem:[%s4 + $0x50] sm:$0xf]
        %v1817 = vld [vmem:[%s4 + $0x54] sm:$0xf]
        %v1818 = vld [vmem:[%s4 + $0x58] sm:$0xf]
        %v1819 = vld [vmem:[%s4 + $0x5c] sm:$0xf]
        %v1820 = vld [vmem:[%s4 + $0x60] sm:$0xf]
        %v1821 = vld [vmem:[%s4 + $0x64] sm:$0xf]
        %v1822 = vld [vmem:[%s4 + $0x68] sm:$0xf]
        %v1823 = vld [vmem:[%s4 + $0x6c] sm:$0xf]
        %v1824 = vld [vmem:[%s4 + $0x70] sm:$0xf]
        %v1825 = vld [vmem:[%s4 + $0x74] sm:$0xf]
        %v1826 = vld [vmem:[%s4 + $0x78] sm:$0xf]
        %v1827 = vld [vmem:[%s4 + $0x7c] sm:$0xf]
        %v1828 = vld [vmem:[%s4 + $0x80] sm:$0xf]
        %v1829 = vld [vmem:[%s4 + $0x84] sm:$0xf]
        %v1830 = vld [vmem:[%s4 + $0x88] sm:$0xf]
        %v1831 = vld [vmem:[%s4 + $0x8c] sm:$0xf]
        %v1832 = vld [vmem:[%s4 + $0x90] sm:$0xf]
        %v1833 = vld [vmem:[%s4 + $0x94] sm:$0xf]
        %v1834 = vld [vmem:[%s4 + $0x98] sm:$0xf]
        %v1835 = vld [vmem:[%s4 + $0x9c] sm:$0xf]
        %v1836 = vld [vmem:[%s4 + $0xa0] sm:$0xf]
        %v1837 = vld [vmem:[%s4 + $0xa4] sm:$0xf]
        %v1838 = vld [vmem:[%s4 + $0xa8] sm:$0xf]
        %v1839 = vld [vmem:[%s4 + $0xac] sm:$0xf]
        %v1840 = vld [vmem:[%s4 + $0xb0] sm:$0xf]
        %v1841 = vld [vmem:[%s4 + $0xb4] sm:$0xf]
        %v1842 = vld [vmem:[%s4 + $0xb8] sm:$0xf]
        %v1843 = vld [vmem:[%s4 + $0xbc] sm:$0xf]
        %v1844 = vld [vmem:[%s5] sm:$0x1]
        %v1846 = vlaneseq
        %v1847 = vshrl.u32 %v1846, 7
        %v1848 = vsub.s32 0, %v1847
        %v1849 = vrot.slane %v1844, %v1848
        %v1899 = vunpack.c.l.b16 %v1796
        %v1900 = vunpack.c.l.b16 %v1797
        %v1901 = vunpack.c.l.b16 %v1798
        %v1902 = vunpack.c.l.b16 %v1799
        %v1903 = vunpack.c.l.b16 %v1800
        %v1904 = vunpack.c.l.b16 %v1801
        %v1905 = vunpack.c.l.b16 %v1802
        %v1906 = vunpack.c.l.b16 %v1803
        %v1907 = vunpack.c.l.b16 %v1804
        %v1908 = vunpack.c.l.b16 %v1805
        %v1909 = vunpack.c.l.b16 %v1806
        %v1910 = vunpack.c.l.b16 %v1807
        %v1911 = vunpack.c.l.b16 %v1808
        %v1912 = vunpack.c.l.b16 %v1809
        %v1913 = vunpack.c.l.b16 %v1810
        %v1914 = vunpack.c.l.b16 %v1811
        %v1915 = vunpack.c.l.b16 %v1812
        %v1916 = vunpack.c.l.b16 %v1813
        %v1917 = vunpack.c.l.b16 %v1814
        %v1918 = vunpack.c.l.b16 %v1815
        %v1919 = vunpack.c.l.b16 %v1816
        %v1920 = vunpack.c.l.b16 %v1817
        %v1921 = vunpack.c.l.b16 %v1818
        %v1922 = vunpack.c.l.b16 %v1819
        %v1923 = vunpack.c.l.b16 %v1820
        %v1924 = vunpack.c.l.b16 %v1821
        %v1925 = vunpack.c.l.b16 %v1822
        %v1926 = vunpack.c.l.b16 %v1823
        %v1927 = vunpack.c.l.b16 %v1824
        %v1928 = vunpack.c.l.b16 %v1825
        %v1929 = vunpack.c.l.b16 %v1826
        %v1930 = vunpack.c.l.b16 %v1827
        %v1931 = vunpack.c.l.b16 %v1828
        %v1932 = vunpack.c.l.b16 %v1829
        %v1933 = vunpack.c.l.b16 %v1830
        %v1934 = vunpack.c.l.b16 %v1831
        %v1935 = vunpack.c.l.b16 %v1832
        %v1936 = vunpack.c.l.b16 %v1833
        %v1937 = vunpack.c.l.b16 %v1834
        %v1938 = vunpack.c.l.b16 %v1835
        %v1939 = vunpack.c.l.b16 %v1836
        %v1940 = vunpack.c.l.b16 %v1837
        %v1941 = vunpack.c.l.b16 %v1838
        %v1942 = vunpack.c.l.b16 %v1839
        %v1943 = vunpack.c.l.b16 %v1840
        %v1944 = vunpack.c.l.b16 %v1841
        %v1945 = vunpack.c.l.b16 %v1842
        %v1946 = vunpack.c.l.b16 %v1843
        %v1947 = vpack.c.b16 %v1900, %v1899
        %v1948 = vpack.c.b16 %v1902, %v1901
        %v1949 = vpack.c.b16 %v1904, %v1903
        %v1950 = vpack.c.b16 %v1906, %v1905
        %v1951 = vpack.c.b16 %v1908, %v1907
        %v1952 = vpack.c.b16 %v1910, %v1909
        %v1953 = vpack.c.b16 %v1912, %v1911
        %v1954 = vpack.c.b16 %v1914, %v1913
        %v1955 = vpack.c.b16 %v1916, %v1915
        %v1956 = vpack.c.b16 %v1918, %v1917
        %v1957 = vpack.c.b16 %v1920, %v1919
        %v1958 = vpack.c.b16 %v1922, %v1921
        %v1959 = vpack.c.b16 %v1924, %v1923
        %v1960 = vpack.c.b16 %v1926, %v1925
        %v1961 = vpack.c.b16 %v1928, %v1927
        %v1962 = vpack.c.b16 %v1930, %v1929
        %v1963 = vpack.c.b16 %v1932, %v1931
        %v1964 = vpack.c.b16 %v1934, %v1933
        %v1965 = vpack.c.b16 %v1936, %v1935
        %v1966 = vpack.c.b16 %v1938, %v1937
        %v1967 = vpack.c.b16 %v1940, %v1939
        %v1968 = vpack.c.b16 %v1942, %v1941
        %v1969 = vpack.c.b16 %v1944, %v1943
        %v1970 = vpack.c.b16 %v1946, %v1945
        %1995 = vmatprep.subr.bf16.mxu0 0
        %1996 = vmatpush1.bf16.msra.mxu0 %v1947
        %1997 = vmatprep.subr.bf16.mxu0 0
        %1998 = vmatpush1.bf16.msra.mxu0 %v1948
        %1999 = vmatprep.subr.bf16.mxu0 0
        %2000 = vmatpush1.bf16.msra.mxu0 %v1949
        %2001 = vmatprep.subr.bf16.mxu0 0
        %2002 = vmatpush1.bf16.msra.mxu0 %v1950
        %2003 = vmatprep.subr.bf16.mxu0 0
        %2004 = vmatpush1.bf16.msra.mxu0 %v1951
        %2005 = vmatprep.subr.bf16.mxu0 0
        %2006 = vmatpush1.bf16.msra.mxu0 %v1952
        %2007 = vmatprep.subr.bf16.mxu0 0
        %2008 = vmatpush1.bf16.msra.mxu0 %v1953
        %2009 = vmatprep.subr.bf16.mxu0 0
        %2010 = vmatpush1.bf16.msra.mxu0 %v1954
        %2011 = vmatprep.subr.bf16.mxu0 0
        %2012 = vmatpush1.bf16.msra.mxu0 %v1955
        %2013 = vmatprep.subr.bf16.mxu0 0
        %2014 = vmatpush1.bf16.msra.mxu0 %v1956
        %2015 = vmatprep.subr.bf16.mxu0 0
        %2016 = vmatpush1.bf16.msra.mxu0 %v1957
        %2017 = vmatprep.subr.bf16.mxu0 0
        %2018 = vmatpush1.bf16.msra.mxu0 %v1958
        %2019 = vmatprep.subr.bf16.mxu0 0
        %2020 = vmatpush1.bf16.msra.mxu0 %v1959
        %2021 = vmatprep.subr.bf16.mxu0 0
        %2022 = vmatpush1.bf16.msra.mxu0 %v1960
        %2023 = vmatprep.subr.bf16.mxu0 0
        %2024 = vmatpush1.bf16.msra.mxu0 %v1961
        %2025 = vmatprep.subr.bf16.mxu0 0
        %2026 = vmatpush1.bf16.msra.mxu0 %v1962
        %2027 = vmatprep.mubr.bf16.mxu0 %v1785
        %2028 = vmatmul.mubr.bf16.gmra.mrb[0].mxu0 %v1784
        %v2029 = vpop.f32.mrb[0].mxu0
        %v2030 = vadd.f32 %v1849, %v2029
        %v2031 = vpop.f32.mrb[0].mxu0
        %v2032 = vpop.f32.mrb[0].mxu0
        %v2033 = vadd.f32 %v1849, %v2032
        %v2034 = vpop.f32.mrb[0].mxu0
        %2035 = vmatprep.mubr.bf16.mxu0 %v1788
        %2036 = vmatmul.mubr.bf16.gmra.mrb[0].mxu0 %v1787
        %v2037 = vpop.f32.mrb[0].mxu0
        %v2038 = vadd.f32 %v1849, %v2037
        %v2039 = vpop.f32.mrb[0].mxu0
        %v2040 = vpop.f32.mrb[0].mxu0
        %v2041 = vadd.f32 %v1849, %v2040
        %v2042 = vpop.f32.mrb[0].mxu0
        %2043 = vmatprep.mubr.bf16.mxu0 %v1791
        %2044 = vmatmul.mubr.bf16.gmra.mrb[0].mxu0 %v1790
        %v2045 = vpop.f32.mrb[0].mxu0
        %v2046 = vadd.f32 %v1849, %v2045
        %v2047 = vpop.f32.mrb[0].mxu0
        %v2048 = vpop.f32.mrb[0].mxu0
        %v2049 = vadd.f32 %v1849, %v2048
        %v2050 = vpop.f32.mrb[0].mxu0
        %2051 = vmatprep.mubr.bf16.mxu0 %v1794
        %2052 = vmatmul.mubr.bf16.gmra.mrb[0].mxu0 %v1793
        %v2053 = vpop.f32.mrb[0].mxu0
        %v2054 = vadd.f32 %v1849, %v2053
        %v2055 = vpop.f32.mrb[0].mxu0
        %v2056 = vpop.f32.mrb[0].mxu0
        %v2057 = vadd.f32 %v1849, %v2056
        %v2058 = vpop.f32.mrb[0].mxu0
        %2059 = vdwg.mxu0
        %2060 = vmatprep.subr.bf16.mxu0 0
        %2061 = vmatpush1.bf16.msra.mxu0 %v1963
        %2062 = vmatprep.subr.bf16.mxu0 0
        %2063 = vmatpush1.bf16.msra.mxu0 %v1964
        %2064 = vmatprep.subr.bf16.mxu0 0
        %2065 = vmatpush1.bf16.msra.mxu0 %v1965
        %2066 = vmatprep.subr.bf16.mxu0 0
        %2067 = vmatpush1.bf16.msra.mxu0 %v1966
        %2068 = vmatprep.subr.bf16.mxu0 0
        %2069 = vmatpush1.bf16.msra.mxu0 %v1967
        %2070 = vmatprep.subr.bf16.mxu0 0
        %2071 = vmatpush1.bf16.msra.mxu0 %v1968
        %2072 = vmatprep.subr.bf16.mxu0 0
        %2073 = vmatpush1.bf16.msra.mxu0 %v1969
        %2074 = vmatprep.subr.bf16.mxu0 0
        %2075 = vmatpush1.bf16.msra.mxu0 %v1970
        %2076 = vmatprep.subr.bf16.mxu0 0
        %2077 = vmatpush1.bf16.msra.mxu0 0
        %2078 = vmatprep.subr.bf16.mxu0 0
        %2079 = vmatpush1.bf16.msra.mxu0 0
        %2080 = vmatprep.subr.bf16.mxu0 0
        %2081 = vmatpush1.bf16.msra.mxu0 0
        %2082 = vmatprep.subr.bf16.mxu0 0
        %2083 = vmatpush1.bf16.msra.mxu0 0
        %2084 = vmatprep.subr.bf16.mxu0 0
        %2085 = vmatpush1.bf16.msra.mxu0 0
        %2086 = vmatprep.subr.bf16.mxu0 0
        %2087 = vmatpush1.bf16.msra.mxu0 0
        %2088 = vmatprep.subr.bf16.mxu0 0
        %2089 = vmatpush1.bf16.msra.mxu0 0
        %2090 = vmatprep.subr.bf16.mxu0 0
        %2091 = vmatpush1.bf16.msra.mxu0 0
        %2092 = vmatprep.mubr.bf16.mxu0 0
        %2093 = vmatmul.mubr.bf16.gmra.mrb[0].mxu0 %v1786
        %v2094 = vpop.f32.mrb[0].mxu0
        %v2095 = vadd.f32 %v2030, %v2094
        %v2096 = vpop.f32.mrb[0].mxu0
        %v2097 = vpop.f32.mrb[0].mxu0
        %v2098 = vadd.f32 %v2033, %v2097
        %v2099 = vpop.f32.mrb[0].mxu0
        %2100 = vmatprep.mubr.bf16.mxu0 0
        %2101 = vmatmul.mubr.bf16.gmra.mrb[0].mxu0 %v1789
        %v2102 = vpop.f32.mrb[0].mxu0
        %v2103 = vadd.f32 %v2038, %v2102
        %v2104 = vpop.f32.mrb[0].mxu0
        %v2105 = vpop.f32.mrb[0].mxu0
        %v2106 = vadd.f32 %v2041, %v2105
        %v2107 = vpop.f32.mrb[0].mxu0
        %2108 = vmatprep.mubr.bf16.mxu0 0
        %2109 = vmatmul.mubr.bf16.gmra.mrb[0].mxu0 %v1792
        %v2110 = vpop.f32.mrb[0].mxu0
        %v2111 = vadd.f32 %v2046, %v2110
        %v2112 = vpop.f32.mrb[0].mxu0
        %v2113 = vpop.f32.mrb[0].mxu0
        %v2114 = vadd.f32 %v2049, %v2113
        %v2115 = vpop.f32.mrb[0].mxu0
        %2116 = vmatprep.mubr.bf16.mxu0 0
        %2117 = vmatmul.mubr.bf16.gmra.mrb[0].mxu0 %v1795
        %v2118 = vpop.f32.mrb[0].mxu0
        %v2119 = vadd.f32 %v2054, %v2118
        %v2120 = vpop.f32.mrb[0].mxu0
        %v2121 = vpop.f32.mrb[0].mxu0
        %v2122 = vadd.f32 %v2057, %v2121
        %v2123 = vpop.f32.mrb[0].mxu0
        %2124 = vdwg.mxu0
        %v2125 = vmax.f32 %v2095, 0.0
        %v2126 = vmax.f32 %v2098, 0.0
        %v2127 = vmax.f32 %v2103, 0.0
        %v2128 = vmax.f32 %v2106, 0.0
        %v2129 = vmax.f32 %v2111, 0.0
        %v2130 = vmax.f32 %v2114, 0.0
        %v2131 = vmax.f32 %v2119, 0.0
        %v2132 = vmax.f32 %v2122, 0.0
        %v2140 = vrot.slane %v2125, 1
        %v2141 = vrot.slane %v2126, 1
        %v2142 = vsel %vm865, %v2140, %v2141
        %v2143 = vrot.slane %v2127, 1
        %v2144 = vsel %vm865, %v2141, %v2143
        %v2145 = vrot.slane %v2128, 1
        %v2146 = vsel %vm865, %v2143, %v2145
        %v2147 = vrot.slane %v2129, 1
        %v2148 = vsel %vm865, %v2145, %v2147
        %v2149 = vrot.slane %v2130, 1
        %v2150 = vsel %vm865, %v2147, %v2149
        %v2151 = vrot.slane %v2131, 1
        %v2152 = vsel %vm865, %v2149, %v2151
        %v2160 = vmax.f32 %v2125, %v2142
        %v2161 = vmax.f32 %v2126, %v2144
        %v2162 = vmax.f32 %v2127, %v2146
        %v2163 = vmax.f32 %v2128, %v2148
        %v2164 = vmax.f32 %v2129, %v2150
        %v2165 = vmax.f32 %v2130, %v2152
        %v2166 = vmax.f32 %v2131, %v2151
        %v2168 = vrot.slane %v2132, 1
        %v2169 = vsel %vm865, %v2151, %v2168
        %v2172 = vmax.f32 %v2131, %v2169
        %v2173 = vmax.f32 %v2132, %v2168
        %v2174 = vmax.f32 %v2160, %v2161
        %v2175 = vmax.f32 %v2161, %v2162
        %v2176 = vmax.f32 %v2162, %v2163
        %v2177 = vmax.f32 %v2163, %v2164
        %v2178 = vmax.f32 %v2164, %v2165
        %v2179 = vmax.f32 %v2165, %v2172
        %v2180 = vmax.f32 %v2166, %v2173
        %v2181 = vld [vmem:[%s6] sm:$0xf]
        %v2182 = vld [vmem:[%s6 + $0x4] sm:$0xf]
        %v2183 = vunpack.c.l.bf16 %v2181
        %v2184 = vunpack.c.l.bf16 %v2182
        %vm2185 = vcmask 449536
        %v2187 = vsel %vm2185, %v2183, 0
        %v2190 = vsel %vm2185, %v2184, 0
        %v2193 = vsel %vm865, %v2180, 0
        %2195 = vmatprep.subr.mxu0 0.0
        %2196 = vmatpush1.msra.mxu0 %v2174
        %2197 = vmatprep.subr.mxu0 0.0
        %2198 = vmatpush1.msra.mxu0 %v2175
        %2199 = vmatprep.subr.mxu0 0.0
        %2200 = vmatpush1.msra.mxu0 %v2176
        %2201 = vmatprep.subr.mxu0 0.0
        %2202 = vmatpush1.msra.mxu0 %v2177
        %2203 = vmatprep.subr.mxu0 0.0
        %2204 = vmatpush1.msra.mxu0 %v2178
        %2205 = vmatprep.subr.mxu0 0.0
        %2206 = vmatpush1.msra.mxu0 %v2179
        %2207 = vmatprep.subr.mxu0 0.0
        %2208 = vmatpush1.msra.mxu0 %v2193
        %2209 = vmatprep.subr.mxu0 0.0
        %2210 = vmatpush1.msra.mxu0 0.0
        %2211 = vmatprep.subr.mxu0 0.0
        %2212 = vmatpush1.msra.mxu0 0.0
        %2213 = vmatprep.subr.mxu0 0.0
        %2214 = vmatpush1.msra.mxu0 0.0
        %2215 = vmatprep.subr.mxu0 0.0
        %2216 = vmatpush1.msra.mxu0 0.0
        %2217 = vmatprep.subr.mxu0 0.0
        %2218 = vmatpush1.msra.mxu0 0.0
        %2219 = vmatprep.subr.mxu0 0.0
        %2220 = vmatpush1.msra.mxu0 0.0
        %2221 = vmatprep.subr.mxu0 0.0
        %2222 = vmatpush1.msra.mxu0 0.0
        %2223 = vmatprep.subr.mxu0 0.0
        %2224 = vmatpush1.msra.mxu0 0.0
        %2225 = vmatprep.subr.mxu0 0.0
        %2226 = vmatpush1.msra.mxu0 0.0
        %2227 = vmatprep.subr.mxu0 0.0
        %2228 = vmatpush1.msra.mxu0 0.0
        %2229 = vmatprep.subr.mxu0 0.0
        %2230 = vmatpush1.msra.mxu0 0.0
        %2231 = vmatprep.subr.mxu0 0.0
        %2232 = vmatpush1.msra.mxu0 0.0
        %2233 = vmatprep.subr.mxu0 0.0
        %2234 = vmatpush1.msra.mxu0 0.0
        %2235 = vmatprep.subr.mxu0 0.0
        %2236 = vmatpush1.msra.mxu0 0.0
        %2237 = vmatprep.subr.mxu0 0.0
        %2238 = vmatpush1.msra.mxu0 0.0
        %2239 = vmatprep.subr.mxu0 0.0
        %2240 = vmatpush1.msra.mxu0 0.0
        %2241 = vmatprep.subr.mxu0 0.0
        %2242 = vmatpush1.msra.mxu0 0.0
        %2243 = vmatprep.subr.mxu0 0.0
        %2244 = vmatpush1.msra.mxu0 0.0
        %2245 = vmatprep.subr.mxu0 0.0
        %2246 = vmatpush1.msra.mxu0 0.0
        %2247 = vmatprep.subr.mxu0 0.0
        %2248 = vmatpush1.msra.mxu0 0.0
        %2249 = vmatprep.subr.mxu0 0.0
        %2250 = vmatpush1.msra.mxu0 0.0
        %2251 = vmatprep.subr.mxu0 0.0
        %2252 = vmatpush1.msra.mxu0 0.0
        %2253 = vmatprep.subr.mxu0 0.0
        %2254 = vmatpush1.msra.mxu0 0.0
        %2255 = vmatprep.subr.mxu0 0.0
        %2256 = vmatpush1.msra.mxu0 0.0
        %2257 = vmatprep.subr.mxu0 0.0
        %2258 = vmatpush1.msra.mxu0 0.0
        %2259 = vmatprep.mubr.f32.mxu0 0.0
        %2260 = vmatmul.mubr.f32.gmra.mrb[0].mxu0 %v2187
        %v2261 = vpop.f32.mrb[0].mxu0
        %v2262 = vadd.f32 0.0, %v2261
        %v2263 = vpop.f32.mrb[0].mxu0
        %2264 = vmatprep.mubr.f32.mxu0 0.0
        %2265 = vmatmul.mubr.f32.gmra.mrb[0].mxu0 %v2190
        %v2266 = vpop.f32.mrb[0].mxu0
        %v2267 = vadd.f32 0.0, %v2266
        %v2268 = vpop.f32.mrb[0].mxu0
        %2269 = vdwg.mxu0
        %vm2272 = vcmask 1044480
        %v2273 = vrot.slane %v2262, 3
        %v2274 = vrot.slane %v2267, 3
        %v2275 = vsel %vm2272, %v2273, %v2274
        %v2279 = vsel %vm2272, 0.0, %v2273
        %v2280 = vsel %vm2272, %v2274, 0.0
        %v2281 = vand.u32 %v1220, 3
        %v2282 = vand.u32 %v1221, 3
        %vm2283 = vmand %vm1238, %vm1284
        %v2284 = vsel %vm2283, 1, 0
        %v2285 = vcvt.s32.f32 %v2284
        %vm2286 = vcmp.ge.s32.totalorder %v2281, 1
        %vm2287 = vcmp.ge.s32.totalorder %v2282, 1
        %v2288 = vsel %vm2286, 1, 0
        %v2289 = vsel %vm2287, 1, 0
        %v2290 = vcvt.s32.f32 %v2288
        %v2291 = vcvt.s32.f32 %v2289
        %v2292 = vmul.f32 %v2285, %v2290
        %v2293 = vmul.f32 %v2285, %v2291
        %v2294 = vmul.f32 %v2279, %v2292
        %v2295 = vmul.f32 %v2275, %v2293
        %vm2296 = vmand %vm1339, %vm1462
        %v2297 = vsel %vm2296, 1, 0
        %v2298 = vcvt.s32.f32 %v2297
        %v2299 = vmul.f32 %v2279, %v2298
        %v2300 = vmul.f32 %v2275, %v2298
        %v2301 = vmul.f32 %v2280, %v2298
        %v2305 = vrot.slane %v2299, 1
        %v2306 = vrot.slane %v2300, 1
        %v2307 = vsel %vm865, %v2305, %v2306
        %v2308 = vrot.slane %v2301, 1
        %v2309 = vsel %vm865, %v2306, %v2308
        %v2312 = vadd.f32 %v2294, %v2307
        %v2313 = vadd.f32 %v2295, %v2309
        %vm2314 = vcmp.lt.s32.totalorder %v2281, 3
        %vm2315 = vcmp.lt.s32.totalorder %v2282, 3
        %v2316 = vsel %vm2314, 1, 0
        %v2317 = vsel %vm2315, 1, 0
        %v2318 = vcvt.s32.f32 %v2316
        %v2319 = vcvt.s32.f32 %v2317
        %v2320 = vmul.f32 %v2285, %v2318
        %v2321 = vmul.f32 %v2285, %v2319
        %v2324 = vrot.slane %v2320, 6
        %v2325 = vrot.slane %v2321, 6
        %v2326 = vsel %vm1384, %v2324, %v2325
        %v2330 = vmul.f32 %v2279, %v2324
        %v2331 = vmul.f32 %v2275, %v2326
        %v2332 = vmul.f32 %v2280, %v2325
        %v2333 = vmul.f32 %v2298, %v2290
        %v2334 = vmul.f32 %v2298, %v2291
        %vm2337 = vcmask 1043456
        %v2338 = vrot.slane %v2333, 4
        %v2339 = vrot.slane %v2334, 4
        %v2340 = vsel %vm2337, %v2338, %v2339
        %v2344 = vmul.f32 %v2279, %v2338
        %v2345 = vmul.f32 %v2275, %v2340
        %v2346 = vmul.f32 %v2280, %v2339
        %v2350 = vrot.slane %v2344, 2
        %v2351 = vrot.slane %v2345, 2
        %v2352 = vsel %vm1427, %v2350, %v2351
        %v2353 = vrot.slane %v2346, 2
        %v2354 = vsel %vm1427, %v2351, %v2353
        %v2358 = vadd.f32 %v2330, %v2352
        %v2359 = vadd.f32 %v2331, %v2354
        %v2360 = vadd.f32 %v2332, %v2353
        %v2361 = vmul.f32 %v2279, %v2285
        %v2362 = vmul.f32 %v2275, %v2285
        %v2363 = vmul.f32 %v2280, %v2285
        %v2364 = vmul.f32 %v2298, %v2318
        %v2365 = vmul.f32 %v2298, %v2319
        %v2368 = vrot.slane %v2364, 2
        %v2369 = vrot.slane %v2365, 2
        %v2370 = vsel %vm1427, %v2368, %v2369
        %v2374 = vmul.f32 %v2279, %v2368
        %v2375 = vmul.f32 %v2275, %v2370
        %v2376 = vmul.f32 %v2280, %v2369
        %v2380 = vrot.slane %v2374, 1
        %v2381 = vrot.slane %v2375, 1
        %v2382 = vsel %vm865, %v2380, %v2381
        %v2383 = vrot.slane %v2376, 1
        %v2384 = vsel %vm865, %v2381, %v2383
        %v2388 = vadd.f32 %v2361, %v2382
        %v2389 = vadd.f32 %v2362, %v2384
        %v2390 = vadd.f32 %v2363, %v2383
        %v2391 = vmul.f32 %v2275, %v2292
        %v2392 = vmul.f32 %v2280, %v2293
        %v2393 = vmul.f32 %v2298, 0.0
        %v2395 = vrot.slane %v2393, 1
        %v2396 = vsel %vm865, %v2308, %v2395
        %v2398 = vadd.f32 %v2391, %v2309
        %v2399 = vadd.f32 %v2392, %v2396
        %v2400 = vmul.f32 %v2275, %v2324
        %v2401 = vmul.f32 %v2280, %v2326
        %v2402 = vmul.f32 %v2325, 0.0
        %v2406 = vrot.slane %v2358, 2
        %v2407 = vrot.slane %v2359, 2
        %v2408 = vsel %vm1427, %v2406, %v2407
        %v2409 = vrot.slane %v2360, 2
        %v2410 = vsel %vm1427, %v2407, %v2409
        %vm2416 = vcmask 1042432
        %v2417 = vrot.slane %v2388, 5
        %v2418 = vrot.slane %v2389, 5
        %v2419 = vsel %vm2416, %v2417, %v2418
        %v2420 = vrot.slane %v2390, 5
        %v2421 = vsel %vm2416, %v2418, %v2420
        %v2427 = vrot.slane %v2400, 2
        %v2428 = vrot.slane %v2401, 2
        %v2429 = vsel %vm1427, %v2427, %v2428
        %v2430 = vrot.slane %v2402, 2
        %v2431 = vsel %vm1427, %v2428, %v2430
        %v2434 = vpack.c.bf16 %v2313, %v2312
        %v2435 = vpack.c.bf16 %v2410, %v2408
        %v2436 = vpack.c.bf16 %v2421, %v2419
        %v2437 = vpack.c.bf16 %v2399, %v2398
        %v2438 = vpack.c.bf16 %v2431, %v2429
        %v2439 = vld [vmem:[%s7] sm:$0xf]
        %v2440 = vld [vmem:[%s7 + $0x4] sm:$0xf]
        %v2441 = vld [vmem:[%s7 + $0x8] sm:$0xf]
        %v2442 = vld [vmem:[%s7 + $0xc] sm:$0xf]
        %v2443 = vld [vmem:[%s7 + $0x10] sm:$0xf]
        %v2444 = vld [vmem:[%s7 + $0x14] sm:$0xf]
        %v2445 = vld [vmem:[%s7 + $0x18] sm:$0xf]
        %v2446 = vld [vmem:[%s7 + $0x1c] sm:$0xf]
        %v2447 = vld [vmem:[%s7 + $0x20] sm:$0xf]
        %v2448 = vld [vmem:[%s7 + $0x24] sm:$0xf]
        %v2449 = vld [vmem:[%s7 + $0x28] sm:$0xf]
        %v2450 = vld [vmem:[%s7 + $0x2c] sm:$0xf]
        %v2451 = vld [vmem:[%s7 + $0x30] sm:$0xf]
        %v2452 = vld [vmem:[%s7 + $0x34] sm:$0xf]
        %v2453 = vld [vmem:[%s7 + $0x38] sm:$0xf]
        %v2454 = vld [vmem:[%s7 + $0x3c] sm:$0xf]
        %v2455 = vld [vmem:[%s7 + $0x40] sm:$0xf]
        %v2456 = vld [vmem:[%s7 + $0x44] sm:$0xf]
        %v2457 = vld [vmem:[%s7 + $0x48] sm:$0xf]
        %v2458 = vld [vmem:[%s7 + $0x4c] sm:$0xf]
        %v2459 = vld [vmem:[%s7 + $0x50] sm:$0xf]
        %v2460 = vld [vmem:[%s7 + $0x54] sm:$0xf]
        %v2461 = vld [vmem:[%s7 + $0x58] sm:$0xf]
        %v2462 = vld [vmem:[%s7 + $0x5c] sm:$0xf]
        %v2463 = vld [vmem:[%s7 + $0x60] sm:$0xf]
        %v2464 = vld [vmem:[%s7 + $0x64] sm:$0xf]
        %v2465 = vld [vmem:[%s7 + $0x68] sm:$0xf]
        %v2466 = vld [vmem:[%s7 + $0x6c] sm:$0xf]
        %v2467 = vld [vmem:[%s7 + $0x70] sm:$0xf]
        %v2468 = vld [vmem:[%s7 + $0x74] sm:$0xf]
        %v2469 = vld [vmem:[%s7 + $0x78] sm:$0xf]
        %v2470 = vld [vmem:[%s7 + $0x7c] sm:$0xf]
        %v2471 = vld [vmem:[%s7 + $0x80] sm:$0xf]
        %v2472 = vld [vmem:[%s7 + $0x84] sm:$0xf]
        %v2473 = vld [vmem:[%s7 + $0x88] sm:$0xf]
        %v2474 = vld [vmem:[%s7 + $0x8c] sm:$0xf]
        %v2475 = vld [vmem:[%s7 + $0x90] sm:$0xf]
        %v2476 = vld [vmem:[%s7 + $0x94] sm:$0xf]
        %v2477 = vld [vmem:[%s7 + $0x98] sm:$0xf]
        %v2478 = vld [vmem:[%s7 + $0x9c] sm:$0xf]
        %v2479 = vld [vmem:[%s7 + $0xa0] sm:$0xf]
        %v2480 = vld [vmem:[%s7 + $0xa4] sm:$0xf]
        %v2481 = vld [vmem:[%s7 + $0xa8] sm:$0xf]
        %v2482 = vld [vmem:[%s7 + $0xac] sm:$0xf]
        %v2483 = vld [vmem:[%s7 + $0xb0] sm:$0xf]
        %v2484 = vld [vmem:[%s7 + $0xb4] sm:$0xf]
        %v2485 = vld [vmem:[%s7 + $0xb8] sm:$0xf]
        %v2486 = vld [vmem:[%s7 + $0xbc] sm:$0xf]
        %v2487 = vld [vmem:[%s7 + $0xc0] sm:$0xf]
        %v2488 = vld [vmem:[%s7 + $0xc4] sm:$0xf]
        %v2489 = vld [vmem:[%s7 + $0xc8] sm:$0xf]
        %v2490 = vld [vmem:[%s7 + $0xcc] sm:$0xf]
        %v2491 = vld [vmem:[%s7 + $0xd0] sm:$0xf]
        %v2492 = vld [vmem:[%s7 + $0xd4] sm:$0xf]
        %v2493 = vld [vmem:[%s7 + $0xd8] sm:$0xf]
        %v2494 = vld [vmem:[%s7 + $0xdc] sm:$0xf]
        %v2495 = vld [vmem:[%s7 + $0xe0] sm:$0xf]
        %v2496 = vld [vmem:[%s7 + $0xe4] sm:$0xf]
        %v2497 = vld [vmem:[%s7 + $0xe8] sm:$0xf]
        %v2498 = vld [vmem:[%s7 + $0xec] sm:$0xf]
        %v2499 = vld [vmem:[%s7 + $0xf0] sm:$0xf]
        %v2500 = vld [vmem:[%s7 + $0xf4] sm:$0xf]
        %v2501 = vld [vmem:[%s7 + $0xf8] sm:$0xf]
        %v2502 = vld [vmem:[%s7 + $0xfc] sm:$0xf]
        %v2503 = vld [vmem:[%s7 + $0x100] sm:$0xf]
        %v2504 = vld [vmem:[%s7 + $0x104] sm:$0xf]
        %v2505 = vld [vmem:[%s7 + $0x108] sm:$0xf]
        %v2506 = vld [vmem:[%s7 + $0x10c] sm:$0xf]
        %v2507 = vld [vmem:[%s7 + $0x110] sm:$0xf]
        %v2508 = vld [vmem:[%s7 + $0x114] sm:$0xf]
        %v2509 = vld [vmem:[%s7 + $0x118] sm:$0xf]
        %v2510 = vld [vmem:[%s7 + $0x11c] sm:$0xf]
        %v2511 = vld [vmem:[%s7 + $0x120] sm:$0xf]
        %v2512 = vld [vmem:[%s7 + $0x124] sm:$0xf]
        %v2513 = vld [vmem:[%s7 + $0x128] sm:$0xf]
        %v2514 = vld [vmem:[%s7 + $0x12c] sm:$0xf]
        %v2515 = vld [vmem:[%s7 + $0x130] sm:$0xf]
        %v2516 = vld [vmem:[%s7 + $0x134] sm:$0xf]
        %v2517 = vld [vmem:[%s7 + $0x138] sm:$0xf]
        %v2518 = vld [vmem:[%s7 + $0x13c] sm:$0xf]
        %v2519 = vld [vmem:[%s8] sm:$0x1]
        %v2521 = vlaneseq
        %v2522 = vshrl.u32 %v2521, 7
        %v2523 = vsub.s32 0, %v2522
        %v2524 = vrot.slane %v2519, %v2523
        %v2606 = vunpack.c.l.b16 %v2439
        %v2607 = vunpack.c.l.b16 %v2440
        %v2608 = vunpack.c.l.b16 %v2441
        %v2609 = vunpack.c.l.b16 %v2442
        %v2610 = vunpack.c.l.b16 %v2443
        %v2611 = vunpack.c.l.b16 %v2444
        %v2612 = vunpack.c.l.b16 %v2445
        %v2613 = vunpack.c.l.b16 %v2446
        %v2614 = vunpack.c.l.b16 %v2447
        %v2615 = vunpack.c.l.b16 %v2448
        %v2616 = vunpack.c.l.b16 %v2449
        %v2617 = vunpack.c.l.b16 %v2450
        %v2618 = vunpack.c.l.b16 %v2451
        %v2619 = vunpack.c.l.b16 %v2452
        %v2620 = vunpack.c.l.b16 %v2453
        %v2621 = vunpack.c.l.b16 %v2454
        %v2622 = vunpack.c.l.b16 %v2455
        %v2623 = vunpack.c.l.b16 %v2456
        %v2624 = vunpack.c.l.b16 %v2457
        %v2625 = vunpack.c.l.b16 %v2458
        %v2626 = vunpack.c.l.b16 %v2459
        %v2627 = vunpack.c.l.b16 %v2460
        %v2628 = vunpack.c.l.b16 %v2461
        %v2629 = vunpack.c.l.b16 %v2462
        %v2630 = vunpack.c.l.b16 %v2463
        %v2631 = vunpack.c.l.b16 %v2464
        %v2632 = vunpack.c.l.b16 %v2465
        %v2633 = vunpack.c.l.b16 %v2466
        %v2634 = vunpack.c.l.b16 %v2467
        %v2635 = vunpack.c.l.b16 %v2468
        %v2636 = vunpack.c.l.b16 %v2469
        %v2637 = vunpack.c.l.b16 %v2470
        %v2638 = vunpack.c.l.b16 %v2471
        %v2639 = vunpack.c.l.b16 %v2472
        %v2640 = vunpack.c.l.b16 %v2473
        %v2641 = vunpack.c.l.b16 %v2474
        %v2642 = vunpack.c.l.b16 %v2475
        %v2643 = vunpack.c.l.b16 %v2476
        %v2644 = vunpack.c.l.b16 %v2477
        %v2645 = vunpack.c.l.b16 %v2478
        %v2646 = vunpack.c.l.b16 %v2479
        %v2647 = vunpack.c.l.b16 %v2480
        %v2648 = vunpack.c.l.b16 %v2481
        %v2649 = vunpack.c.l.b16 %v2482
        %v2650 = vunpack.c.l.b16 %v2483
        %v2651 = vunpack.c.l.b16 %v2484
        %v2652 = vunpack.c.l.b16 %v2485
        %v2653 = vunpack.c.l.b16 %v2486
        %v2654 = vunpack.c.l.b16 %v2487
        %v2655 = vunpack.c.l.b16 %v2488
        %v2656 = vunpack.c.l.b16 %v2489
        %v2657 = vunpack.c.l.b16 %v2490
        %v2658 = vunpack.c.l.b16 %v2491
        %v2659 = vunpack.c.l.b16 %v2492
        %v2660 = vunpack.c.l.b16 %v2493
        %v2661 = vunpack.c.l.b16 %v2494
        %v2662 = vunpack.c.l.b16 %v2495
        %v2663 = vunpack.c.l.b16 %v2496
        %v2664 = vunpack.c.l.b16 %v2497
        %v2665 = vunpack.c.l.b16 %v2498
        %v2666 = vunpack.c.l.b16 %v2499
        %v2667 = vunpack.c.l.b16 %v2500
        %v2668 = vunpack.c.l.b16 %v2501
        %v2669 = vunpack.c.l.b16 %v2502
        %v2670 = vunpack.c.l.b16 %v2503
        %v2671 = vunpack.c.l.b16 %v2504
        %v2672 = vunpack.c.l.b16 %v2505
        %v2673 = vunpack.c.l.b16 %v2506
        %v2674 = vunpack.c.l.b16 %v2507
        %v2675 = vunpack.c.l.b16 %v2508
        %v2676 = vunpack.c.l.b16 %v2509
        %v2677 = vunpack.c.l.b16 %v2510
        %v2678 = vunpack.c.l.b16 %v2511
        %v2679 = vunpack.c.l.b16 %v2512
        %v2680 = vunpack.c.l.b16 %v2513
        %v2681 = vunpack.c.l.b16 %v2514
        %v2682 = vunpack.c.l.b16 %v2515
        %v2683 = vunpack.c.l.b16 %v2516
        %v2684 = vunpack.c.l.b16 %v2517
        %v2685 = vunpack.c.l.b16 %v2518
        %v2686 = vpack.c.b16 %v2607, %v2606
        %v2687 = vpack.c.b16 %v2609, %v2608
        %v2688 = vpack.c.b16 %v2611, %v2610
        %v2689 = vpack.c.b16 %v2613, %v2612
        %v2690 = vpack.c.b16 %v2615, %v2614
        %v2691 = vpack.c.b16 %v2617, %v2616
        %v2692 = vpack.c.b16 %v2619, %v2618
        %v2693 = vpack.c.b16 %v2621, %v2620
        %v2694 = vpack.c.b16 %v2623, %v2622
        %v2695 = vpack.c.b16 %v2625, %v2624
        %v2696 = vpack.c.b16 %v2627, %v2626
        %v2697 = vpack.c.b16 %v2629, %v2628
        %v2698 = vpack.c.b16 %v2631, %v2630
        %v2699 = vpack.c.b16 %v2633, %v2632
        %v2700 = vpack.c.b16 %v2635, %v2634
        %v2701 = vpack.c.b16 %v2637, %v2636
        %v2702 = vpack.c.b16 %v2639, %v2638
        %v2703 = vpack.c.b16 %v2641, %v2640
        %v2704 = vpack.c.b16 %v2643, %v2642
        %v2705 = vpack.c.b16 %v2645, %v2644
        %v2706 = vpack.c.b16 %v2647, %v2646
        %v2707 = vpack.c.b16 %v2649, %v2648
        %v2708 = vpack.c.b16 %v2651, %v2650
        %v2709 = vpack.c.b16 %v2653, %v2652
        %v2710 = vpack.c.b16 %v2655, %v2654
        %v2711 = vpack.c.b16 %v2657, %v2656
        %v2712 = vpack.c.b16 %v2659, %v2658
        %v2713 = vpack.c.b16 %v2661, %v2660
        %v2714 = vpack.c.b16 %v2663, %v2662
        %v2715 = vpack.c.b16 %v2665, %v2664
        %v2716 = vpack.c.b16 %v2667, %v2666
        %v2717 = vpack.c.b16 %v2669, %v2668
        %v2718 = vpack.c.b16 %v2671, %v2670
        %v2719 = vpack.c.b16 %v2673, %v2672
        %v2720 = vpack.c.b16 %v2675, %v2674
        %v2721 = vpack.c.b16 %v2677, %v2676
        %v2722 = vpack.c.b16 %v2679, %v2678
        %v2723 = vpack.c.b16 %v2681, %v2680
        %v2724 = vpack.c.b16 %v2683, %v2682
        %v2725 = vpack.c.b16 %v2685, %v2684
        %2766 = vmatprep.subr.bf16.mxu0 0
        %2767 = vmatpush1.bf16.msra.mxu0 %v2686
        %2768 = vmatprep.subr.bf16.mxu0 0
        %2769 = vmatpush1.bf16.msra.mxu0 %v2687
        %2770 = vmatprep.subr.bf16.mxu0 0
        %2771 = vmatpush1.bf16.msra.mxu0 %v2688
        %2772 = vmatprep.subr.bf16.mxu0 0
        %2773 = vmatpush1.bf16.msra.mxu0 %v2689
        %2774 = vmatprep.subr.bf16.mxu0 0
        %2775 = vmatpush1.bf16.msra.mxu0 %v2690
        %2776 = vmatprep.subr.bf16.mxu0 0
        %2777 = vmatpush1.bf16.msra.mxu0 %v2691
        %2778 = vmatprep.subr.bf16.mxu0 0
        %2779 = vmatpush1.bf16.msra.mxu0 %v2692
        %2780 = vmatprep.subr.bf16.mxu0 0
        %2781 = vmatpush1.bf16.msra.mxu0 %v2693
        %2782 = vmatprep.subr.bf16.mxu0 0
        %2783 = vmatpush1.bf16.msra.mxu0 %v2694
        %2784 = vmatprep.subr.bf16.mxu0 0
        %2785 = vmatpush1.bf16.msra.mxu0 %v2695
        %2786 = vmatprep.subr.bf16.mxu0 0
        %2787 = vmatpush1.bf16.msra.mxu0 %v2696
        %2788 = vmatprep.subr.bf16.mxu0 0
        %2789 = vmatpush1.bf16.msra.mxu0 %v2697
        %2790 = vmatprep.subr.bf16.mxu0 0
        %2791 = vmatpush1.bf16.msra.mxu0 %v2698
        %2792 = vmatprep.subr.bf16.mxu0 0
        %2793 = vmatpush1.bf16.msra.mxu0 %v2699
        %2794 = vmatprep.subr.bf16.mxu0 0
        %2795 = vmatpush1.bf16.msra.mxu0 %v2700
        %2796 = vmatprep.subr.bf16.mxu0 0
        %2797 = vmatpush1.bf16.msra.mxu0 %v2701
        %2798 = vmatprep.mubr.bf16.mxu0 %v2435
        %2799 = vmatmul.mubr.bf16.gmra.mrb[0].mxu0 %v2434
        %v2800 = vpop.f32.mrb[0].mxu0
        %v2801 = vadd.f32 %v2524, %v2800
        %v2802 = vpop.f32.mrb[0].mxu0
        %v2803 = vpop.f32.mrb[0].mxu0
        %v2804 = vadd.f32 %v2524, %v2803
        %v2805 = vpop.f32.mrb[0].mxu0
        %2806 = vdwg.mxu0
        %2807 = vmatprep.subr.bf16.mxu0 0
        %2808 = vmatpush1.bf16.msra.mxu0 %v2702
        %2809 = vmatprep.subr.bf16.mxu0 0
        %2810 = vmatpush1.bf16.msra.mxu0 %v2703
        %2811 = vmatprep.subr.bf16.mxu0 0
        %2812 = vmatpush1.bf16.msra.mxu0 %v2704
        %2813 = vmatprep.subr.bf16.mxu0 0
        %2814 = vmatpush1.bf16.msra.mxu0 %v2705
        %2815 = vmatprep.subr.bf16.mxu0 0
        %2816 = vmatpush1.bf16.msra.mxu0 %v2706
        %2817 = vmatprep.subr.bf16.mxu0 0
        %2818 = vmatpush1.bf16.msra.mxu0 %v2707
        %2819 = vmatprep.subr.bf16.mxu0 0
        %2820 = vmatpush1.bf16.msra.mxu0 %v2708
        %2821 = vmatprep.subr.bf16.mxu0 0
        %2822 = vmatpush1.bf16.msra.mxu0 %v2709
        %2823 = vmatprep.subr.bf16.mxu0 0
        %2824 = vmatpush1.bf16.msra.mxu0 %v2710
        %2825 = vmatprep.subr.bf16.mxu0 0
        %2826 = vmatpush1.bf16.msra.mxu0 %v2711
        %2827 = vmatprep.subr.bf16.mxu0 0
        %2828 = vmatpush1.bf16.msra.mxu0 %v2712
        %2829 = vmatprep.subr.bf16.mxu0 0
        %2830 = vmatpush1.bf16.msra.mxu0 %v2713
        %2831 = vmatprep.subr.bf16.mxu0 0
        %2832 = vmatpush1.bf16.msra.mxu0 %v2714
        %2833 = vmatprep.subr.bf16.mxu0 0
        %2834 = vmatpush1.bf16.msra.mxu0 %v2715
        %2835 = vmatprep.subr.bf16.mxu0 0
        %2836 = vmatpush1.bf16.msra.mxu0 %v2716
        %2837 = vmatprep.subr.bf16.mxu0 0
        %2838 = vmatpush1.bf16.msra.mxu0 %v2717
        %2839 = vmatprep.mubr.bf16.mxu0 %v2437
        %2840 = vmatmul.mubr.bf16.gmra.mrb[0].mxu0 %v2436
        %v2841 = vpop.f32.mrb[0].mxu0
        %v2842 = vadd.f32 %v2801, %v2841
        %v2843 = vpop.f32.mrb[0].mxu0
        %v2844 = vpop.f32.mrb[0].mxu0
        %v2845 = vadd.f32 %v2804, %v2844
        %v2846 = vpop.f32.mrb[0].mxu0
        %2847 = vdwg.mxu0
        %2848 = vmatprep.subr.bf16.mxu0 0
        %2849 = vmatpush1.bf16.msra.mxu0 %v2718
        %2850 = vmatprep.subr.bf16.mxu0 0
        %2851 = vmatpush1.bf16.msra.mxu0 %v2719
        %2852 = vmatprep.subr.bf16.mxu0 0
        %2853 = vmatpush1.bf16.msra.mxu0 %v2720
        %2854 = vmatprep.subr.bf16.mxu0 0
        %2855 = vmatpush1.bf16.msra.mxu0 %v2721
        %2856 = vmatprep.subr.bf16.mxu0 0
        %2857 = vmatpush1.bf16.msra.mxu0 %v2722
        %2858 = vmatprep.subr.bf16.mxu0 0
        %2859 = vmatpush1.bf16.msra.mxu0 %v2723
        %2860 = vmatprep.subr.bf16.mxu0 0
        %2861 = vmatpush1.bf16.msra.mxu0 %v2724
        %2862 = vmatprep.subr.bf16.mxu0 0
        %2863 = vmatpush1.bf16.msra.mxu0 %v2725
        %2864 = vmatprep.subr.bf16.mxu0 0
        %2865 = vmatpush1.bf16.msra.mxu0 0
        %2866 = vmatprep.subr.bf16.mxu0 0
        %2867 = vmatpush1.bf16.msra.mxu0 0
        %2868 = vmatprep.subr.bf16.mxu0 0
        %2869 = vmatpush1.bf16.msra.mxu0 0
        %2870 = vmatprep.subr.bf16.mxu0 0
        %2871 = vmatpush1.bf16.msra.mxu0 0
        %2872 = vmatprep.subr.bf16.mxu0 0
        %2873 = vmatpush1.bf16.msra.mxu0 0
        %2874 = vmatprep.subr.bf16.mxu0 0
        %2875 = vmatpush1.bf16.msra.mxu0 0
        %2876 = vmatprep.subr.bf16.mxu0 0
        %2877 = vmatpush1.bf16.msra.mxu0 0
        %2878 = vmatprep.subr.bf16.mxu0 0
        %2879 = vmatpush1.bf16.msra.mxu0 0
        %2880 = vmatprep.mubr.bf16.mxu0 0
        %2881 = vmatmul.mubr.bf16.gmra.mrb[0].mxu0 %v2438
        %v2882 = vpop.f32.mrb[0].mxu0
        %v2883 = vadd.f32 %v2842, %v2882
        %v2884 = vpop.f32.mrb[0].mxu0
        %v2885 = vpop.f32.mrb[0].mxu0
        %v2886 = vadd.f32 %v2845, %v2885
        %v2887 = vpop.f32.mrb[0].mxu0
        %2888 = vdwg.mxu0
        %v2889 = vmax.f32 %v2883, 0.0
        %v2890 = vmax.f32 %v2886, 0.0
        %v2893 = vrot.slane %v2889, 1
        %v2894 = vrot.slane %v2890, 1
        %v2895 = vsel %vm865, %v2893, %v2894
        %v2898 = vmax.f32 %v2889, %v2895
        %v2899 = vmax.f32 %v2890, %v2894
        %v2902 = vrot.slane %v2898, 4
        %v2903 = vrot.slane %v2899, 4
        %v2904 = vsel %vm2337, %v2902, %v2903
        %v2907 = vmax.f32 %v2898, %v2904
        %v2908 = vmax.f32 %v2899, %v2903
        %v2909 = vld [vmem:[%s9] sm:$0x1]
        %v2910 = vunpack.c.l.bf16 %v2909
        %vm2911 = vcmask 89088
        %v2913 = vsel %vm2911, %v2910, 0
        %v2916 = vsel %vm2416, %v2908, 0
        %2918 = vmatprep.subr.mxu0 0.0
        %2919 = vmatpush1.msra.mxu0 %v2907
        %2920 = vmatprep.subr.mxu0 0.0
        %2921 = vmatpush1.msra.mxu0 %v2916
        %2922 = vmatprep.subr.mxu0 0.0
        %2923 = vmatpush1.msra.mxu0 0.0
        %2924 = vmatprep.subr.mxu0 0.0
        %2925 = vmatpush1.msra.mxu0 0.0
        %2926 = vmatprep.subr.mxu0 0.0
        %2927 = vmatpush1.msra.mxu0 0.0
        %2928 = vmatprep.subr.mxu0 0.0
        %2929 = vmatpush1.msra.mxu0 0.0
        %2930 = vmatprep.subr.mxu0 0.0
        %2931 = vmatpush1.msra.mxu0 0.0
        %2932 = vmatprep.subr.mxu0 0.0
        %2933 = vmatpush1.msra.mxu0 0.0
        %2934 = vmatprep.subr.mxu0 0.0
        %2935 = vmatpush1.msra.mxu0 0.0
        %2936 = vmatprep.subr.mxu0 0.0
        %2937 = vmatpush1.msra.mxu0 0.0
        %2938 = vmatprep.subr.mxu0 0.0
        %2939 = vmatpush1.msra.mxu0 0.0
        %2940 = vmatprep.subr.mxu0 0.0
        %2941 = vmatpush1.msra.mxu0 0.0
        %2942 = vmatprep.subr.mxu0 0.0
        %2943 = vmatpush1.msra.mxu0 0.0
        %2944 = vmatprep.subr.mxu0 0.0
        %2945 = vmatpush1.msra.mxu0 0.0
        %2946 = vmatprep.subr.mxu0 0.0
        %2947 = vmatpush1.msra.mxu0 0.0
        %2948 = vmatprep.subr.mxu0 0.0
        %2949 = vmatpush1.msra.mxu0 0.0
        %2950 = vmatprep.subr.mxu0 0.0
        %2951 = vmatpush1.msra.mxu0 0.0
        %2952 = vmatprep.subr.mxu0 0.0
        %2953 = vmatpush1.msra.mxu0 0.0
        %2954 = vmatprep.subr.mxu0 0.0
        %2955 = vmatpush1.msra.mxu0 0.0
        %2956 = vmatprep.subr.mxu0 0.0
        %2957 = vmatpush1.msra.mxu0 0.0
        %2958 = vmatprep.subr.mxu0 0.0
        %2959 = vmatpush1.msra.mxu0 0.0
        %2960 = vmatprep.subr.mxu0 0.0
        %2961 = vmatpush1.msra.mxu0 0.0
        %2962 = vmatprep.subr.mxu0 0.0
        %2963 = vmatpush1.msra.mxu0 0.0
        %2964 = vmatprep.subr.mxu0 0.0
        %2965 = vmatpush1.msra.mxu0 0.0
        %2966 = vmatprep.subr.mxu0 0.0
        %2967 = vmatpush1.msra.mxu0 0.0
        %2968 = vmatprep.subr.mxu0 0.0
        %2969 = vmatpush1.msra.mxu0 0.0
        %2970 = vmatprep.subr.mxu0 0.0
        %2971 = vmatpush1.msra.mxu0 0.0
        %2972 = vmatprep.subr.mxu0 0.0
        %2973 = vmatpush1.msra.mxu0 0.0
        %2974 = vmatprep.subr.mxu0 0.0
        %2975 = vmatpush1.msra.mxu0 0.0
        %2976 = vmatprep.subr.mxu0 0.0
        %2977 = vmatpush1.msra.mxu0 0.0
        %2978 = vmatprep.subr.mxu0 0.0
        %2979 = vmatpush1.msra.mxu0 0.0
        %2980 = vmatprep.subr.mxu0 0.0
        %2981 = vmatpush1.msra.mxu0 0.0
        %2982 = vmatprep.mubr.f32.mxu0 0.0
        %2983 = vmatmul.mubr.f32.gmra.mrb[0].mxu0 %v2913
        %v2984 = vpop.f32.mrb[0].mxu0
        %v2985 = vadd.f32 0.0, %v2984
        %v2986 = vpop.f32.mrb[0].mxu0
        %2987 = vdwg.mxu0
        %v2989 = vrot.slane %v2985, 7
        %v2991 = vsel %vm1192, 0.0, %v2989
        %v2992 = vsel %vm2416, %v2991, 0.0
        %v2993 = vsel %vm1284, 1, 0
        %v2994 = vcvt.s32.f32 %v2993
        %v2995 = vmul.f32 %v2992, %v2994
        %v2996 = vsub.f32 1.0, %v2994
        %v2997 = vmul.f32 %v2992, %v2996
        %v2999 = vrot.slane %v2997, 1
        %v3001 = vadd.f32 %v2995, %v2999
        %v3003 = vrot.slane %v2992, 2
        %v3005 = vpack.c.bf16 %v3001, %v3001
        %v3006 = vpack.c.bf16 %v3003, %v3003
        %v3007 = vld [vmem:[%s10] sm:$0xf]
        %v3008 = vld [vmem:[%s10 + $0x4] sm:$0xf]
        %v3009 = vld [vmem:[%s10 + $0x8] sm:$0xf]
        %v3010 = vld [vmem:[%s10 + $0xc] sm:$0xf]
        %v3011 = vld [vmem:[%s10 + $0x10] sm:$0xf]
        %v3012 = vld [vmem:[%s10 + $0x14] sm:$0xf]
        %v3013 = vld [vmem:[%s10 + $0x18] sm:$0xf]
        %v3014 = vld [vmem:[%s10 + $0x1c] sm:$0xf]
        %v3015 = vld [vmem:[%s10 + $0x20] sm:$0xf]
        %v3016 = vld [vmem:[%s10 + $0x24] sm:$0xf]
        %v3017 = vld [vmem:[%s10 + $0x28] sm:$0xf]
        %v3018 = vld [vmem:[%s10 + $0x2c] sm:$0xf]
        %v3019 = vld [vmem:[%s10 + $0x30] sm:$0xf]
        %v3020 = vld [vmem:[%s10 + $0x34] sm:$0xf]
        %v3021 = vld [vmem:[%s10 + $0x38] sm:$0xf]
        %v3022 = vld [vmem:[%s10 + $0x3c] sm:$0xf]
        %v3023 = vld [vmem:[%s10 + $0x40] sm:$0xf]
        %v3024 = vld [vmem:[%s10 + $0x44] sm:$0xf]
        %v3025 = vld [vmem:[%s10 + $0x48] sm:$0xf]
        %v3026 = vld [vmem:[%s10 + $0x4c] sm:$0xf]
        %v3027 = vld [vmem:[%s10 + $0x50] sm:$0xf]
        %v3028 = vld [vmem:[%s10 + $0x54] sm:$0xf]
        %v3029 = vld [vmem:[%s10 + $0x58] sm:$0xf]
        %v3030 = vld [vmem:[%s10 + $0x5c] sm:$0xf]
        %v3031 = vld [vmem:[%s10 + $0x60] sm:$0xf]
        %v3032 = vld [vmem:[%s10 + $0x64] sm:$0xf]
        %v3033 = vld [vmem:[%s10 + $0x68] sm:$0xf]
        %v3034 = vld [vmem:[%s10 + $0x6c] sm:$0xf]
        %v3035 = vld [vmem:[%s10 + $0x70] sm:$0xf]
        %v3036 = vld [vmem:[%s10 + $0x74] sm:$0xf]
        %v3037 = vld [vmem:[%s10 + $0x78] sm:$0xf]
        %v3038 = vld [vmem:[%s10 + $0x7c] sm:$0xf]
        %v3039 = vld [vmem:[%s11] sm:$0x1]
        %v3041 = vlaneseq
        %v3042 = vshrl.u32 %v3041, 7
        %v3043 = vsub.s32 0, %v3042
        %v3044 = vrot.slane %v3039, %v3043
        %v3078 = vunpack.c.l.b16 %v3007
        %v3079 = vunpack.c.l.b16 %v3008
        %v3080 = vunpack.c.l.b16 %v3009
        %v3081 = vunpack.c.l.b16 %v3010
        %v3082 = vunpack.c.l.b16 %v3011
        %v3083 = vunpack.c.l.b16 %v3012
        %v3084 = vunpack.c.l.b16 %v3013
        %v3085 = vunpack.c.l.b16 %v3014
        %v3086 = vunpack.c.l.b16 %v3015
        %v3087 = vunpack.c.l.b16 %v3016
        %v3088 = vunpack.c.l.b16 %v3017
        %v3089 = vunpack.c.l.b16 %v3018
        %v3090 = vunpack.c.l.b16 %v3019
        %v3091 = vunpack.c.l.b16 %v3020
        %v3092 = vunpack.c.l.b16 %v3021
        %v3093 = vunpack.c.l.b16 %v3022
        %v3094 = vunpack.c.l.b16 %v3023
        %v3095 = vunpack.c.l.b16 %v3024
        %v3096 = vunpack.c.l.b16 %v3025
        %v3097 = vunpack.c.l.b16 %v3026
        %v3098 = vunpack.c.l.b16 %v3027
        %v3099 = vunpack.c.l.b16 %v3028
        %v3100 = vunpack.c.l.b16 %v3029
        %v3101 = vunpack.c.l.b16 %v3030
        %v3102 = vunpack.c.l.b16 %v3031
        %v3103 = vunpack.c.l.b16 %v3032
        %v3104 = vunpack.c.l.b16 %v3033
        %v3105 = vunpack.c.l.b16 %v3034
        %v3106 = vunpack.c.l.b16 %v3035
        %v3107 = vunpack.c.l.b16 %v3036
        %v3108 = vunpack.c.l.b16 %v3037
        %v3109 = vunpack.c.l.b16 %v3038
        %v3110 = vpack.c.b16 %v3079, %v3078
        %v3111 = vpack.c.b16 %v3081, %v3080
        %v3112 = vpack.c.b16 %v3083, %v3082
        %v3113 = vpack.c.b16 %v3085, %v3084
        %v3114 = vpack.c.b16 %v3087, %v3086
        %v3115 = vpack.c.b16 %v3089, %v3088
        %v3116 = vpack.c.b16 %v3091, %v3090
        %v3117 = vpack.c.b16 %v3093, %v3092
        %v3118 = vpack.c.b16 %v3095, %v3094
        %v3119 = vpack.c.b16 %v3097, %v3096
        %v3120 = vpack.c.b16 %v3099, %v3098
        %v3121 = vpack.c.b16 %v3101, %v3100
        %v3122 = vpack.c.b16 %v3103, %v3102
        %v3123 = vpack.c.b16 %v3105, %v3104
        %v3124 = vpack.c.b16 %v3107, %v3106
        %v3125 = vpack.c.b16 %v3109, %v3108
        %3142 = vmatprep.subr.bf16.mxu0 0
        %3143 = vmatpush1.bf16.msra.mxu0 %v3110
        %3144 = vmatprep.subr.bf16.mxu0 0
        %3145 = vmatpush1.bf16.msra.mxu0 %v3111
        %3146 = vmatprep.subr.bf16.mxu0 0
        %3147 = vmatpush1.bf16.msra.mxu0 %v3112
        %3148 = vmatprep.subr.bf16.mxu0 0
        %3149 = vmatpush1.bf16.msra.mxu0 %v3113
        %3150 = vmatprep.subr.bf16.mxu0 0
        %3151 = vmatpush1.bf16.msra.mxu0 %v3114
        %3152 = vmatprep.subr.bf16.mxu0 0
        %3153 = vmatpush1.bf16.msra.mxu0 %v3115
        %3154 = vmatprep.subr.bf16.mxu0 0
        %3155 = vmatpush1.bf16.msra.mxu0 %v3116
        %3156 = vmatprep.subr.bf16.mxu0 0
        %3157 = vmatpush1.bf16.msra.mxu0 %v3117
        %3158 = vmatprep.subr.bf16.mxu0 0
        %3159 = vmatpush1.bf16.msra.mxu0 %v3118
        %3160 = vmatprep.subr.bf16.mxu0 0
        %3161 = vmatpush1.bf16.msra.mxu0 %v3119
        %3162 = vmatprep.subr.bf16.mxu0 0
        %3163 = vmatpush1.bf16.msra.mxu0 %v3120
        %3164 = vmatprep.subr.bf16.mxu0 0
        %3165 = vmatpush1.bf16.msra.mxu0 %v3121
        %3166 = vmatprep.subr.bf16.mxu0 0
        %3167 = vmatpush1.bf16.msra.mxu0 %v3122
        %3168 = vmatprep.subr.bf16.mxu0 0
        %3169 = vmatpush1.bf16.msra.mxu0 %v3123
        %3170 = vmatprep.subr.bf16.mxu0 0
        %3171 = vmatpush1.bf16.msra.mxu0 %v3124
        %3172 = vmatprep.subr.bf16.mxu0 0
        %3173 = vmatpush1.bf16.msra.mxu0 %v3125
        %3174 = vmatprep.mubr.bf16.mxu0 %v3006
        %3175 = vmatmul.mubr.bf16.gmra.mrb[0].mxu0 %v3005
        %v3176 = vpop.f32.mrb[0].mxu0
        %v3177 = vadd.f32 %v3044, %v3176
        %v3178 = vpop.f32.mrb[0].mxu0
        %v3179 = vpop.f32.mrb[0].mxu0
        %v3180 = vpop.f32.mrb[0].mxu0
        %3181 = vdwg.mxu0
        %v3182 = vmax.f32 %v3177, 0.0
        %v3183 = vsel %vm1384, %v3182, 0.0
        %v3184 = vrot.slane %v3183, 4
        %v3185 = vadd.f32 %v3183, %v3184
        %v3186 = vrot.slane %v3185, 2
        %v3187 = vadd.f32 %v3185, %v3186
        %v3188 = vrot.slane %v3187, 1
        %v3189 = vadd.f32 %v3187, %v3188
        %v3190 = vmul.f32 %v3189, 0.5
        %v3191 = vpack.c.bf16 %v3190, %v3190
        %v3192 = vld [vmem:[%s12] sm:$0xf]
        %v3193 = vld [vmem:[%s12 + $0x4] sm:$0xf]
        %v3194 = vld [vmem:[%s12 + $0x8] sm:$0xf]
        %v3195 = vld [vmem:[%s12 + $0xc] sm:$0xf]
        %v3196 = vld [vmem:[%s12 + $0x10] sm:$0xf]
        %v3197 = vld [vmem:[%s12 + $0x14] sm:$0xf]
        %v3198 = vld [vmem:[%s12 + $0x18] sm:$0xf]
        %v3199 = vld [vmem:[%s12 + $0x1c] sm:$0xf]
        %v3200 = vld [vmem:[%s12 + $0x20] sm:$0xf]
        %v3201 = vld [vmem:[%s12 + $0x24] sm:$0xf]
        %v3202 = vld [vmem:[%s12 + $0x28] sm:$0xf]
        %v3203 = vld [vmem:[%s12 + $0x2c] sm:$0xf]
        %v3204 = vld [vmem:[%s12 + $0x30] sm:$0xf]
        %v3205 = vld [vmem:[%s12 + $0x34] sm:$0xf]
        %v3206 = vld [vmem:[%s12 + $0x38] sm:$0xf]
        %v3207 = vld [vmem:[%s12 + $0x3c] sm:$0xf]
        %v3208 = vld [vmem:[%s13] sm:$0x1]
        %v3225 = vunpack.c.l.b16 %v3192
        %v3226 = vunpack.c.l.b16 %v3193
        %v3227 = vunpack.c.l.b16 %v3194
        %v3228 = vunpack.c.l.b16 %v3195
        %v3229 = vunpack.c.l.b16 %v3196
        %v3230 = vunpack.c.l.b16 %v3197
        %v3231 = vunpack.c.l.b16 %v3198
        %v3232 = vunpack.c.l.b16 %v3199
        %v3233 = vunpack.c.l.b16 %v3200
        %v3234 = vunpack.c.l.b16 %v3201
        %v3235 = vunpack.c.l.b16 %v3202
        %v3236 = vunpack.c.l.b16 %v3203
        %v3237 = vunpack.c.l.b16 %v3204
        %v3238 = vunpack.c.l.b16 %v3205
        %v3239 = vunpack.c.l.b16 %v3206
        %v3240 = vunpack.c.l.b16 %v3207
        %v3241 = vpack.c.b16 %v3226, %v3225
        %v3242 = vpack.c.b16 %v3228, %v3227
        %v3243 = vpack.c.b16 %v3230, %v3229
        %v3244 = vpack.c.b16 %v3232, %v3231
        %v3245 = vpack.c.b16 %v3234, %v3233
        %v3246 = vpack.c.b16 %v3236, %v3235
        %v3247 = vpack.c.b16 %v3238, %v3237
        %v3248 = vpack.c.b16 %v3240, %v3239
        %3257 = vmatprep.subr.bf16.mxu0 0
        %3258 = vmatpush1.bf16.msra.mxu0 %v3241
        %3259 = vmatprep.subr.bf16.mxu0 0
        %3260 = vmatpush1.bf16.msra.mxu0 %v3242
        %3261 = vmatprep.subr.bf16.mxu0 0
        %3262 = vmatpush1.bf16.msra.mxu0 %v3243
        %3263 = vmatprep.subr.bf16.mxu0 0
        %3264 = vmatpush1.bf16.msra.mxu0 %v3244
        %3265 = vmatprep.subr.bf16.mxu0 0
        %3266 = vmatpush1.bf16.msra.mxu0 %v3245
        %3267 = vmatprep.subr.bf16.mxu0 0
        %3268 = vmatpush1.bf16.msra.mxu0 %v3246
        %3269 = vmatprep.subr.bf16.mxu0 0
        %3270 = vmatpush1.bf16.msra.mxu0 %v3247
        %3271 = vmatprep.subr.bf16.mxu0 0
        %3272 = vmatpush1.bf16.msra.mxu0 %v3248
        %3273 = vmatprep.subr.bf16.mxu0 0
        %3274 = vmatpush1.bf16.msra.mxu0 0
        %3275 = vmatprep.subr.bf16.mxu0 0
        %3276 = vmatpush1.bf16.msra.mxu0 0
        %3277 = vmatprep.subr.bf16.mxu0 0
        %3278 = vmatpush1.bf16.msra.mxu0 0
        %3279 = vmatprep.subr.bf16.mxu0 0
        %3280 = vmatpush1.bf16.msra.mxu0 0
        %3281 = vmatprep.subr.bf16.mxu0 0
        %3282 = vmatpush1.bf16.msra.mxu0 0
        %3283 = vmatprep.subr.bf16.mxu0 0
        %3284 = vmatpush1.bf16.msra.mxu0 0
        %3285 = vmatprep.subr.bf16.mxu0 0
        %3286 = vmatpush1.bf16.msra.mxu0 0
        %3287 = vmatprep.subr.bf16.mxu0 0
        %3288 = vmatpush1.bf16.msra.mxu0 0
        %3289 = vmatprep.mubr.bf16.mxu0 0
        %3290 = vmatmul.mubr.bf16.gmra.mrb[0].mxu0 %v3191
        %v3291 = vpop.f32.mrb[0].mxu0
        %v3292 = vadd.f32 %v3208, %v3291
        %v3293 = vpop.f32.mrb[0].mxu0
        %v3294 = vpop.f32.mrb[0].mxu0
        %v3295 = vpop.f32.mrb[0].mxu0
        %3296 = vdwg.mxu0
        %3297 = vst [vmem:[%s459] sm:$0x1] %v3292
        %s3298 = sand.u32 %s335, 1
        %s3299 = scalar_lea.sflag [#allocation3], %s3298
        %s3300 = sand.u32 %s335, 1
        %s3301 = scalar_lea.vmem [#allocation2], %s3300
        // Predicated region
        $region77: #{mridangam_forward.1} parent=75 // pred_check
          %p3302 = pneg %p345
        $region78: #{mridangam_forward.1} parent=75 // pred_check_branch
          %3304 = sbr.rel (%p3302) target = $region80
        $region79: #{mridangam_forward.1} parent=75 // pred_region
          %s3306 = ssub.s32 16, 16
          %3307 = vsyncadd %s3299, %s3306
          %s3308 = smul.addr %s28, 16
          %s3309 = scalar_lea.hbm %s14, %s3308
          %s3311 = sshll.u32 %s3301, 4
          %s3312 = int_to_ptr.vmem [resolvable:$true] %s3311
          %3314 = dma.vmem_to_hbm [thread:$0]  %s3312, 16, %s3309, %s3299
        $region80: #{mridangam_forward.1} parent=75 // pred_fallthru
          _
      $region76: #{mridangam_forward.1} parent=5 // pred_fallthru
        _
      %p3315 = scmp.le.s32.totalorder 2, %s23
      // Predicated region
      $region81: #{mridangam_forward.1} parent=5 // pred_check
        %p3316 = pneg %p3315
      $region82: #{mridangam_forward.1} parent=5 // pred_check_branch
        %3318 = sbr.rel (%p3316) target = $region84
      $region83: #{mridangam_forward.1} parent=5 // pred_region
        %s3319 = ssub.s32 %s23, 2
        // Predicated region
        $region85: #{mridangam_forward.1} parent=83 // pred_check
          %p3320 = pneg %p351
        $region86: #{mridangam_forward.1} parent=83 // pred_check_branch
          %3322 = sbr.rel (%p3320) target = $region88
        $region87: #{mridangam_forward.1} parent=83 // pred_region
          %s3323 = sand.u32 %s336, 1
          %s3324 = scalar_lea.sflag [#allocation3], %s3323
          %s3325 = sand.u32 %s336, 1
          %s3326 = scalar_lea.vmem [#allocation2], %s3325
          %3327 = dma.done %s3324, 16
        $region88: #{mridangam_forward.1} parent=83 // pred_fallthru
          _
      $region84: #{mridangam_forward.1} parent=5 // pred_fallthru
        _
    $region6: #{mridangam_forward.1} parent=1 // loop_footer
      %s27 = sadd.s32 1, %s23
    $region7: #{mridangam_forward.1} parent=1 // loop_footer_branch
      %22 = sbr.rel target = $region3
    $region8: #{mridangam_forward.1} parent=1 // loop_exit
      _
    %3328 = vsyncpa [#allocation3], 1
    %s3329 = scalar_lea.sflag [#allocation3], 1
    %3330 = vsyncpa %s3329, 1

</llo_original>
